<compile_context>
chip_gen: v5e
topology: v5e:2x2
jax: 0.10.0
libtpu: 0.0.40
codegen_flags: <defaults>
</compile_context>

<pallas_src>
import functools

import jax
import jax.numpy as jnp
from jax.experimental import pallas as pl
from jax.experimental.pallas import tpu as pltpu


# ----------------------------------------------------------------------------- model dims
C_STEM = 32        # stem 3x3 conv, in_chans=1 -> 32, stride 2
C_MID = 64         # MBConv expansion width
C_SE = 8           # SE bottleneck width
C_HEAD = 64        # head 1x1 conv width
NUM_CLASSES = 6    # classifier

MAX_BATCH_BLOCK = 32   # ~0.3 MiB live f32 activations / sample -> ~10 MiB at 32 (v7x safe)


# ----------------------------------------------------------------------------- in-kernel math

def _sigmoid(v):
    """tanh-form sigmoid: one EUP op, numerically exact and stable."""
    return 0.5 * jnp.tanh(0.5 * v) + 0.5


def _silu(v):
    return v * _sigmoid(v)


# Stride-2 3x3 taps expressed over the 4 space-to-depth phases of the padded input:
# tap k = dy*3+dx reads phase[p] at (row+r0, col+c0).  Phase order: ee, eo, oe, oo.
_STEM_TAPS = (
    (0, 0, 0), (1, 0, 0), (0, 0, 1),   # dy = 0
    (2, 0, 0), (3, 0, 0), (2, 0, 1),   # dy = 1
    (0, 1, 0), (1, 1, 0), (0, 1, 1),   # dy = 2
)


# ----------------------------------------------------------------------------- fused kernel

def _eegnet_fused_kernel(
        xph_ref,
        stem_w_ref, stem_b_ref,
        exp_w_ref, exp_b_ref,
        dw_w_ref, dw_b_ref,
        se1_w_ref, se1_b_ref,
        se2_w_ref, se2_b_ref,
        proj_w_ref, proj_b_ref,
        head_w_ref, head_b_ref,
        fc_w_ref, fc_b_ref,
        out_ref,
        dwpad_ref,
        *, bblk, ho, wo):
    """Whole EfficientNet-style backbone for a batch tile, VMEM-resident."""
    f32 = jnp.float32
    c0 = stem_w_ref.shape[1]
    cm = exp_w_ref.shape[1]
    c_head = head_w_ref.shape[1]
    nc = fc_w_ref.shape[1]
    m_rows = ho * wo
    m_total = bblk * m_rows
    inv_hw = 1.0 / float(m_rows)

    # ---- stem: 3x3 / stride-2 / pad-1 conv as in-VMEM im2col + one MXU matmul + SiLU.
    taps = []
    for (ph, r0, cs) in _STEM_TAPS:
        t = xph_ref[:, ph, r0:r0 + ho, cs:cs + wo].astype(f32)   # (bblk, ho, wo)
        taps.append(t[..., None])                                # (bblk, ho, wo, 1)
    patches = jnp.concatenate(taps, axis=-1).reshape(m_total, 9)
    h0_flat = _silu(jnp.dot(patches, stem_w_ref[...], preferred_element_type=f32)
                    + stem_b_ref[...])                           # (m_total, c0)

    # ---- MBConv expand 1x1 (MXU) + SiLU.
    m = _silu(jnp.dot(h0_flat, exp_w_ref[...], preferred_element_type=f32)
              + exp_b_ref[...])                                  # (m_total, cm)

    # ---- depthwise 3x3 / stride-1 / pad-1 + SiLU via zero-padded VMEM scratch.
    # Only the halo is zeroed; the interior is fully overwritten below.
    dwpad_ref[:, 0:1, :, :] = jnp.zeros((bblk, 1, wo + 2, cm), f32)
    dwpad_ref[:, ho + 1:ho + 2, :, :] = jnp.zeros((bblk, 1, wo + 2, cm), f32)
    dwpad_ref[:, :, 0:1, :] = jnp.zeros((bblk, ho + 2, 1, cm), f32)
    dwpad_ref[:, :, wo + 1:wo + 2, :] = jnp.zeros((bblk, ho + 2, 1, cm), f32)
    dwpad_ref[:, 1:1 + ho, 1:1 + wo, :] = m.reshape(bblk, ho, wo, cm)

    acc1 = jnp.zeros((bblk, ho, wo, cm), f32)
    for dy in range(3):
        for dx in range(3):
            k = dy * 3 + dx
            win = dwpad_ref[:, dy:dy + ho, dx:dx + wo, :]        # (bblk, ho, wo, cm)
            acc1 = acc1 + win * dw_w_ref[k:k + 1, :].reshape(1, 1, 1, cm)
    acc1 = acc1 + dw_b_ref[...].reshape(1, 1, 1, cm)
    mdw3 = _silu(acc1).reshape(bblk, m_rows, cm)                 # (bblk, ho*wo, cm)

    # ---- SE (per sample): GAP -> fc1 (SiLU) -> fc2 (sigmoid) channel gate.
    gap = jnp.sum(mdw3, axis=1) * inv_hw                         # (bblk, cm)
    s = _silu(jnp.dot(gap, se1_w_ref[...], preferred_element_type=f32) + se1_b_ref[...])
    gate = _sigmoid(jnp.dot(s, se2_w_ref[...], preferred_element_type=f32) + se2_b_ref[...])

    # ---- project 1x1 with the SE gate folded into the matmul input; residual epilogue.
    gated = (mdw3 * gate[:, None, :]).reshape(m_total, cm)
    proj = jnp.dot(gated, proj_w_ref[...], preferred_element_type=f32) + proj_b_ref[...]
    h1 = proj + h0_flat                                          # (m_total, c0)

    # ---- head 1x1 + SiLU, per-sample GAP, classifier (dropout is an inference no-op).
    hd = _silu(jnp.dot(h1, head_w_ref[...], preferred_element_type=f32) + head_b_ref[...])
    pooled = jnp.sum(hd.reshape(bblk, m_rows, c_head), axis=1) * inv_hw   # (bblk, c_head)
    logits = jnp.dot(pooled, fc_w_ref[...], preferred_element_type=f32) + fc_b_ref[...]

    out_ref[...] = logits.reshape(1, bblk, nc).astype(out_ref.dtype)


# ----------------------------------------------------------------------------- host-side glue

def reshape_input(x):
    """Exact JAX port of ReshapeInput.forward.  x:(B,C,T,8) -> (B,1,4C,2T) NCHW."""
    channels = [x[:, :, :, i:i + 1] for i in range(8)]
    x1 = jnp.concatenate(channels[:4], axis=1)
    x2 = jnp.concatenate(channels[4:], axis=1)
    x3 = jnp.concatenate([x1, x2], axis=2)
    x = jnp.concatenate([x3], axis=3)
    x = jnp.transpose(x, (0, 3, 1, 2))
    return x


def stem_phases(img_nchw):
    """Space-to-depth (stride-2 phases) of the zero-padded stem input.

    (B, 1, H, W) -> (B, 4, H//2 + 1, W//2 + 1); phase order ee, eo, oe, oo.
    1x data volume (reordered only); the 9x im2col happens later in VMEM.
    """
    x2d = img_nchw[:, 0]
    xp = jnp.pad(x2d, ((0, 0), (1, 1), (1, 1)))
    return jnp.stack(
        [xp[:, 0::2, 0::2], xp[:, 0::2, 1::2], xp[:, 1::2, 0::2], xp[:, 1::2, 1::2]],
        axis=1)


_PARAM_ORDER = ("stem", "exp", "dw", "se1", "se2", "proj", "head", "fc")


def init_params(key):
    dims = {
        "stem": (9, C_STEM),           # 3x3 conv, in_chans=1 -> 32, stride 2
        "exp": (C_STEM, C_MID),        # MBConv expand 1x1
        "dw": (9, C_MID),              # depthwise 3x3
        "se1": (C_MID, C_SE),          # SE squeeze
        "se2": (C_SE, C_MID),          # SE excite
        "proj": (C_MID, C_STEM),       # MBConv project 1x1
        "head": (C_STEM, C_HEAD),      # head 1x1 conv
        "fc": (C_HEAD, NUM_CLASSES),   # classifier
    }
    params = {}
    for name, (fan_in, fan_out) in dims.items():
        key, kw = jax.random.split(key)
        params[name + "_w"] = (jax.random.normal(kw, (fan_in, fan_out), jnp.float32)
                               * (1.0 / jnp.sqrt(fan_in)))
        params[name + "_b"] = jnp.zeros((1, fan_out), jnp.float32)   # pre-shaped (1, N)
    return params


def _pick_batch_block(b):
    """Batch tile: amortize per-step overhead, keep >=2 grid steps for v7x megacore,
    and cap resident activations well inside v7x's 64 MiB VMEM."""
    if b <= 1:
        return 1
    return max(1, min(MAX_BATCH_BLOCK, b // 2))


def eegnet_forward(x, params):
    img = reshape_input(x)                       # (B, 1, H, W), H = 4*C, W = 2*T
    b, _, hh, ww = img.shape
    assert hh % 2 == 0 and ww % 2 == 0, (hh, ww)
    ho, wo = hh // 2, ww // 2
    xph = stem_phases(img)                       # (B, 4, ho+1, wo+1)

    bblk = _pick_batch_block(b)
    steps = -(-b // bblk)
    b_pad = steps * bblk
    if b_pad != b:
        xph = jnp.pad(xph, ((0, b_pad - b), (0, 0), (0, 0), (0, 0)))

    arrays = [xph]
    in_specs = [pl.BlockSpec((bblk, 4, ho + 1, wo + 1), lambda i: (i, 0, 0, 0))]
    for name in _PARAM_ORDER:
        for suffix in ("_w", "_b"):
            a = params[name + suffix]
            arrays.append(a)
            # weights/biases: same (full) block for every grid step -> fetched once.
            in_specs.append(pl.BlockSpec(a.shape, lambda i: (0, 0)))

    out = pl.pallas_call(
        functools.partial(_eegnet_fused_kernel, bblk=bblk, ho=ho, wo=wo),
        out_shape=jax.ShapeDtypeStruct((steps, bblk, NUM_CLASSES), jnp.float32),
        grid=(steps,),
        in_specs=in_specs,
        out_specs=pl.BlockSpec((1, bblk, NUM_CLASSES), lambda i: (i, 0, 0)),
        scratch_shapes=[pltpu.VMEM((bblk, ho + 2, wo + 2, C_MID), jnp.float32)],
        compiler_params=pltpu.CompilerParams(
            dimension_semantics=("parallel",),          # use both TensorCores on v7x
            vmem_limit_bytes=32 * 1024 * 1024),
    )(*arrays)
    return out.reshape(b_pad, NUM_CLASSES)[:b]


# ----------------------------------------------------------------------------- pure-JAX reference

def eegnet_reference(x, params):
    """Pure-JAX/XLA reference with identical weights, for validation."""
    img = reshape_input(x)
    h = jnp.transpose(img, (0, 2, 3, 1)).astype(jnp.float32)     # NHWC, Cin = 1
    silu = lambda v: v * jax.nn.sigmoid(v)

    stem_w = params["stem_w"].reshape(3, 3, 1, C_STEM)
    h = jax.lax.conv_general_dilated(h, stem_w, (2, 2), ((1, 1), (1, 1)),
                                     dimension_numbers=("NHWC", "HWIO", "NHWC"))
    h = silu(h + params["stem_b"].reshape(1, 1, 1, -1))
    res = h

    m = silu(jnp.einsum("nhwc,cd->nhwd", h, params["exp_w"])
             + params["exp_b"].reshape(1, 1, 1, -1))
    dw_w = params["dw_w"].reshape(3, 3, 1, C_MID)
    m = jax.lax.conv_general_dilated(m, dw_w, (1, 1), ((1, 1), (1, 1)),
                                     dimension_numbers=("NHWC", "HWIO", "NHWC"),
                                     feature_group_count=C_MID)
    m = silu(m + params["dw_b"].reshape(1, 1, 1, -1))

    gap = jnp.mean(m, axis=(1, 2))
    s = silu(gap @ params["se1_w"] + params["se1_b"])
    gate = jax.nn.sigmoid(s @ params["se2_w"] + params["se2_b"])
    m = m * gate[:, None, None, :]

    proj = (jnp.einsum("nhwc,cd->nhwd", m, params["proj_w"])
            + params["proj_b"].reshape(1, 1, 1, -1))
    h = proj + res
    hd = silu(jnp.einsum("nhwc,cd->nhwd", h, params["head_w"])
              + params["head_b"].reshape(1, 1, 1, -1))
    pooled = jnp.mean(hd, axis=(1, 2))
    return pooled @ params["fc_w"] + params["fc_b"]


# ----------------------------------------------------------------------------- main

if __name__ == "__main__":
    # EEG input: (batch=2, channels=4, time=16, electrodes=8); the last dim must be 8
    # because ReshapeInput slices exactly 8 channels out of it.
    x = jax.random.normal(jax.random.PRNGKey(0), (2, 4, 16, 8), jnp.float32)
    params = init_params(jax.random.PRNGKey(42))

    out = jax.jit(eegnet_forward)(x, params)
    out = jax.block_until_ready(out)
    assert out.shape == (2, NUM_CLASSES), out.shape
    assert bool(jnp.all(jnp.isfinite(out))), "non-finite output"

    ref = eegnet_reference(x, params)
    err = float(jnp.max(jnp.abs(out - ref)))
    tol = 5e-2 + 5e-2 * float(jnp.max(jnp.abs(ref)))
    assert err <= tol, f"kernel vs reference mismatch: max abs err {err} > tol {tol}"

    print("KERNEL_OK")
</pallas_src>

<mosaic_0001>
module attributes {stable_mosaic.version = 11 : i64} {
  func.func @_eegnet_fused_kernel(%arg0: i32, %arg1: memref<1x4x9x17xf32, #tpu.memory_space<vmem>>, %arg2: memref<9x32xf32, #tpu.memory_space<vmem>>, %arg3: memref<1x32xf32, #tpu.memory_space<vmem>>, %arg4: memref<32x64xf32, #tpu.memory_space<vmem>>, %arg5: memref<1x64xf32, #tpu.memory_space<vmem>>, %arg6: memref<9x64xf32, #tpu.memory_space<vmem>>, %arg7: memref<1x64xf32, #tpu.memory_space<vmem>>, %arg8: memref<64x8xf32, #tpu.memory_space<vmem>>, %arg9: memref<1x8xf32, #tpu.memory_space<vmem>>, %arg10: memref<8x64xf32, #tpu.memory_space<vmem>>, %arg11: memref<1x64xf32, #tpu.memory_space<vmem>>, %arg12: memref<64x32xf32, #tpu.memory_space<vmem>>, %arg13: memref<1x32xf32, #tpu.memory_space<vmem>>, %arg14: memref<32x64xf32, #tpu.memory_space<vmem>>, %arg15: memref<1x64xf32, #tpu.memory_space<vmem>>, %arg16: memref<64x6xf32, #tpu.memory_space<vmem>>, %arg17: memref<1x6xf32, #tpu.memory_space<vmem>>, %arg18: memref<1x1x6xf32, #tpu.memory_space<vmem>>, %arg19: memref<1x10x18x64xf32, #tpu.memory_space<vmem>>) attributes {dimension_semantics = [#tpu.dimension_semantics<parallel>], iteration_bounds = array<i64: 2>, scalar_prefetch = 0 : i64, scratch_operands = 1 : i64, tpu.core_type = #tpu.core_type<tc>, window_params = [{transform_indices = @transform_0, window_bounds = array<i64: 1, 4, 9, 17>}, {pipeline_mode = #tpu.pipeline_mode<synchronous>, transform_indices = @transform_1, window_bounds = array<i64: 9, 32>}, {pipeline_mode = #tpu.pipeline_mode<synchronous>, transform_indices = @transform_2, window_bounds = array<i64: 1, 32>}, {pipeline_mode = #tpu.pipeline_mode<synchronous>, transform_indices = @transform_3, window_bounds = array<i64: 32, 64>}, {pipeline_mode = #tpu.pipeline_mode<synchronous>, transform_indices = @transform_4, window_bounds = array<i64: 1, 64>}, {pipeline_mode = #tpu.pipeline_mode<synchronous>, transform_indices = @transform_5, window_bounds = array<i64: 9, 64>}, {pipeline_mode = #tpu.pipeline_mode<synchronous>, transform_indices = @transform_6, window_bounds = array<i64: 1, 64>}, {pipeline_mode = #tpu.pipeline_mode<synchronous>, transform_indices = @transform_7, window_bounds = array<i64: 64, 8>}, {pipeline_mode = #tpu.pipeline_mode<synchronous>, transform_indices = @transform_8, window_bounds = array<i64: 1, 8>}, {pipeline_mode = #tpu.pipeline_mode<synchronous>, transform_indices = @transform_9, window_bounds = array<i64: 8, 64>}, {pipeline_mode = #tpu.pipeline_mode<synchronous>, transform_indices = @transform_10, window_bounds = array<i64: 1, 64>}, {pipeline_mode = #tpu.pipeline_mode<synchronous>, transform_indices = @transform_11, window_bounds = array<i64: 64, 32>}, {pipeline_mode = #tpu.pipeline_mode<synchronous>, transform_indices = @transform_12, window_bounds = array<i64: 1, 32>}, {pipeline_mode = #tpu.pipeline_mode<synchronous>, transform_indices = @transform_13, window_bounds = array<i64: 32, 64>}, {pipeline_mode = #tpu.pipeline_mode<synchronous>, transform_indices = @transform_14, window_bounds = array<i64: 1, 64>}, {pipeline_mode = #tpu.pipeline_mode<synchronous>, transform_indices = @transform_15, window_bounds = array<i64: 64, 6>}, {pipeline_mode = #tpu.pipeline_mode<synchronous>, transform_indices = @transform_16, window_bounds = array<i64: 1, 6>}, {transform_indices = @transform_17, window_bounds = array<i64: 1, 1, 6>}]} {
    %c0 = arith.constant 0 : index
    %c0_0 = arith.constant 0 : index
    %c0_1 = arith.constant 0 : index
    %c0_2 = arith.constant 0 : index
    %0 = vector.load %arg1[%c0, %c0_0, %c0_1, %c0_2] : memref<1x4x9x17xf32, #tpu.memory_space<vmem>>, vector<1x1x8x16xf32>
    %1 = vector.shape_cast %0 : vector<1x1x8x16xf32> to vector<1x8x16xf32>
    %2 = vector.shape_cast %1 : vector<1x8x16xf32> to vector<1x8x16x1xf32>
    %c0_3 = arith.constant 0 : index
    %c1 = arith.constant 1 : index
    %c0_4 = arith.constant 0 : index
    %c0_5 = arith.constant 0 : index
    %3 = vector.load %arg1[%c0_3, %c1, %c0_4, %c0_5] : memref<1x4x9x17xf32, #tpu.memory_space<vmem>>, vector<1x1x8x16xf32>
    %4 = vector.shape_cast %3 : vector<1x1x8x16xf32> to vector<1x8x16xf32>
    %5 = vector.shape_cast %4 : vector<1x8x16xf32> to vector<1x8x16x1xf32>
    %c0_6 = arith.constant 0 : index
    %c0_7 = arith.constant 0 : index
    %c0_8 = arith.constant 0 : index
    %c1_9 = arith.constant 1 : index
    %6 = vector.load %arg1[%c0_6, %c0_7, %c0_8, %c1_9] : memref<1x4x9x17xf32, #tpu.memory_space<vmem>>, vector<1x1x8x16xf32>
    %7 = vector.shape_cast %6 : vector<1x1x8x16xf32> to vector<1x8x16xf32>
    %8 = vector.shape_cast %7 : vector<1x8x16xf32> to vector<1x8x16x1xf32>
    %c0_10 = arith.constant 0 : index
    %c2 = arith.constant 2 : index
    %c0_11 = arith.constant 0 : index
    %c0_12 = arith.constant 0 : index
    %9 = vector.load %arg1[%c0_10, %c2, %c0_11, %c0_12] : memref<1x4x9x17xf32, #tpu.memory_space<vmem>>, vector<1x1x8x16xf32>
    %10 = vector.shape_cast %9 : vector<1x1x8x16xf32> to vector<1x8x16xf32>
    %11 = vector.shape_cast %10 : vector<1x8x16xf32> to vector<1x8x16x1xf32>
    %c0_13 = arith.constant 0 : index
    %c3 = arith.constant 3 : index
    %c0_14 = arith.constant 0 : index
    %c0_15 = arith.constant 0 : index
    %12 = vector.load %arg1[%c0_13, %c3, %c0_14, %c0_15] : memref<1x4x9x17xf32, #tpu.memory_space<vmem>>, vector<1x1x8x16xf32>
    %13 = vector.shape_cast %12 : vector<1x1x8x16xf32> to vector<1x8x16xf32>
    %14 = vector.shape_cast %13 : vector<1x8x16xf32> to vector<1x8x16x1xf32>
    %c0_16 = arith.constant 0 : index
    %c2_17 = arith.constant 2 : index
    %c0_18 = arith.constant 0 : index
    %c1_19 = arith.constant 1 : index
    %15 = vector.load %arg1[%c0_16, %c2_17, %c0_18, %c1_19] : memref<1x4x9x17xf32, #tpu.memory_space<vmem>>, vector<1x1x8x16xf32>
    %16 = vector.shape_cast %15 : vector<1x1x8x16xf32> to vector<1x8x16xf32>
    %17 = vector.shape_cast %16 : vector<1x8x16xf32> to vector<1x8x16x1xf32>
    %c0_20 = arith.constant 0 : index
    %c0_21 = arith.constant 0 : index
    %c1_22 = arith.constant 1 : index
    %c0_23 = arith.constant 0 : index
    %18 = vector.load %arg1[%c0_20, %c0_21, %c1_22, %c0_23] : memref<1x4x9x17xf32, #tpu.memory_space<vmem>>, vector<1x1x8x16xf32>
    %19 = vector.shape_cast %18 : vector<1x1x8x16xf32> to vector<1x8x16xf32>
    %20 = vector.shape_cast %19 : vector<1x8x16xf32> to vector<1x8x16x1xf32>
    %c0_24 = arith.constant 0 : index
    %c1_25 = arith.constant 1 : index
    %c1_26 = arith.constant 1 : index
    %c0_27 = arith.constant 0 : index
    %21 = vector.load %arg1[%c0_24, %c1_25, %c1_26, %c0_27] : memref<1x4x9x17xf32, #tpu.memory_space<vmem>>, vector<1x1x8x16xf32>
    %22 = vector.shape_cast %21 : vector<1x1x8x16xf32> to vector<1x8x16xf32>
    %23 = vector.shape_cast %22 : vector<1x8x16xf32> to vector<1x8x16x1xf32>
    %c0_28 = arith.constant 0 : index
    %c0_29 = arith.constant 0 : index
    %c1_30 = arith.constant 1 : index
    %c1_31 = arith.constant 1 : index
    %24 = vector.load %arg1[%c0_28, %c0_29, %c1_30, %c1_31] : memref<1x4x9x17xf32, #tpu.memory_space<vmem>>, vector<1x1x8x16xf32>
    %25 = vector.shape_cast %24 : vector<1x1x8x16xf32> to vector<1x8x16xf32>
    %26 = vector.shape_cast %25 : vector<1x8x16xf32> to vector<1x8x16x1xf32>
    %27 = tpu.concatenate %2, %5, %8, %11, %14, %17, %20, %23, %26 in 3 : vector<1x8x16x1xf32>, vector<1x8x16x1xf32>, vector<1x8x16x1xf32>, vector<1x8x16x1xf32>, vector<1x8x16x1xf32>, vector<1x8x16x1xf32>, vector<1x8x16x1xf32>, vector<1x8x16x1xf32>, vector<1x8x16x1xf32> -> vector<1x8x16x9xf32>
    %28 = vector.shape_cast %27 : vector<1x8x16x9xf32> to vector<128x9xf32>
    %c0_32 = arith.constant 0 : index
    %c0_33 = arith.constant 0 : index
    %29 = vector.load %arg2[%c0_32, %c0_33] : memref<9x32xf32, #tpu.memory_space<vmem>>, vector<9x32xf32>
    %cst = arith.constant dense<0.000000e+00> : vector<128x32xf32>
    %30 = tpu.matmul %28, %29, %cst {dimension_numbers = #tpu.dot_dimension_numbers<[1], [0], [0], [1], [0, 0, 1, 1], [], []>} : vector<128x9xf32>, vector<9x32xf32>, vector<128x32xf32> -> vector<128x32xf32>
    %c0_34 = arith.constant 0 : index
    %c0_35 = arith.constant 0 : index
    %31 = vector.load %arg3[%c0_34, %c0_35] : memref<1x32xf32, #tpu.memory_space<vmem>>, vector<1x32xf32>
    %32 = vector.broadcast %31 : vector<1x32xf32> to vector<128x32xf32>
    %33 = arith.addf %30, %32 : vector<128x32xf32>
    %cst_36 = arith.constant 5.000000e-01 : f32
    %34 = vector.broadcast %cst_36 : f32 to vector<128x32xf32>
    %35 = arith.mulf %34, %33 : vector<128x32xf32>
    %36 = math.tanh %35 : vector<128x32xf32>
    %cst_37 = arith.constant 5.000000e-01 : f32
    %37 = vector.broadcast %cst_37 : f32 to vector<128x32xf32>
    %38 = arith.mulf %37, %36 : vector<128x32xf32>
    %cst_38 = arith.constant 5.000000e-01 : f32
    %39 = vector.broadcast %cst_38 : f32 to vector<128x32xf32>
    %40 = arith.addf %38, %39 : vector<128x32xf32>
    %41 = arith.mulf %33, %40 : vector<128x32xf32>
    %c0_39 = arith.constant 0 : index
    %c0_40 = arith.constant 0 : index
    %42 = vector.load %arg4[%c0_39, %c0_40] : memref<32x64xf32, #tpu.memory_space<vmem>>, vector<32x64xf32>
    %cst_41 = arith.constant dense<0.000000e+00> : vector<128x64xf32>
    %43 = tpu.matmul %41, %42, %cst_41 {dimension_numbers = #tpu.dot_dimension_numbers<[1], [0], [0], [1], [0, 0, 1, 1], [], []>} : vector<128x32xf32>, vector<32x64xf32>, vector<128x64xf32> -> vector<128x64xf32>
    %c0_42 = arith.constant 0 : index
    %c0_43 = arith.constant 0 : index
    %44 = vector.load %arg5[%c0_42, %c0_43] : memref<1x64xf32, #tpu.memory_space<vmem>>, vector<1x64xf32>
    %45 = vector.broadcast %44 : vector<1x64xf32> to vector<128x64xf32>
    %46 = arith.addf %43, %45 : vector<128x64xf32>
    %cst_44 = arith.constant 5.000000e-01 : f32
    %47 = vector.broadcast %cst_44 : f32 to vector<128x64xf32>
    %48 = arith.mulf %47, %46 : vector<128x64xf32>
    %49 = math.tanh %48 : vector<128x64xf32>
    %cst_45 = arith.constant 5.000000e-01 : f32
    %50 = vector.broadcast %cst_45 : f32 to vector<128x64xf32>
    %51 = arith.mulf %50, %49 : vector<128x64xf32>
    %cst_46 = arith.constant 5.000000e-01 : f32
    %52 = vector.broadcast %cst_46 : f32 to vector<128x64xf32>
    %53 = arith.addf %51, %52 : vector<128x64xf32>
    %54 = arith.mulf %46, %53 : vector<128x64xf32>
    %cst_47 = arith.constant 0.000000e+00 : f32
    %55 = vector.broadcast %cst_47 : f32 to vector<1x1x18x64xf32>
    %c0_48 = arith.constant 0 : index
    %c0_49 = arith.constant 0 : index
    %c0_50 = arith.constant 0 : index
    %c0_51 = arith.constant 0 : index
    %56 = vector.load %arg19[%c0_48, %c0_49, %c0_50, %c0_51] : memref<1x10x18x64xf32, #tpu.memory_space<vmem>>, vector<1x1x18x64xf32>
    tpu.vector_store %arg19[%c0_48, %c0_49, %c0_50, %c0_51], %55 {strides = array<i32>} : memref<1x10x18x64xf32, #tpu.memory_space<vmem>>, vector<1x1x18x64xf32>,
    %cst_52 = arith.constant 0.000000e+00 : f32
    %57 = vector.broadcast %cst_52 : f32 to vector<1x1x18x64xf32>
    %c0_53 = arith.constant 0 : index
    %c9 = arith.constant 9 : index
    %c0_54 = arith.constant 0 : index
    %c0_55 = arith.constant 0 : index
    %58 = vector.load %arg19[%c0_53, %c9, %c0_54, %c0_55] : memref<1x10x18x64xf32, #tpu.memory_space<vmem>>, vector<1x1x18x64xf32>
    tpu.vector_store %arg19[%c0_53, %c9, %c0_54, %c0_55], %57 {strides = array<i32>} : memref<1x10x18x64xf32, #tpu.memory_space<vmem>>, vector<1x1x18x64xf32>,
    %cst_56 = arith.constant 0.000000e+00 : f32
    %59 = vector.broadcast %cst_56 : f32 to vector<1x10x1x64xf32>
    %c0_57 = arith.constant 0 : index
    %c0_58 = arith.constant 0 : index
    %c0_59 = arith.constant 0 : index
    %c0_60 = arith.constant 0 : index
    %60 = vector.load %arg19[%c0_57, %c0_58, %c0_59, %c0_60] : memref<1x10x18x64xf32, #tpu.memory_space<vmem>>, vector<1x10x1x64xf32>
    tpu.vector_store %arg19[%c0_57, %c0_58, %c0_59, %c0_60], %59 {strides = array<i32>} : memref<1x10x18x64xf32, #tpu.memory_space<vmem>>, vector<1x10x1x64xf32>,
    %cst_61 = arith.constant 0.000000e+00 : f32
    %61 = vector.broadcast %cst_61 : f32 to vector<1x10x1x64xf32>
    %c0_62 = arith.constant 0 : index
    %c0_63 = arith.constant 0 : index
    %c17 = arith.constant 17 : index
    %c0_64 = arith.constant 0 : index
    %62 = vector.load %arg19[%c0_62, %c0_63, %c17, %c0_64] : memref<1x10x18x64xf32, #tpu.memory_space<vmem>>, vector<1x10x1x64xf32>
    tpu.vector_store %arg19[%c0_62, %c0_63, %c17, %c0_64], %61 {strides = array<i32>} : memref<1x10x18x64xf32, #tpu.memory_space<vmem>>, vector<1x10x1x64xf32>,
    %63 = vector.shape_cast %54 : vector<128x64xf32> to vector<1x8x16x64xf32>
    %c0_65 = arith.constant 0 : index
    %c1_66 = arith.constant 1 : index
    %c1_67 = arith.constant 1 : index
    %c0_68 = arith.constant 0 : index
    %64 = vector.load %arg19[%c0_65, %c1_66, %c1_67, %c0_68] : memref<1x10x18x64xf32, #tpu.memory_space<vmem>>, vector<1x8x16x64xf32>
    tpu.vector_store %arg19[%c0_65, %c1_66, %c1_67, %c0_68], %63 {strides = array<i32>} : memref<1x10x18x64xf32, #tpu.memory_space<vmem>>, vector<1x8x16x64xf32>,
    %cst_69 = arith.constant 0.000000e+00 : f32
    %65 = vector.broadcast %cst_69 : f32 to vector<1x8x16x64xf32>
    %c0_70 = arith.constant 0 : index
    %c0_71 = arith.constant 0 : index
    %c0_72 = arith.constant 0 : index
    %c0_73 = arith.constant 0 : index
    %66 = vector.load %arg19[%c0_70, %c0_71, %c0_72, %c0_73] : memref<1x10x18x64xf32, #tpu.memory_space<vmem>>, vector<1x8x16x64xf32>
    %c0_74 = arith.constant 0 : index
    %c0_75 = arith.constant 0 : index
    %67 = vector.load %arg6[%c0_74, %c0_75] : memref<9x64xf32, #tpu.memory_space<vmem>>, vector<1x64xf32>
    %68 = vector.shape_cast %67 : vector<1x64xf32> to vector<1x1x1x64xf32>
    %69 = vector.broadcast %68 : vector<1x1x1x64xf32> to vector<1x8x16x64xf32>
    %70 = arith.mulf %66, %69 : vector<1x8x16x64xf32>
    %71 = arith.addf %65, %70 : vector<1x8x16x64xf32>
    %c0_76 = arith.constant 0 : index
    %c0_77 = arith.constant 0 : index
    %c1_78 = arith.constant 1 : index
    %c0_79 = arith.constant 0 : index
    %72 = vector.load %arg19[%c0_76, %c0_77, %c1_78, %c0_79] : memref<1x10x18x64xf32, #tpu.memory_space<vmem>>, vector<1x8x16x64xf32>
    %c1_80 = arith.constant 1 : index
    %c0_81 = arith.constant 0 : index
    %73 = vector.load %arg6[%c1_80, %c0_81] : memref<9x64xf32, #tpu.memory_space<vmem>>, vector<1x64xf32>
    %74 = vector.shape_cast %73 : vector<1x64xf32> to vector<1x1x1x64xf32>
    %75 = vector.broadcast %74 : vector<1x1x1x64xf32> to vector<1x8x16x64xf32>
    %76 = arith.mulf %72, %75 : vector<1x8x16x64xf32>
    %77 = arith.addf %71, %76 : vector<1x8x16x64xf32>
    %c0_82 = arith.constant 0 : index
    %c0_83 = arith.constant 0 : index
    %c2_84 = arith.constant 2 : index
    %c0_85 = arith.constant 0 : index
    %78 = vector.load %arg19[%c0_82, %c0_83, %c2_84, %c0_85] : memref<1x10x18x64xf32, #tpu.memory_space<vmem>>, vector<1x8x16x64xf32>
    %c2_86 = arith.constant 2 : index
    %c0_87 = arith.constant 0 : index
    %79 = vector.load %arg6[%c2_86, %c0_87] : memref<9x64xf32, #tpu.memory_space<vmem>>, vector<1x64xf32>
    %80 = vector.shape_cast %79 : vector<1x64xf32> to vector<1x1x1x64xf32>
    %81 = vector.broadcast %80 : vector<1x1x1x64xf32> to vector<1x8x16x64xf32>
    %82 = arith.mulf %78, %81 : vector<1x8x16x64xf32>
    %83 = arith.addf %77, %82 : vector<1x8x16x64xf32>
    %c0_88 = arith.constant 0 : index
    %c1_89 = arith.constant 1 : index
    %c0_90 = arith.constant 0 : index
    %c0_91 = arith.constant 0 : index
    %84 = vector.load %arg19[%c0_88, %c1_89, %c0_90, %c0_91] : memref<1x10x18x64xf32, #tpu.memory_space<vmem>>, vector<1x8x16x64xf32>
    %c3_92 = arith.constant 3 : index
    %c0_93 = arith.constant 0 : index
    %85 = vector.load %arg6[%c3_92, %c0_93] : memref<9x64xf32, #tpu.memory_space<vmem>>, vector<1x64xf32>
    %86 = vector.shape_cast %85 : vector<1x64xf32> to vector<1x1x1x64xf32>
    %87 = vector.broadcast %86 : vector<1x1x1x64xf32> to vector<1x8x16x64xf32>
    %88 = arith.mulf %84, %87 : vector<1x8x16x64xf32>
    %89 = arith.addf %83, %88 : vector<1x8x16x64xf32>
    %c0_94 = arith.constant 0 : index
    %c1_95 = arith.constant 1 : index
    %c1_96 = arith.constant 1 : index
    %c0_97 = arith.constant 0 : index
    %90 = vector.load %arg19[%c0_94, %c1_95, %c1_96, %c0_97] : memref<1x10x18x64xf32, #tpu.memory_space<vmem>>, vector<1x8x16x64xf32>
    %c4 = arith.constant 4 : index
    %c0_98 = arith.constant 0 : index
    %91 = vector.load %arg6[%c4, %c0_98] : memref<9x64xf32, #tpu.memory_space<vmem>>, vector<1x64xf32>
    %92 = vector.shape_cast %91 : vector<1x64xf32> to vector<1x1x1x64xf32>
    %93 = vector.broadcast %92 : vector<1x1x1x64xf32> to vector<1x8x16x64xf32>
    %94 = arith.mulf %90, %93 : vector<1x8x16x64xf32>
    %95 = arith.addf %89, %94 : vector<1x8x16x64xf32>
    %c0_99 = arith.constant 0 : index
    %c1_100 = arith.constant 1 : index
    %c2_101 = arith.constant 2 : index
    %c0_102 = arith.constant 0 : index
    %96 = vector.load %arg19[%c0_99, %c1_100, %c2_101, %c0_102] : memref<1x10x18x64xf32, #tpu.memory_space<vmem>>, vector<1x8x16x64xf32>
    %c5 = arith.constant 5 : index
    %c0_103 = arith.constant 0 : index
    %97 = vector.load %arg6[%c5, %c0_103] : memref<9x64xf32, #tpu.memory_space<vmem>>, vector<1x64xf32>
    %98 = vector.shape_cast %97 : vector<1x64xf32> to vector<1x1x1x64xf32>
    %99 = vector.broadcast %98 : vector<1x1x1x64xf32> to vector<1x8x16x64xf32>
    %100 = arith.mulf %96, %99 : vector<1x8x16x64xf32>
    %101 = arith.addf %95, %100 : vector<1x8x16x64xf32>
    %c0_104 = arith.constant 0 : index
    %c2_105 = arith.constant 2 : index
    %c0_106 = arith.constant 0 : index
    %c0_107 = arith.constant 0 : index
    %102 = vector.load %arg19[%c0_104, %c2_105, %c0_106, %c0_107] : memref<1x10x18x64xf32, #tpu.memory_space<vmem>>, vector<1x8x16x64xf32>
    %c6 = arith.constant 6 : index
    %c0_108 = arith.constant 0 : index
    %103 = vector.load %arg6[%c6, %c0_108] : memref<9x64xf32, #tpu.memory_space<vmem>>, vector<1x64xf32>
    %104 = vector.shape_cast %103 : vector<1x64xf32> to vector<1x1x1x64xf32>
    %105 = vector.broadcast %104 : vector<1x1x1x64xf32> to vector<1x8x16x64xf32>
    %106 = arith.mulf %102, %105 : vector<1x8x16x64xf32>
    %107 = arith.addf %101, %106 : vector<1x8x16x64xf32>
    %c0_109 = arith.constant 0 : index
    %c2_110 = arith.constant 2 : index
    %c1_111 = arith.constant 1 : index
    %c0_112 = arith.constant 0 : index
    %108 = vector.load %arg19[%c0_109, %c2_110, %c1_111, %c0_112] : memref<1x10x18x64xf32, #tpu.memory_space<vmem>>, vector<1x8x16x64xf32>
    %c7 = arith.constant 7 : index
    %c0_113 = arith.constant 0 : index
    %109 = vector.load %arg6[%c7, %c0_113] : memref<9x64xf32, #tpu.memory_space<vmem>>, vector<1x64xf32>
    %110 = vector.shape_cast %109 : vector<1x64xf32> to vector<1x1x1x64xf32>
    %111 = vector.broadcast %110 : vector<1x1x1x64xf32> to vector<1x8x16x64xf32>
    %112 = arith.mulf %108, %111 : vector<1x8x16x64xf32>
    %113 = arith.addf %107, %112 : vector<1x8x16x64xf32>
    %c0_114 = arith.constant 0 : index
    %c2_115 = arith.constant 2 : index
    %c2_116 = arith.constant 2 : index
    %c0_117 = arith.constant 0 : index
    %114 = vector.load %arg19[%c0_114, %c2_115, %c2_116, %c0_117] : memref<1x10x18x64xf32, #tpu.memory_space<vmem>>, vector<1x8x16x64xf32>
    %c8 = arith.constant 8 : index
    %c0_118 = arith.constant 0 : index
    %115 = vector.load %arg6[%c8, %c0_118] : memref<9x64xf32, #tpu.memory_space<vmem>>, vector<1x64xf32>
    %116 = vector.shape_cast %115 : vector<1x64xf32> to vector<1x1x1x64xf32>
    %117 = vector.broadcast %116 : vector<1x1x1x64xf32> to vector<1x8x16x64xf32>
    %118 = arith.mulf %114, %117 : vector<1x8x16x64xf32>
    %119 = arith.addf %113, %118 : vector<1x8x16x64xf32>
    %c0_119 = arith.constant 0 : index
    %c0_120 = arith.constant 0 : index
    %120 = vector.load %arg7[%c0_119, %c0_120] : memref<1x64xf32, #tpu.memory_space<vmem>>, vector<1x64xf32>
    %121 = vector.shape_cast %120 : vector<1x64xf32> to vector<1x1x1x64xf32>
    %122 = vector.broadcast %121 : vector<1x1x1x64xf32> to vector<1x8x16x64xf32>
    %123 = arith.addf %119, %122 : vector<1x8x16x64xf32>
    %cst_121 = arith.constant 5.000000e-01 : f32
    %124 = vector.broadcast %cst_121 : f32 to vector<1x8x16x64xf32>
    %125 = arith.mulf %124, %123 : vector<1x8x16x64xf32>
    %126 = math.tanh %125 : vector<1x8x16x64xf32>
    %cst_122 = arith.constant 5.000000e-01 : f32
    %127 = vector.broadcast %cst_122 : f32 to vector<1x8x16x64xf32>
    %128 = arith.mulf %127, %126 : vector<1x8x16x64xf32>
    %cst_123 = arith.constant 5.000000e-01 : f32
    %129 = vector.broadcast %cst_123 : f32 to vector<1x8x16x64xf32>
    %130 = arith.addf %128, %129 : vector<1x8x16x64xf32>
    %131 = arith.mulf %123, %130 : vector<1x8x16x64xf32>
    %132 = vector.shape_cast %131 : vector<1x8x16x64xf32> to vector<1x128x64xf32>
    %cst_124 = arith.constant dense<0.000000e+00> : vector<1x64xf32>
    %133 = vector.multi_reduction <add>, %132, %cst_124 [1] : vector<1x128x64xf32> to vector<1x64xf32>
    %cst_125 = arith.constant 7.812500e-03 : f32
    %134 = vector.broadcast %cst_125 : f32 to vector<1x64xf32>
    %135 = arith.mulf %133, %134 : vector<1x64xf32>
    %c0_126 = arith.constant 0 : index
    %c0_127 = arith.constant 0 : index
    %136 = vector.load %arg8[%c0_126, %c0_127] : memref<64x8xf32, #tpu.memory_space<vmem>>, vector<64x8xf32>
    %cst_128 = arith.constant dense<0.000000e+00> : vector<1x8xf32>
    %137 = tpu.matmul %135, %136, %cst_128 {dimension_numbers = #tpu.dot_dimension_numbers<[1], [0], [0], [1], [0, 0, 1, 1], [], []>} : vector<1x64xf32>, vector<64x8xf32>, vector<1x8xf32> -> vector<1x8xf32>
    %c0_129 = arith.constant 0 : index
    %c0_130 = arith.constant 0 : index
    %138 = vector.load %arg9[%c0_129, %c0_130] : memref<1x8xf32, #tpu.memory_space<vmem>>, vector<1x8xf32>
    %139 = arith.addf %137, %138 : vector<1x8xf32>
    %cst_131 = arith.constant 5.000000e-01 : f32
    %140 = vector.broadcast %cst_131 : f32 to vector<1x8xf32>
    %141 = arith.mulf %140, %139 : vector<1x8xf32>
    %142 = math.tanh %141 : vector<1x8xf32>
    %cst_132 = arith.constant 5.000000e-01 : f32
    %143 = vector.broadcast %cst_132 : f32 to vector<1x8xf32>
    %144 = arith.mulf %143, %142 : vector<1x8xf32>
    %cst_133 = arith.constant 5.000000e-01 : f32
    %145 = vector.broadcast %cst_133 : f32 to vector<1x8xf32>
    %146 = arith.addf %144, %145 : vector<1x8xf32>
    %147 = arith.mulf %139, %146 : vector<1x8xf32>
    %c0_134 = arith.constant 0 : index
    %c0_135 = arith.constant 0 : index
    %148 = vector.load %arg10[%c0_134, %c0_135] : memref<8x64xf32, #tpu.memory_space<vmem>>, vector<8x64xf32>
    %cst_136 = arith.constant dense<0.000000e+00> : vector<1x64xf32>
    %149 = tpu.matmul %147, %148, %cst_136 {dimension_numbers = #tpu.dot_dimension_numbers<[1], [0], [0], [1], [0, 0, 1, 1], [], []>} : vector<1x8xf32>, vector<8x64xf32>, vector<1x64xf32> -> vector<1x64xf32>
    %c0_137 = arith.constant 0 : index
    %c0_138 = arith.constant 0 : index
    %150 = vector.load %arg11[%c0_137, %c0_138] : memref<1x64xf32, #tpu.memory_space<vmem>>, vector<1x64xf32>
    %151 = arith.addf %149, %150 : vector<1x64xf32>
    %cst_139 = arith.constant 5.000000e-01 : f32
    %152 = vector.broadcast %cst_139 : f32 to vector<1x64xf32>
    %153 = arith.mulf %152, %151 : vector<1x64xf32>
    %154 = math.tanh %153 : vector<1x64xf32>
    %cst_140 = arith.constant 5.000000e-01 : f32
    %155 = vector.broadcast %cst_140 : f32 to vector<1x64xf32>
    %156 = arith.mulf %155, %154 : vector<1x64xf32>
    %cst_141 = arith.constant 5.000000e-01 : f32
    %157 = vector.broadcast %cst_141 : f32 to vector<1x64xf32>
    %158 = arith.addf %156, %157 : vector<1x64xf32>
    %159 = vector.shape_cast %158 : vector<1x64xf32> to vector<1x1x64xf32>
    %160 = vector.broadcast %159 : vector<1x1x64xf32> to vector<1x128x64xf32>
    %161 = arith.mulf %132, %160 : vector<1x128x64xf32>
    %162 = vector.shape_cast %161 : vector<1x128x64xf32> to vector<128x64xf32>
    %c0_142 = arith.constant 0 : index
    %c0_143 = arith.constant 0 : index
    %163 = vector.load %arg12[%c0_142, %c0_143] : memref<64x32xf32, #tpu.memory_space<vmem>>, vector<64x32xf32>
    %cst_144 = arith.constant dense<0.000000e+00> : vector<128x32xf32>
    %164 = tpu.matmul %162, %163, %cst_144 {dimension_numbers = #tpu.dot_dimension_numbers<[1], [0], [0], [1], [0, 0, 1, 1], [], []>} : vector<128x64xf32>, vector<64x32xf32>, vector<128x32xf32> -> vector<128x32xf32>
    %c0_145 = arith.constant 0 : index
    %c0_146 = arith.constant 0 : index
    %165 = vector.load %arg13[%c0_145, %c0_146] : memref<1x32xf32, #tpu.memory_space<vmem>>, vector<1x32xf32>
    %166 = vector.broadcast %165 : vector<1x32xf32> to vector<128x32xf32>
    %167 = arith.addf %164, %166 : vector<128x32xf32>
    %168 = arith.addf %167, %41 : vector<128x32xf32>
    %c0_147 = arith.constant 0 : index
    %c0_148 = arith.constant 0 : index
    %169 = vector.load %arg14[%c0_147, %c0_148] : memref<32x64xf32, #tpu.memory_space<vmem>>, vector<32x64xf32>
    %cst_149 = arith.constant dense<0.000000e+00> : vector<128x64xf32>
    %170 = tpu.matmul %168, %169, %cst_149 {dimension_numbers = #tpu.dot_dimension_numbers<[1], [0], [0], [1], [0, 0, 1, 1], [], []>} : vector<128x32xf32>, vector<32x64xf32>, vector<128x64xf32> -> vector<128x64xf32>
    %c0_150 = arith.constant 0 : index
    %c0_151 = arith.constant 0 : index
    %171 = vector.load %arg15[%c0_150, %c0_151] : memref<1x64xf32, #tpu.memory_space<vmem>>, vector<1x64xf32>
    %172 = vector.broadcast %171 : vector<1x64xf32> to vector<128x64xf32>
    %173 = arith.addf %170, %172 : vector<128x64xf32>
    %cst_152 = arith.constant 5.000000e-01 : f32
    %174 = vector.broadcast %cst_152 : f32 to vector<128x64xf32>
    %175 = arith.mulf %174, %173 : vector<128x64xf32>
    %176 = math.tanh %175 : vector<128x64xf32>
    %cst_153 = arith.constant 5.000000e-01 : f32
    %177 = vector.broadcast %cst_153 : f32 to vector<128x64xf32>
    %178 = arith.mulf %177, %176 : vector<128x64xf32>
    %cst_154 = arith.constant 5.000000e-01 : f32
    %179 = vector.broadcast %cst_154 : f32 to vector<128x64xf32>
    %180 = arith.addf %178, %179 : vector<128x64xf32>
    %181 = arith.mulf %173, %180 : vector<128x64xf32>
    %182 = vector.shape_cast %181 : vector<128x64xf32> to vector<1x128x64xf32>
    %cst_155 = arith.constant dense<0.000000e+00> : vector<1x64xf32>
    %183 = vector.multi_reduction <add>, %182, %cst_155 [1] : vector<1x128x64xf32> to vector<1x64xf32>
    %cst_156 = arith.constant 7.812500e-03 : f32
    %184 = vector.broadcast %cst_156 : f32 to vector<1x64xf32>
    %185 = arith.mulf %183, %184 : vector<1x64xf32>
    %c0_157 = arith.constant 0 : index
    %c0_158 = arith.constant 0 : index
    %186 = vector.load %arg16[%c0_157, %c0_158] : memref<64x6xf32, #tpu.memory_space<vmem>>, vector<64x6xf32>
    %cst_159 = arith.constant dense<0.000000e+00> : vector<1x6xf32>
    %187 = tpu.matmul %185, %186, %cst_159 {dimension_numbers = #tpu.dot_dimension_numbers<[1], [0], [0], [1], [0, 0, 1, 1], [], []>} : vector<1x64xf32>, vector<64x6xf32>, vector<1x6xf32> -> vector<1x6xf32>
    %c0_160 = arith.constant 0 : index
    %c0_161 = arith.constant 0 : index
    %188 = vector.load %arg17[%c0_160, %c0_161] : memref<1x6xf32, #tpu.memory_space<vmem>>, vector<1x6xf32>
    %189 = arith.addf %187, %188 : vector<1x6xf32>
    %190 = vector.shape_cast %189 : vector<1x6xf32> to vector<1x1x6xf32>
    %c0_162 = arith.constant 0 : index
    %c0_163 = arith.constant 0 : index
    %c0_164 = arith.constant 0 : index
    %191 = vector.load %arg18[%c0_162, %c0_163, %c0_164] : memref<1x1x6xf32, #tpu.memory_space<vmem>>, vector<1x1x6xf32>
    tpu.vector_store %arg18[%c0_162, %c0_163, %c0_164], %190 {strides = array<i32>} : memref<1x1x6xf32, #tpu.memory_space<vmem>>, vector<1x1x6xf32>,
    return
  }
  func.func @transform_0(%arg0: i32) -> (i32, i32, i32, i32) {
    %c0_i32 = arith.constant 0 : i32
    %c0_i32_0 = arith.constant 0 : i32
    %c0_i32_1 = arith.constant 0 : i32
    %c0_i32_2 = arith.constant 0 : i32
    return %arg0, %c0_i32, %c0_i32_0, %c0_i32_1 : i32, i32, i32, i32
  }
  func.func @transform_1(%arg0: i32) -> (i32, i32) {
    %c0_i32 = arith.constant 0 : i32
    %c0_i32_0 = arith.constant 0 : i32
    %c0_i32_1 = arith.constant 0 : i32
    return %c0_i32, %c0_i32_0 : i32, i32
  }
  func.func @transform_2(%arg0: i32) -> (i32, i32) {
    %c0_i32 = arith.constant 0 : i32
    %c0_i32_0 = arith.constant 0 : i32
    %c0_i32_1 = arith.constant 0 : i32
    return %c0_i32, %c0_i32_0 : i32, i32
  }
  func.func @transform_3(%arg0: i32) -> (i32, i32) {
    %c0_i32 = arith.constant 0 : i32
    %c0_i32_0 = arith.constant 0 : i32
    %c0_i32_1 = arith.constant 0 : i32
    return %c0_i32, %c0_i32_0 : i32, i32
  }
  func.func @transform_4(%arg0: i32) -> (i32, i32) {
    %c0_i32 = arith.constant 0 : i32
    %c0_i32_0 = arith.constant 0 : i32
    %c0_i32_1 = arith.constant 0 : i32
    return %c0_i32, %c0_i32_0 : i32, i32
  }
  func.func @transform_5(%arg0: i32) -> (i32, i32) {
    %c0_i32 = arith.constant 0 : i32
    %c0_i32_0 = arith.constant 0 : i32
    %c0_i32_1 = arith.constant 0 : i32
    return %c0_i32, %c0_i32_0 : i32, i32
  }
  func.func @transform_6(%arg0: i32) -> (i32, i32) {
    %c0_i32 = arith.constant 0 : i32
    %c0_i32_0 = arith.constant 0 : i32
    %c0_i32_1 = arith.constant 0 : i32
    return %c0_i32, %c0_i32_0 : i32, i32
  }
  func.func @transform_7(%arg0: i32) -> (i32, i32) {
    %c0_i32 = arith.constant 0 : i32
    %c0_i32_0 = arith.constant 0 : i32
    %c0_i32_1 = arith.constant 0 : i32
    return %c0_i32, %c0_i32_0 : i32, i32
  }
  func.func @transform_8(%arg0: i32) -> (i32, i32) {
    %c0_i32 = arith.constant 0 : i32
    %c0_i32_0 = arith.constant 0 : i32
    %c0_i32_1 = arith.constant 0 : i32
    return %c0_i32, %c0_i32_0 : i32, i32
  }
  func.func @transform_9(%arg0: i32) -> (i32, i32) {
    %c0_i32 = arith.constant 0 : i32
    %c0_i32_0 = arith.constant 0 : i32
    %c0_i32_1 = arith.constant 0 : i32
    return %c0_i32, %c0_i32_0 : i32, i32
  }
  func.func @transform_10(%arg0: i32) -> (i32, i32) {
    %c0_i32 = arith.constant 0 : i32
    %c0_i32_0 = arith.constant 0 : i32
    %c0_i32_1 = arith.constant 0 : i32
    return %c0_i32, %c0_i32_0 : i32, i32
  }
  func.func @transform_11(%arg0: i32) -> (i32, i32) {
    %c0_i32 = arith.constant 0 : i32
    %c0_i32_0 = arith.constant 0 : i32
    %c0_i32_1 = arith.constant 0 : i32
    return %c0_i32, %c0_i32_0 : i32, i32
  }
  func.func @transform_12(%arg0: i32) -> (i32, i32) {
    %c0_i32 = arith.constant 0 : i32
    %c0_i32_0 = arith.constant 0 : i32
    %c0_i32_1 = arith.constant 0 : i32
    return %c0_i32, %c0_i32_0 : i32, i32
  }
  func.func @transform_13(%arg0: i32) -> (i32, i32) {
    %c0_i32 = arith.constant 0 : i32
    %c0_i32_0 = arith.constant 0 : i32
    %c0_i32_1 = arith.constant 0 : i32
    return %c0_i32, %c0_i32_0 : i32, i32
  }
  func.func @transform_14(%arg0: i32) -> (i32, i32) {
    %c0_i32 = arith.constant 0 : i32
    %c0_i32_0 = arith.constant 0 : i32
    %c0_i32_1 = arith.constant 0 : i32
    return %c0_i32, %c0_i32_0 : i32, i32
  }
  func.func @transform_15(%arg0: i32) -> (i32, i32) {
    %c0_i32 = arith.constant 0 : i32
    %c0_i32_0 = arith.constant 0 : i32
    %c0_i32_1 = arith.constant 0 : i32
    return %c0_i32, %c0_i32_0 : i32, i32
  }
  func.func @transform_16(%arg0: i32) -> (i32, i32) {
    %c0_i32 = arith.constant 0 : i32
    %c0_i32_0 = arith.constant 0 : i32
    %c0_i32_1 = arith.constant 0 : i32
    return %c0_i32, %c0_i32_0 : i32, i32
  }
  func.func @transform_17(%arg0: i32) -> (i32, i32, i32) {
    %c0_i32 = arith.constant 0 : i32
    %c0_i32_0 = arith.constant 0 : i32
    %c0_i32_1 = arith.constant 0 : i32
    return %arg0, %c0_i32, %c0_i32_0 : i32, i32, i32
  }
}

</mosaic_0001>

<llo_original>
// kernel: eegnet_forward.1
$region0: #{eegnet_forward.1}
  #allocation0 [shape = 'u32[]', space=smem, size = 0x4, offset = 0x4, fixed_abs, tag = 'smem constant byte address 0x4 - core index']
  #allocation1 [shape = 'u32[72,128]{1,0:T(1,128)}', space=vmem, size = 0x9000, scoped, tag = 'internal scratch']
  #allocation2 [shape = 'f32[1,10,18,64]{3,2,1,0:T(8,128)}', space=vmem, size = 0x1e000, scoped, tag = 'scratch operand']
  %s0 = inlined_call_operand.vmem [shape: f32[2,4,9,17], index: 0, kind: input, shape index: {}]
  %s1 = inlined_call_operand.vmem [shape: f32[9,32], index: 1, kind: input, shape index: {}]
  %s2 = inlined_call_operand.vmem [shape: f32[1,32], index: 2, kind: input, shape index: {}]
  %s3 = inlined_call_operand.vmem [shape: f32[32,64], index: 3, kind: input, shape index: {}]
  %s4 = inlined_call_operand.vmem [shape: f32[1,64], index: 4, kind: input, shape index: {}]
  %s5 = inlined_call_operand.vmem [shape: f32[9,64], index: 5, kind: input, shape index: {}]
  %s6 = inlined_call_operand.vmem [shape: f32[1,64], index: 6, kind: input, shape index: {}]
  %s7 = inlined_call_operand.vmem [shape: f32[64,8], index: 7, kind: input, shape index: {}]
  %s8 = inlined_call_operand.vmem [shape: f32[1,8], index: 8, kind: input, shape index: {}]
  %s9 = inlined_call_operand.vmem [shape: f32[8,64], index: 9, kind: input, shape index: {}]
  %s10 = inlined_call_operand.vmem [shape: f32[1,64], index: 10, kind: input, shape index: {}]
  %s11 = inlined_call_operand.vmem [shape: f32[64,32], index: 11, kind: input, shape index: {}]
  %s12 = inlined_call_operand.vmem [shape: f32[1,32], index: 12, kind: input, shape index: {}]
  %s13 = inlined_call_operand.vmem [shape: f32[32,64], index: 13, kind: input, shape index: {}]
  %s14 = inlined_call_operand.vmem [shape: f32[1,64], index: 14, kind: input, shape index: {}]
  %s15 = inlined_call_operand.vmem [shape: f32[64,6], index: 15, kind: input, shape index: {}]
  %s16 = inlined_call_operand.vmem [shape: f32[1,6], index: 16, kind: input, shape index: {}]
  %s17 = inlined_call_operand.hbm [shape: f32[2,1,6], index: 17, kind: output, shape index: {}]
  %s18 = sld [smem:[#allocation0]]
  $region101: #{eegnet_forward.1} parent=0
    _
  %s20 = ssub.s32 1, %s18
  %s21 = scalar_select 0, %s20, %s18
  $region1: #{eegnet_forward.1} parent=0
    #allocation3 [shape = 'u8[1024]{0}', space=vmem, size = 0x400, scoped, tag = 'output window, operand 0']
    #allocation4 [shape = 's32[2]{0}', space=sflag, size = 0x8, scoped, tag = 'scoped memory for eegnet_forward.1']
    %22 = vsyncpa [#allocation4], 0
    %s23 = scalar_lea.sflag [#allocation4], 1
    %24 = vsyncpa %s23, 0
    loop: start=0, step=1, limit=4
    $region2: #{eegnet_forward.1} parent=1 // loop_pre_header
      _
    $region3: #{eegnet_forward.1} parent=1 // loop_header
      %s26 = sphi 0, %s30
      %p27 = scmp.ge.s32.totalorder %s26, 4
      %s36 = sphi 0, %s38
      %s39 = sphi 0, %s36
      %s40 = sphi 0, %s39
      %s56 = sphi 0, %s40
      %s60 = sphi 0, %s60
      %s62 = sphi 0, %s60
      %s63 = sphi 0, %s62
      %s77 = sphi 0, %s63
      %s81 = sphi 0, %s81
      %s83 = sphi 0, %s81
      %s84 = sphi 0, %s83
      %s98 = sphi 0, %s84
      %s102 = sphi 0, %s102
      %s104 = sphi 0, %s102
      %s105 = sphi 0, %s104
      %s119 = sphi 0, %s105
      %s123 = sphi 0, %s123
      %s125 = sphi 0, %s123
      %s126 = sphi 0, %s125
      %s140 = sphi 0, %s126
      %s144 = sphi 0, %s144
      %s146 = sphi 0, %s144
      %s147 = sphi 0, %s146
      %s161 = sphi 0, %s147
      %s165 = sphi 0, %s165
      %s167 = sphi 0, %s165
      %s168 = sphi 0, %s167
      %s182 = sphi 0, %s168
      %s186 = sphi 0, %s186
      %s188 = sphi 0, %s186
      %s189 = sphi 0, %s188
      %s203 = sphi 0, %s189
      %s207 = sphi 0, %s207
      %s209 = sphi 0, %s207
      %s210 = sphi 0, %s209
      %s224 = sphi 0, %s210
      %s228 = sphi 0, %s228
      %s230 = sphi 0, %s228
      %s231 = sphi 0, %s230
      %s245 = sphi 0, %s231
      %s249 = sphi 0, %s249
      %s251 = sphi 0, %s249
      %s252 = sphi 0, %s251
      %s266 = sphi 0, %s252
      %s270 = sphi 0, %s270
      %s272 = sphi 0, %s270
      %s273 = sphi 0, %s272
      %s287 = sphi 0, %s273
      %s291 = sphi 0, %s291
      %s293 = sphi 0, %s291
      %s294 = sphi 0, %s293
      %s308 = sphi 0, %s294
      %s312 = sphi 0, %s312
      %s314 = sphi 0, %s312
      %s315 = sphi 0, %s314
      %s329 = sphi 0, %s315
      %s333 = sphi 0, %s333
      %s335 = sphi 0, %s333
      %s336 = sphi 0, %s335
      %s350 = sphi 0, %s336
      %s354 = sphi 0, %s354
      %s356 = sphi 0, %s354
      %s357 = sphi 0, %s356
      %s371 = sphi 0, %s357
      %s375 = sphi 0, %s375
      %s377 = sphi 0, %s375
      %s378 = sphi 0, %s377
      %s392 = sphi 0, %s378
      %s398 = sphi 0, %s400
      %s401 = sphi 0, %s398
      %s402 = sphi 0, %s401
      %s418 = sphi 0, %s402
    $region4: #{eegnet_forward.1} parent=1 // loop_header_branch
      %29 = sbr.rel (%p27) target = $region8
    $region5: #{eegnet_forward.1} parent=1 // loop_body
      %s31 = ssub.s32 %s26, 1
      %s32 = ssub.s32 %s26, 2
      %s33 = sadd.s32 %s26, 1
      %s34 = ssub.s32 %s26, %s33
      %p35 = scmp.eq.s32.totalorder %s34, 0
      %s37 = sadd.s32 %s36, 1
      %s38 = scalar_select %p35, %s36, %s37
      %p41 = pneg %p35
      %p42 = scmp.eq.s32.totalorder %s26, 1
      %p43 = por %p41, %p42
      %p44 = scmp.ne.s32.totalorder %s36, %s39
      %p45 = scmp.eq.s32.totalorder %s26, 0
      %p46 = por %p44, %p45
      %p47 = scmp.ne.s32.totalorder %s36, %s39
      %p48 = scmp.eq.s32.totalorder %s31, 1
      %p49 = por %p47, %p48
      %p50 = scmp.ne.s32.totalorder %s39, %s40
      %p51 = scmp.eq.s32.totalorder %s31, 0
      %p52 = por %p50, %p51
      %p53 = scmp.ne.s32.totalorder %s39, %s40
      %p54 = scmp.eq.s32.totalorder %s32, 1
      %p55 = por %p53, %p54
      %p57 = scmp.ne.s32.totalorder %s40, %s56
      %p58 = scmp.eq.s32.totalorder %s32, 0
      %p59 = por %p57, %p58
      %s61 = sadd.s32 %s60, 1
      %p64 = scmp.eq.s32.totalorder %s26, 1
      %p65 = scmp.ne.s32.totalorder %s60, %s62
      %p66 = scmp.eq.s32.totalorder %s26, 0
      %p67 = por %p65, %p66
      %p68 = scmp.ne.s32.totalorder %s60, %s62
      %p69 = scmp.eq.s32.totalorder %s31, 1
      %p70 = por %p68, %p69
      %p71 = scmp.ne.s32.totalorder %s62, %s63
      %p72 = scmp.eq.s32.totalorder %s31, 0
      %p73 = por %p71, %p72
      %p74 = scmp.ne.s32.totalorder %s62, %s63
      %p75 = scmp.eq.s32.totalorder %s32, 1
      %p76 = por %p74, %p75
      %p78 = scmp.ne.s32.totalorder %s63, %s77
      %p79 = scmp.eq.s32.totalorder %s32, 0
      %p80 = por %p78, %p79
      %s82 = sadd.s32 %s81, 1
      %p85 = scmp.eq.s32.totalorder %s26, 1
      %p86 = scmp.ne.s32.totalorder %s81, %s83
      %p87 = scmp.eq.s32.totalorder %s26, 0
      %p88 = por %p86, %p87
      %p89 = scmp.ne.s32.totalorder %s81, %s83
      %p90 = scmp.eq.s32.totalorder %s31, 1
      %p91 = por %p89, %p90
      %p92 = scmp.ne.s32.totalorder %s83, %s84
      %p93 = scmp.eq.s32.totalorder %s31, 0
      %p94 = por %p92, %p93
      %p95 = scmp.ne.s32.totalorder %s83, %s84
      %p96 = scmp.eq.s32.totalorder %s32, 1
      %p97 = por %p95, %p96
      %p99 = scmp.ne.s32.totalorder %s84, %s98
      %p100 = scmp.eq.s32.totalorder %s32, 0
      %p101 = por %p99, %p100
      %s103 = sadd.s32 %s102, 1
      %p106 = scmp.eq.s32.totalorder %s26, 1
      %p107 = scmp.ne.s32.totalorder %s102, %s104
      %p108 = scmp.eq.s32.totalorder %s26, 0
      %p109 = por %p107, %p108
      %p110 = scmp.ne.s32.totalorder %s102, %s104
      %p111 = scmp.eq.s32.totalorder %s31, 1
      %p112 = por %p110, %p111
      %p113 = scmp.ne.s32.totalorder %s104, %s105
      %p114 = scmp.eq.s32.totalorder %s31, 0
      %p115 = por %p113, %p114
      %p116 = scmp.ne.s32.totalorder %s104, %s105
      %p117 = scmp.eq.s32.totalorder %s32, 1
      %p118 = por %p116, %p117
      %p120 = scmp.ne.s32.totalorder %s105, %s119
      %p121 = scmp.eq.s32.totalorder %s32, 0
      %p122 = por %p120, %p121
      %s124 = sadd.s32 %s123, 1
      %p127 = scmp.eq.s32.totalorder %s26, 1
      %p128 = scmp.ne.s32.totalorder %s123, %s125
      %p129 = scmp.eq.s32.totalorder %s26, 0
      %p130 = por %p128, %p129
      %p131 = scmp.ne.s32.totalorder %s123, %s125
      %p132 = scmp.eq.s32.totalorder %s31, 1
      %p133 = por %p131, %p132
      %p134 = scmp.ne.s32.totalorder %s125, %s126
      %p135 = scmp.eq.s32.totalorder %s31, 0
      %p136 = por %p134, %p135
      %p137 = scmp.ne.s32.totalorder %s125, %s126
      %p138 = scmp.eq.s32.totalorder %s32, 1
      %p139 = por %p137, %p138
      %p141 = scmp.ne.s32.totalorder %s126, %s140
      %p142 = scmp.eq.s32.totalorder %s32, 0
      %p143 = por %p141, %p142
      %s145 = sadd.s32 %s144, 1
      %p148 = scmp.eq.s32.totalorder %s26, 1
      %p149 = scmp.ne.s32.totalorder %s144, %s146
      %p150 = scmp.eq.s32.totalorder %s26, 0
      %p151 = por %p149, %p150
      %p152 = scmp.ne.s32.totalorder %s144, %s146
      %p153 = scmp.eq.s32.totalorder %s31, 1
      %p154 = por %p152, %p153
      %p155 = scmp.ne.s32.totalorder %s146, %s147
      %p156 = scmp.eq.s32.totalorder %s31, 0
      %p157 = por %p155, %p156
      %p158 = scmp.ne.s32.totalorder %s146, %s147
      %p159 = scmp.eq.s32.totalorder %s32, 1
      %p160 = por %p158, %p159
      %p162 = scmp.ne.s32.totalorder %s147, %s161
      %p163 = scmp.eq.s32.totalorder %s32, 0
      %p164 = por %p162, %p163
      %s166 = sadd.s32 %s165, 1
      %p169 = scmp.eq.s32.totalorder %s26, 1
      %p170 = scmp.ne.s32.totalorder %s165, %s167
      %p171 = scmp.eq.s32.totalorder %s26, 0
      %p172 = por %p170, %p171
      %p173 = scmp.ne.s32.totalorder %s165, %s167
      %p174 = scmp.eq.s32.totalorder %s31, 1
      %p175 = por %p173, %p174
      %p176 = scmp.ne.s32.totalorder %s167, %s168
      %p177 = scmp.eq.s32.totalorder %s31, 0
      %p178 = por %p176, %p177
      %p179 = scmp.ne.s32.totalorder %s167, %s168
      %p180 = scmp.eq.s32.totalorder %s32, 1
      %p181 = por %p179, %p180
      %p183 = scmp.ne.s32.totalorder %s168, %s182
      %p184 = scmp.eq.s32.totalorder %s32, 0
      %p185 = por %p183, %p184
      %s187 = sadd.s32 %s186, 1
      %p190 = scmp.eq.s32.totalorder %s26, 1
      %p191 = scmp.ne.s32.totalorder %s186, %s188
      %p192 = scmp.eq.s32.totalorder %s26, 0
      %p193 = por %p191, %p192
      %p194 = scmp.ne.s32.totalorder %s186, %s188
      %p195 = scmp.eq.s32.totalorder %s31, 1
      %p196 = por %p194, %p195
      %p197 = scmp.ne.s32.totalorder %s188, %s189
      %p198 = scmp.eq.s32.totalorder %s31, 0
      %p199 = por %p197, %p198
      %p200 = scmp.ne.s32.totalorder %s188, %s189
      %p201 = scmp.eq.s32.totalorder %s32, 1
      %p202 = por %p200, %p201
      %p204 = scmp.ne.s32.totalorder %s189, %s203
      %p205 = scmp.eq.s32.totalorder %s32, 0
      %p206 = por %p204, %p205
      %s208 = sadd.s32 %s207, 1
      %p211 = scmp.eq.s32.totalorder %s26, 1
      %p212 = scmp.ne.s32.totalorder %s207, %s209
      %p213 = scmp.eq.s32.totalorder %s26, 0
      %p214 = por %p212, %p213
      %p215 = scmp.ne.s32.totalorder %s207, %s209
      %p216 = scmp.eq.s32.totalorder %s31, 1
      %p217 = por %p215, %p216
      %p218 = scmp.ne.s32.totalorder %s209, %s210
      %p219 = scmp.eq.s32.totalorder %s31, 0
      %p220 = por %p218, %p219
      %p221 = scmp.ne.s32.totalorder %s209, %s210
      %p222 = scmp.eq.s32.totalorder %s32, 1
      %p223 = por %p221, %p222
      %p225 = scmp.ne.s32.totalorder %s210, %s224
      %p226 = scmp.eq.s32.totalorder %s32, 0
      %p227 = por %p225, %p226
      %s229 = sadd.s32 %s228, 1
      %p232 = scmp.eq.s32.totalorder %s26, 1
      %p233 = scmp.ne.s32.totalorder %s228, %s230
      %p234 = scmp.eq.s32.totalorder %s26, 0
      %p235 = por %p233, %p234
      %p236 = scmp.ne.s32.totalorder %s228, %s230
      %p237 = scmp.eq.s32.totalorder %s31, 1
      %p238 = por %p236, %p237
      %p239 = scmp.ne.s32.totalorder %s230, %s231
      %p240 = scmp.eq.s32.totalorder %s31, 0
      %p241 = por %p239, %p240
      %p242 = scmp.ne.s32.totalorder %s230, %s231
      %p243 = scmp.eq.s32.totalorder %s32, 1
      %p244 = por %p242, %p243
      %p246 = scmp.ne.s32.totalorder %s231, %s245
      %p247 = scmp.eq.s32.totalorder %s32, 0
      %p248 = por %p246, %p247
      %s250 = sadd.s32 %s249, 1
      %p253 = scmp.eq.s32.totalorder %s26, 1
      %p254 = scmp.ne.s32.totalorder %s249, %s251
      %p255 = scmp.eq.s32.totalorder %s26, 0
      %p256 = por %p254, %p255
      %p257 = scmp.ne.s32.totalorder %s249, %s251
      %p258 = scmp.eq.s32.totalorder %s31, 1
      %p259 = por %p257, %p258
      %p260 = scmp.ne.s32.totalorder %s251, %s252
      %p261 = scmp.eq.s32.totalorder %s31, 0
      %p262 = por %p260, %p261
      %p263 = scmp.ne.s32.totalorder %s251, %s252
      %p264 = scmp.eq.s32.totalorder %s32, 1
      %p265 = por %p263, %p264
      %p267 = scmp.ne.s32.totalorder %s252, %s266
      %p268 = scmp.eq.s32.totalorder %s32, 0
      %p269 = por %p267, %p268
      %s271 = sadd.s32 %s270, 1
      %p274 = scmp.eq.s32.totalorder %s26, 1
      %p275 = scmp.ne.s32.totalorder %s270, %s272
      %p276 = scmp.eq.s32.totalorder %s26, 0
      %p277 = por %p275, %p276
      %p278 = scmp.ne.s32.totalorder %s270, %s272
      %p279 = scmp.eq.s32.totalorder %s31, 1
      %p280 = por %p278, %p279
      %p281 = scmp.ne.s32.totalorder %s272, %s273
      %p282 = scmp.eq.s32.totalorder %s31, 0
      %p283 = por %p281, %p282
      %p284 = scmp.ne.s32.totalorder %s272, %s273
      %p285 = scmp.eq.s32.totalorder %s32, 1
      %p286 = por %p284, %p285
      %p288 = scmp.ne.s32.totalorder %s273, %s287
      %p289 = scmp.eq.s32.totalorder %s32, 0
      %p290 = por %p288, %p289
      %s292 = sadd.s32 %s291, 1
      %p295 = scmp.eq.s32.totalorder %s26, 1
      %p296 = scmp.ne.s32.totalorder %s291, %s293
      %p297 = scmp.eq.s32.totalorder %s26, 0
      %p298 = por %p296, %p297
      %p299 = scmp.ne.s32.totalorder %s291, %s293
      %p300 = scmp.eq.s32.totalorder %s31, 1
      %p301 = por %p299, %p300
      %p302 = scmp.ne.s32.totalorder %s293, %s294
      %p303 = scmp.eq.s32.totalorder %s31, 0
      %p304 = por %p302, %p303
      %p305 = scmp.ne.s32.totalorder %s293, %s294
      %p306 = scmp.eq.s32.totalorder %s32, 1
      %p307 = por %p305, %p306
      %p309 = scmp.ne.s32.totalorder %s294, %s308
      %p310 = scmp.eq.s32.totalorder %s32, 0
      %p311 = por %p309, %p310
      %s313 = sadd.s32 %s312, 1
      %p316 = scmp.eq.s32.totalorder %s26, 1
      %p317 = scmp.ne.s32.totalorder %s312, %s314
      %p318 = scmp.eq.s32.totalorder %s26, 0
      %p319 = por %p317, %p318
      %p320 = scmp.ne.s32.totalorder %s312, %s314
      %p321 = scmp.eq.s32.totalorder %s31, 1
      %p322 = por %p320, %p321
      %p323 = scmp.ne.s32.totalorder %s314, %s315
      %p324 = scmp.eq.s32.totalorder %s31, 0
      %p325 = por %p323, %p324
      %p326 = scmp.ne.s32.totalorder %s314, %s315
      %p327 = scmp.eq.s32.totalorder %s32, 1
      %p328 = por %p326, %p327
      %p330 = scmp.ne.s32.totalorder %s315, %s329
      %p331 = scmp.eq.s32.totalorder %s32, 0
      %p332 = por %p330, %p331
      %s334 = sadd.s32 %s333, 1
      %p337 = scmp.eq.s32.totalorder %s26, 1
      %p338 = scmp.ne.s32.totalorder %s333, %s335
      %p339 = scmp.eq.s32.totalorder %s26, 0
      %p340 = por %p338, %p339
      %p341 = scmp.ne.s32.totalorder %s333, %s335
      %p342 = scmp.eq.s32.totalorder %s31, 1
      %p343 = por %p341, %p342
      %p344 = scmp.ne.s32.totalorder %s335, %s336
      %p345 = scmp.eq.s32.totalorder %s31, 0
      %p346 = por %p344, %p345
      %p347 = scmp.ne.s32.totalorder %s335, %s336
      %p348 = scmp.eq.s32.totalorder %s32, 1
      %p349 = por %p347, %p348
      %p351 = scmp.ne.s32.totalorder %s336, %s350
      %p352 = scmp.eq.s32.totalorder %s32, 0
      %p353 = por %p351, %p352
      %s355 = sadd.s32 %s354, 1
      %p358 = scmp.eq.s32.totalorder %s26, 1
      %p359 = scmp.ne.s32.totalorder %s354, %s356
      %p360 = scmp.eq.s32.totalorder %s26, 0
      %p361 = por %p359, %p360
      %p362 = scmp.ne.s32.totalorder %s354, %s356
      %p363 = scmp.eq.s32.totalorder %s31, 1
      %p364 = por %p362, %p363
      %p365 = scmp.ne.s32.totalorder %s356, %s357
      %p366 = scmp.eq.s32.totalorder %s31, 0
      %p367 = por %p365, %p366
      %p368 = scmp.ne.s32.totalorder %s356, %s357
      %p369 = scmp.eq.s32.totalorder %s32, 1
      %p370 = por %p368, %p369
      %p372 = scmp.ne.s32.totalorder %s357, %s371
      %p373 = scmp.eq.s32.totalorder %s32, 0
      %p374 = por %p372, %p373
      %s376 = sadd.s32 %s375, 1
      %p379 = scmp.eq.s32.totalorder %s26, 1
      %p380 = scmp.ne.s32.totalorder %s375, %s377
      %p381 = scmp.eq.s32.totalorder %s26, 0
      %p382 = por %p380, %p381
      %p383 = scmp.ne.s32.totalorder %s375, %s377
      %p384 = scmp.eq.s32.totalorder %s31, 1
      %p385 = por %p383, %p384
      %p386 = scmp.ne.s32.totalorder %s377, %s378
      %p387 = scmp.eq.s32.totalorder %s31, 0
      %p388 = por %p386, %p387
      %p389 = scmp.ne.s32.totalorder %s377, %s378
      %p390 = scmp.eq.s32.totalorder %s32, 1
      %p391 = por %p389, %p390
      %p393 = scmp.ne.s32.totalorder %s378, %s392
      %p394 = scmp.eq.s32.totalorder %s32, 0
      %p395 = por %p393, %p394
      %s396 = ssub.s32 %s26, %s33
      %p397 = scmp.eq.s32.totalorder %s396, 0
      %s399 = sadd.s32 %s398, 1
      %s400 = scalar_select %p397, %s398, %s399
      %p403 = pneg %p397
      %p404 = scmp.eq.s32.totalorder %s26, 1
      %p405 = por %p403, %p404
      %p406 = scmp.ne.s32.totalorder %s398, %s401
      %p407 = scmp.eq.s32.totalorder %s26, 0
      %p408 = por %p406, %p407
      %p409 = scmp.ne.s32.totalorder %s398, %s401
      %p410 = scmp.eq.s32.totalorder %s31, 1
      %p411 = por %p409, %p410
      %p412 = scmp.ne.s32.totalorder %s401, %s402
      %p413 = scmp.eq.s32.totalorder %s31, 0
      %p414 = por %p412, %p413
      %p415 = scmp.ne.s32.totalorder %s401, %s402
      %p416 = scmp.eq.s32.totalorder %s32, 1
      %p417 = por %p415, %p416
      %p419 = scmp.ne.s32.totalorder %s402, %s418
      %p420 = scmp.eq.s32.totalorder %s32, 0
      %p421 = por %p419, %p420
      %p422 = scmp.le.s32.totalorder 1, %s26
      %p423 = scmp.lt.s32.totalorder %s26, 3
      %p424 = pnand %p422, %p423
      %p425 = pneg %p424
      // Predicated region
      $region9: #{eegnet_forward.1} parent=5 // pred_check
        _
      $region10: #{eegnet_forward.1} parent=5 // pred_check_branch
        %427 = sbr.rel (%p424) target = $region12
      $region11: #{eegnet_forward.1} parent=5 // pred_region
        %s428 = ssub.s32 %s26, 1
        // Predicated region
        $region13: #{eegnet_forward.1} parent=11 // pred_check
          %p429 = pneg %p73
        $region14: #{eegnet_forward.1} parent=11 // pred_check_branch
          %431 = sbr.rel (%p429) target = $region16
        $region15: #{eegnet_forward.1} parent=11 // pred_region
          _
        $region16: #{eegnet_forward.1} parent=11 // pred_fallthru
          _
        // Predicated region
        $region17: #{eegnet_forward.1} parent=11 // pred_check
          %p432 = pneg %p94
        $region18: #{eegnet_forward.1} parent=11 // pred_check_branch
          %434 = sbr.rel (%p432) target = $region20
        $region19: #{eegnet_forward.1} parent=11 // pred_region
          _
        $region20: #{eegnet_forward.1} parent=11 // pred_fallthru
          _
        // Predicated region
        $region21: #{eegnet_forward.1} parent=11 // pred_check
          %p435 = pneg %p115
        $region22: #{eegnet_forward.1} parent=11 // pred_check_branch
          %437 = sbr.rel (%p435) target = $region24
        $region23: #{eegnet_forward.1} parent=11 // pred_region
          _
        $region24: #{eegnet_forward.1} parent=11 // pred_fallthru
          _
        // Predicated region
        $region25: #{eegnet_forward.1} parent=11 // pred_check
          %p438 = pneg %p136
        $region26: #{eegnet_forward.1} parent=11 // pred_check_branch
          %440 = sbr.rel (%p438) target = $region28
        $region27: #{eegnet_forward.1} parent=11 // pred_region
          _
        $region28: #{eegnet_forward.1} parent=11 // pred_fallthru
          _
        // Predicated region
        $region29: #{eegnet_forward.1} parent=11 // pred_check
          %p441 = pneg %p157
        $region30: #{eegnet_forward.1} parent=11 // pred_check_branch
          %443 = sbr.rel (%p441) target = $region32
        $region31: #{eegnet_forward.1} parent=11 // pred_region
          _
        $region32: #{eegnet_forward.1} parent=11 // pred_fallthru
          _
        // Predicated region
        $region33: #{eegnet_forward.1} parent=11 // pred_check
          %p444 = pneg %p178
        $region34: #{eegnet_forward.1} parent=11 // pred_check_branch
          %446 = sbr.rel (%p444) target = $region36
        $region35: #{eegnet_forward.1} parent=11 // pred_region
          _
        $region36: #{eegnet_forward.1} parent=11 // pred_fallthru
          _
        // Predicated region
        $region37: #{eegnet_forward.1} parent=11 // pred_check
          %p447 = pneg %p199
        $region38: #{eegnet_forward.1} parent=11 // pred_check_branch
          %449 = sbr.rel (%p447) target = $region40
        $region39: #{eegnet_forward.1} parent=11 // pred_region
          _
        $region40: #{eegnet_forward.1} parent=11 // pred_fallthru
          _
        // Predicated region
        $region41: #{eegnet_forward.1} parent=11 // pred_check
          %p450 = pneg %p220
        $region42: #{eegnet_forward.1} parent=11 // pred_check_branch
          %452 = sbr.rel (%p450) target = $region44
        $region43: #{eegnet_forward.1} parent=11 // pred_region
          _
        $region44: #{eegnet_forward.1} parent=11 // pred_fallthru
          _
        // Predicated region
        $region45: #{eegnet_forward.1} parent=11 // pred_check
          %p453 = pneg %p241
        $region46: #{eegnet_forward.1} parent=11 // pred_check_branch
          %455 = sbr.rel (%p453) target = $region48
        $region47: #{eegnet_forward.1} parent=11 // pred_region
          _
        $region48: #{eegnet_forward.1} parent=11 // pred_fallthru
          _
        // Predicated region
        $region49: #{eegnet_forward.1} parent=11 // pred_check
          %p456 = pneg %p262
        $region50: #{eegnet_forward.1} parent=11 // pred_check_branch
          %458 = sbr.rel (%p456) target = $region52
        $region51: #{eegnet_forward.1} parent=11 // pred_region
          _
        $region52: #{eegnet_forward.1} parent=11 // pred_fallthru
          _
        // Predicated region
        $region53: #{eegnet_forward.1} parent=11 // pred_check
          %p459 = pneg %p283
        $region54: #{eegnet_forward.1} parent=11 // pred_check_branch
          %461 = sbr.rel (%p459) target = $region56
        $region55: #{eegnet_forward.1} parent=11 // pred_region
          _
        $region56: #{eegnet_forward.1} parent=11 // pred_fallthru
          _
        // Predicated region
        $region57: #{eegnet_forward.1} parent=11 // pred_check
          %p462 = pneg %p304
        $region58: #{eegnet_forward.1} parent=11 // pred_check_branch
          %464 = sbr.rel (%p462) target = $region60
        $region59: #{eegnet_forward.1} parent=11 // pred_region
          _
        $region60: #{eegnet_forward.1} parent=11 // pred_fallthru
          _
        // Predicated region
        $region61: #{eegnet_forward.1} parent=11 // pred_check
          %p465 = pneg %p325
        $region62: #{eegnet_forward.1} parent=11 // pred_check_branch
          %467 = sbr.rel (%p465) target = $region64
        $region63: #{eegnet_forward.1} parent=11 // pred_region
          _
        $region64: #{eegnet_forward.1} parent=11 // pred_fallthru
          _
        // Predicated region
        $region65: #{eegnet_forward.1} parent=11 // pred_check
          %p468 = pneg %p346
        $region66: #{eegnet_forward.1} parent=11 // pred_check_branch
          %470 = sbr.rel (%p468) target = $region68
        $region67: #{eegnet_forward.1} parent=11 // pred_region
          _
        $region68: #{eegnet_forward.1} parent=11 // pred_fallthru
          _
        // Predicated region
        $region69: #{eegnet_forward.1} parent=11 // pred_check
          %p471 = pneg %p367
        $region70: #{eegnet_forward.1} parent=11 // pred_check_branch
          %473 = sbr.rel (%p471) target = $region72
        $region71: #{eegnet_forward.1} parent=11 // pred_region
          _
        $region72: #{eegnet_forward.1} parent=11 // pred_fallthru
          _
        // Predicated region
        $region73: #{eegnet_forward.1} parent=11 // pred_check
          %p474 = pneg %p388
        $region74: #{eegnet_forward.1} parent=11 // pred_check_branch
          %476 = sbr.rel (%p474) target = $region76
        $region75: #{eegnet_forward.1} parent=11 // pred_region
          _
        $region76: #{eegnet_forward.1} parent=11 // pred_fallthru
          _
      $region12: #{eegnet_forward.1} parent=5 // pred_fallthru
        _
      %p477 = scmp.lt.s32.totalorder %s26, 2
      // Predicated region
      $region77: #{eegnet_forward.1} parent=5 // pred_check
        %p478 = pneg %p477
      $region78: #{eegnet_forward.1} parent=5 // pred_check_branch
        %480 = sbr.rel (%p478) target = $region80
      $region79: #{eegnet_forward.1} parent=5 // pred_region
        // Predicated region
        $region81: #{eegnet_forward.1} parent=79 // pred_check
          %p481 = pneg %p46
        $region82: #{eegnet_forward.1} parent=79 // pred_check_branch
          %483 = sbr.rel (%p481) target = $region84
        $region83: #{eegnet_forward.1} parent=79 // pred_region
          %p484 = scmp.lt.s32.totalorder %s26, 1
          %s485 = scalar_select %p484, %s26, 1
          %s486 = smul.addr %s485, 8
          %s487 = smul.addr %s486, 8
          %s488 = scalar_lea.vmem %s0, %s487
        $region84: #{eegnet_forward.1} parent=79 // pred_fallthru
          _
      $region80: #{eegnet_forward.1} parent=5 // pred_fallthru
        _
      %p489 = scmp.le.s32.totalorder 1, %s26
      %p490 = scmp.lt.s32.totalorder %s26, 3
      %p491 = pnand %p489, %p490
      %p492 = pneg %p491
      // Predicated region
      $region85: #{eegnet_forward.1} parent=5 // pred_check
        _
      $region86: #{eegnet_forward.1} parent=5 // pred_check_branch
        %494 = sbr.rel (%p491) target = $region88
      $region87: #{eegnet_forward.1} parent=5 // pred_region
        %s495 = ssub.s32 %s26, 1
        %p496 = scmp.lt.s32.totalorder %s31, 1
        %s497 = scalar_select %p496, %s31, 1
        %s498 = smul.addr %s497, 8
        %s499 = smul.addr %s498, 8
        %s500 = scalar_lea.vmem %s0, %s499
        %p501 = pneg %p52
        %p502 = pneg %p49
        %p503 = pneg %p73
        %p504 = pneg %p70
        %p505 = pneg %p94
        %p506 = pneg %p91
        %p507 = pneg %p115
        %p508 = pneg %p112
        %p509 = pneg %p136
        %p510 = pneg %p133
        %p511 = pneg %p157
        %p512 = pneg %p154
        %p513 = pneg %p178
        %p514 = pneg %p175
        %p515 = pneg %p199
        %p516 = pneg %p196
        %p517 = pneg %p220
        %p518 = pneg %p217
        %p519 = pneg %p241
        %p520 = pneg %p238
        %p521 = pneg %p262
        %p522 = pneg %p259
        %p523 = pneg %p283
        %p524 = pneg %p280
        %p525 = pneg %p304
        %p526 = pneg %p301
        %p527 = pneg %p325
        %p528 = pneg %p322
        %p529 = pneg %p346
        %p530 = pneg %p343
        %p531 = pneg %p367
        %p532 = pneg %p364
        %p533 = pneg %p388
        %p534 = pneg %p385
        %p535 = pneg %p414
        %p536 = pneg %p411
        %s537 = sand.u32 %s401, 1
        %s538 = scalar_lea.sflag [#allocation4], %s537
        %s539 = sand.u32 %s401, 1
        %s540 = scalar_lea.vmem [#allocation3], %s539
        %p541 = scmp.lt.s32.totalorder %s31, 1
        %s542 = scalar_select %p541, %s31, 1
        %s543 = smul.addr %s542, 8
        %s544 = smul.addr %s543, 8
        %s545 = scalar_lea.vmem %s0, %s544
        %v546 = vld [vmem:[%s545] sm:$0xff]
        %v547 = vperm.slane %v546, 0
        %v548 = vlaneseq
        %v549 = vshrl.u32 %v548, 7
        %551 = vset.pattern.permute.xlu0 %v549
        %552 = vperm.xlu0 %551, %v547
        %v553 = vpop.permute.xlu0 %552
        %v554 = vlaneseq
        %v555 = vshrl.u32 %v554, 7
        %v556 = vadd.s32 %v555, 8
        %557 = vset.pattern.permute.xlu0 %v556
        %558 = vperm.xlu0 %557, %v547
        %v559 = vpop.permute.xlu0 %558
        %v560 = vperm.slane %v546, 1
        %v561 = vlaneseq
        %v562 = vshrl.u32 %v561, 7
        %564 = vset.pattern.permute.xlu0 %v562
        %565 = vperm.xlu0 %564, %v560
        %v566 = vpop.permute.xlu0 %565
        %v567 = vlaneseq
        %v568 = vshrl.u32 %v567, 7
        %v569 = vadd.s32 %v568, 8
        %570 = vset.pattern.permute.xlu0 %v569
        %571 = vperm.xlu0 %570, %v560
        %v572 = vpop.permute.xlu0 %571
        %v573 = vperm.slane %v546, 2
        %v574 = vlaneseq
        %v575 = vshrl.u32 %v574, 7
        %577 = vset.pattern.permute.xlu0 %v575
        %578 = vperm.xlu0 %577, %v573
        %v579 = vpop.permute.xlu0 %578
        %v580 = vlaneseq
        %v581 = vshrl.u32 %v580, 7
        %v582 = vadd.s32 %v581, 8
        %583 = vset.pattern.permute.xlu0 %v582
        %584 = vperm.xlu0 %583, %v573
        %v585 = vpop.permute.xlu0 %584
        %v586 = vperm.slane %v546, 3
        %v587 = vlaneseq
        %v588 = vshrl.u32 %v587, 7
        %590 = vset.pattern.permute.xlu0 %v588
        %591 = vperm.xlu0 %590, %v586
        %v592 = vpop.permute.xlu0 %591
        %v593 = vlaneseq
        %v594 = vshrl.u32 %v593, 7
        %v595 = vadd.s32 %v594, 8
        %596 = vset.pattern.permute.xlu0 %v595
        %597 = vperm.xlu0 %596, %v586
        %v598 = vpop.permute.xlu0 %597
        %v599 = vperm.slane %v546, 4
        %v600 = vlaneseq
        %v601 = vshrl.u32 %v600, 7
        %603 = vset.pattern.permute.xlu0 %v601
        %604 = vperm.xlu0 %603, %v599
        %v605 = vpop.permute.xlu0 %604
        %v606 = vlaneseq
        %v607 = vshrl.u32 %v606, 7
        %v608 = vadd.s32 %v607, 8
        %609 = vset.pattern.permute.xlu0 %v608
        %610 = vperm.xlu0 %609, %v599
        %v611 = vpop.permute.xlu0 %610
        %v612 = vperm.slane %v546, 5
        %v613 = vlaneseq
        %v614 = vshrl.u32 %v613, 7
        %616 = vset.pattern.permute.xlu0 %v614
        %617 = vperm.xlu0 %616, %v612
        %v618 = vpop.permute.xlu0 %617
        %v619 = vlaneseq
        %v620 = vshrl.u32 %v619, 7
        %v621 = vadd.s32 %v620, 8
        %622 = vset.pattern.permute.xlu0 %v621
        %623 = vperm.xlu0 %622, %v612
        %v624 = vpop.permute.xlu0 %623
        %v625 = vperm.slane %v546, 6
        %v626 = vlaneseq
        %v627 = vshrl.u32 %v626, 7
        %629 = vset.pattern.permute.xlu0 %v627
        %630 = vperm.xlu0 %629, %v625
        %v631 = vpop.permute.xlu0 %630
        %v632 = vlaneseq
        %v633 = vshrl.u32 %v632, 7
        %v634 = vadd.s32 %v633, 8
        %635 = vset.pattern.permute.xlu0 %v634
        %636 = vperm.xlu0 %635, %v625
        %v637 = vpop.permute.xlu0 %636
        %v638 = vperm.slane %v546, 7
        %v639 = vlaneseq
        %v640 = vshrl.u32 %v639, 7
        %642 = vset.pattern.permute.xlu0 %v640
        %643 = vperm.xlu0 %642, %v638
        %v644 = vpop.permute.xlu0 %643
        %v645 = vlaneseq
        %v646 = vshrl.u32 %v645, 7
        %v647 = vadd.s32 %v646, 8
        %648 = vset.pattern.permute.xlu0 %v647
        %649 = vperm.xlu0 %648, %v638
        %v650 = vpop.permute.xlu0 %649
        %s651 = scalar_lea.vmem %s545, 16
        %v652 = vld [vmem:[%s651] sm:$0xff]
        %v653 = vperm.slane %v652, 0
        %v654 = vlaneseq
        %v655 = vshrl.u32 %v654, 7
        %657 = vset.pattern.permute.xlu0 %v655
        %658 = vperm.xlu0 %657, %v653
        %v659 = vpop.permute.xlu0 %658
        %v660 = vlaneseq
        %v661 = vshrl.u32 %v660, 7
        %v662 = vadd.s32 %v661, 8
        %663 = vset.pattern.permute.xlu0 %v662
        %664 = vperm.xlu0 %663, %v653
        %v665 = vpop.permute.xlu0 %664
        %v666 = vperm.slane %v652, 1
        %v667 = vlaneseq
        %v668 = vshrl.u32 %v667, 7
        %670 = vset.pattern.permute.xlu0 %v668
        %671 = vperm.xlu0 %670, %v666
        %v672 = vpop.permute.xlu0 %671
        %v673 = vlaneseq
        %v674 = vshrl.u32 %v673, 7
        %v675 = vadd.s32 %v674, 8
        %676 = vset.pattern.permute.xlu0 %v675
        %677 = vperm.xlu0 %676, %v666
        %v678 = vpop.permute.xlu0 %677
        %v679 = vperm.slane %v652, 2
        %v680 = vlaneseq
        %v681 = vshrl.u32 %v680, 7
        %683 = vset.pattern.permute.xlu0 %v681
        %684 = vperm.xlu0 %683, %v679
        %v685 = vpop.permute.xlu0 %684
        %v686 = vlaneseq
        %v687 = vshrl.u32 %v686, 7
        %v688 = vadd.s32 %v687, 8
        %689 = vset.pattern.permute.xlu0 %v688
        %690 = vperm.xlu0 %689, %v679
        %v691 = vpop.permute.xlu0 %690
        %v692 = vperm.slane %v652, 3
        %v693 = vlaneseq
        %v694 = vshrl.u32 %v693, 7
        %696 = vset.pattern.permute.xlu0 %v694
        %697 = vperm.xlu0 %696, %v692
        %v698 = vpop.permute.xlu0 %697
        %v699 = vlaneseq
        %v700 = vshrl.u32 %v699, 7
        %v701 = vadd.s32 %v700, 8
        %702 = vset.pattern.permute.xlu0 %v701
        %703 = vperm.xlu0 %702, %v692
        %v704 = vpop.permute.xlu0 %703
        %v705 = vperm.slane %v652, 4
        %v706 = vlaneseq
        %v707 = vshrl.u32 %v706, 7
        %709 = vset.pattern.permute.xlu0 %v707
        %710 = vperm.xlu0 %709, %v705
        %v711 = vpop.permute.xlu0 %710
        %v712 = vlaneseq
        %v713 = vshrl.u32 %v712, 7
        %v714 = vadd.s32 %v713, 8
        %715 = vset.pattern.permute.xlu0 %v714
        %716 = vperm.xlu0 %715, %v705
        %v717 = vpop.permute.xlu0 %716
        %v718 = vperm.slane %v652, 5
        %v719 = vlaneseq
        %v720 = vshrl.u32 %v719, 7
        %722 = vset.pattern.permute.xlu0 %v720
        %723 = vperm.xlu0 %722, %v718
        %v724 = vpop.permute.xlu0 %723
        %v725 = vlaneseq
        %v726 = vshrl.u32 %v725, 7
        %v727 = vadd.s32 %v726, 8
        %728 = vset.pattern.permute.xlu0 %v727
        %729 = vperm.xlu0 %728, %v718
        %v730 = vpop.permute.xlu0 %729
        %v731 = vperm.slane %v652, 6
        %v732 = vlaneseq
        %v733 = vshrl.u32 %v732, 7
        %735 = vset.pattern.permute.xlu0 %v733
        %736 = vperm.xlu0 %735, %v731
        %v737 = vpop.permute.xlu0 %736
        %v738 = vlaneseq
        %v739 = vshrl.u32 %v738, 7
        %v740 = vadd.s32 %v739, 8
        %741 = vset.pattern.permute.xlu0 %v740
        %742 = vperm.xlu0 %741, %v731
        %v743 = vpop.permute.xlu0 %742
        %v744 = vperm.slane %v652, 7
        %v745 = vlaneseq
        %v746 = vshrl.u32 %v745, 7
        %748 = vset.pattern.permute.xlu0 %v746
        %749 = vperm.xlu0 %748, %v744
        %v750 = vpop.permute.xlu0 %749
        %v751 = vlaneseq
        %v752 = vshrl.u32 %v751, 7
        %v753 = vadd.s32 %v752, 8
        %754 = vset.pattern.permute.xlu0 %v753
        %755 = vperm.xlu0 %754, %v744
        %v756 = vpop.permute.xlu0 %755
        %v757 = vlaneseq
        %v758 = vshrl.u32 %v757, 7
        %v759 = vadd.s32 %v758, 1
        %760 = vset.pattern.permute.xlu0 %v759
        %761 = vperm.xlu0 %760, %v547
        %v762 = vpop.permute.xlu0 %761
        %v763 = vlaneseq
        %v764 = vshrl.u32 %v763, 7
        %v765 = vadd.s32 %v764, 9
        %766 = vset.pattern.permute.xlu0 %v765
        %767 = vperm.xlu0 %766, %v547
        %v768 = vpop.permute.xlu0 %767
        %v769 = vlaneseq
        %v770 = vshrl.u32 %v769, 7
        %v771 = vadd.s32 %v770, 1
        %772 = vset.pattern.permute.xlu0 %v771
        %773 = vperm.xlu0 %772, %v560
        %v774 = vpop.permute.xlu0 %773
        %v775 = vlaneseq
        %v776 = vshrl.u32 %v775, 7
        %v777 = vadd.s32 %v776, 9
        %778 = vset.pattern.permute.xlu0 %v777
        %779 = vperm.xlu0 %778, %v560
        %v780 = vpop.permute.xlu0 %779
        %v781 = vlaneseq
        %v782 = vshrl.u32 %v781, 7
        %v783 = vadd.s32 %v782, 1
        %784 = vset.pattern.permute.xlu0 %v783
        %785 = vperm.xlu0 %784, %v573
        %v786 = vpop.permute.xlu0 %785
        %v787 = vlaneseq
        %v788 = vshrl.u32 %v787, 7
        %v789 = vadd.s32 %v788, 9
        %790 = vset.pattern.permute.xlu0 %v789
        %791 = vperm.xlu0 %790, %v573
        %v792 = vpop.permute.xlu0 %791
        %v793 = vlaneseq
        %v794 = vshrl.u32 %v793, 7
        %v795 = vadd.s32 %v794, 1
        %796 = vset.pattern.permute.xlu0 %v795
        %797 = vperm.xlu0 %796, %v586
        %v798 = vpop.permute.xlu0 %797
        %v799 = vlaneseq
        %v800 = vshrl.u32 %v799, 7
        %v801 = vadd.s32 %v800, 9
        %802 = vset.pattern.permute.xlu0 %v801
        %803 = vperm.xlu0 %802, %v586
        %v804 = vpop.permute.xlu0 %803
        %v805 = vlaneseq
        %v806 = vshrl.u32 %v805, 7
        %v807 = vadd.s32 %v806, 1
        %808 = vset.pattern.permute.xlu0 %v807
        %809 = vperm.xlu0 %808, %v599
        %v810 = vpop.permute.xlu0 %809
        %v811 = vlaneseq
        %v812 = vshrl.u32 %v811, 7
        %v813 = vadd.s32 %v812, 9
        %814 = vset.pattern.permute.xlu0 %v813
        %815 = vperm.xlu0 %814, %v599
        %v816 = vpop.permute.xlu0 %815
        %v817 = vlaneseq
        %v818 = vshrl.u32 %v817, 7
        %v819 = vadd.s32 %v818, 1
        %820 = vset.pattern.permute.xlu0 %v819
        %821 = vperm.xlu0 %820, %v612
        %v822 = vpop.permute.xlu0 %821
        %v823 = vlaneseq
        %v824 = vshrl.u32 %v823, 7
        %v825 = vadd.s32 %v824, 9
        %826 = vset.pattern.permute.xlu0 %v825
        %827 = vperm.xlu0 %826, %v612
        %v828 = vpop.permute.xlu0 %827
        %v829 = vlaneseq
        %v830 = vshrl.u32 %v829, 7
        %v831 = vadd.s32 %v830, 1
        %832 = vset.pattern.permute.xlu0 %v831
        %833 = vperm.xlu0 %832, %v625
        %v834 = vpop.permute.xlu0 %833
        %v835 = vlaneseq
        %v836 = vshrl.u32 %v835, 7
        %v837 = vadd.s32 %v836, 9
        %838 = vset.pattern.permute.xlu0 %v837
        %839 = vperm.xlu0 %838, %v625
        %v840 = vpop.permute.xlu0 %839
        %v841 = vlaneseq
        %v842 = vshrl.u32 %v841, 7
        %v843 = vadd.s32 %v842, 1
        %844 = vset.pattern.permute.xlu0 %v843
        %845 = vperm.xlu0 %844, %v638
        %v846 = vpop.permute.xlu0 %845
        %v847 = vlaneseq
        %v848 = vshrl.u32 %v847, 7
        %v849 = vadd.s32 %v848, 9
        %850 = vset.pattern.permute.xlu0 %v849
        %851 = vperm.xlu0 %850, %v638
        %v852 = vpop.permute.xlu0 %851
        %s853 = scalar_lea.vmem %s545, 32
        %v854 = vld [vmem:[%s853] sm:$0xff]
        %v855 = vperm.slane %v854, 0
        %v856 = vlaneseq
        %v857 = vshrl.u32 %v856, 7
        %859 = vset.pattern.permute.xlu0 %v857
        %860 = vperm.xlu0 %859, %v855
        %v861 = vpop.permute.xlu0 %860
        %v862 = vlaneseq
        %v863 = vshrl.u32 %v862, 7
        %v864 = vadd.s32 %v863, 8
        %865 = vset.pattern.permute.xlu0 %v864
        %866 = vperm.xlu0 %865, %v855
        %v867 = vpop.permute.xlu0 %866
        %v868 = vperm.slane %v854, 1
        %v869 = vlaneseq
        %v870 = vshrl.u32 %v869, 7
        %872 = vset.pattern.permute.xlu0 %v870
        %873 = vperm.xlu0 %872, %v868
        %v874 = vpop.permute.xlu0 %873
        %v875 = vlaneseq
        %v876 = vshrl.u32 %v875, 7
        %v877 = vadd.s32 %v876, 8
        %878 = vset.pattern.permute.xlu0 %v877
        %879 = vperm.xlu0 %878, %v868
        %v880 = vpop.permute.xlu0 %879
        %v881 = vperm.slane %v854, 2
        %v882 = vlaneseq
        %v883 = vshrl.u32 %v882, 7
        %885 = vset.pattern.permute.xlu0 %v883
        %886 = vperm.xlu0 %885, %v881
        %v887 = vpop.permute.xlu0 %886
        %v888 = vlaneseq
        %v889 = vshrl.u32 %v888, 7
        %v890 = vadd.s32 %v889, 8
        %891 = vset.pattern.permute.xlu0 %v890
        %892 = vperm.xlu0 %891, %v881
        %v893 = vpop.permute.xlu0 %892
        %v894 = vperm.slane %v854, 3
        %v895 = vlaneseq
        %v896 = vshrl.u32 %v895, 7
        %898 = vset.pattern.permute.xlu0 %v896
        %899 = vperm.xlu0 %898, %v894
        %v900 = vpop.permute.xlu0 %899
        %v901 = vlaneseq
        %v902 = vshrl.u32 %v901, 7
        %v903 = vadd.s32 %v902, 8
        %904 = vset.pattern.permute.xlu0 %v903
        %905 = vperm.xlu0 %904, %v894
        %v906 = vpop.permute.xlu0 %905
        %v907 = vperm.slane %v854, 4
        %v908 = vlaneseq
        %v909 = vshrl.u32 %v908, 7
        %911 = vset.pattern.permute.xlu0 %v909
        %912 = vperm.xlu0 %911, %v907
        %v913 = vpop.permute.xlu0 %912
        %v914 = vlaneseq
        %v915 = vshrl.u32 %v914, 7
        %v916 = vadd.s32 %v915, 8
        %917 = vset.pattern.permute.xlu0 %v916
        %918 = vperm.xlu0 %917, %v907
        %v919 = vpop.permute.xlu0 %918
        %v920 = vperm.slane %v854, 5
        %v921 = vlaneseq
        %v922 = vshrl.u32 %v921, 7
        %924 = vset.pattern.permute.xlu0 %v922
        %925 = vperm.xlu0 %924, %v920
        %v926 = vpop.permute.xlu0 %925
        %v927 = vlaneseq
        %v928 = vshrl.u32 %v927, 7
        %v929 = vadd.s32 %v928, 8
        %930 = vset.pattern.permute.xlu0 %v929
        %931 = vperm.xlu0 %930, %v920
        %v932 = vpop.permute.xlu0 %931
        %v933 = vperm.slane %v854, 6
        %v934 = vlaneseq
        %v935 = vshrl.u32 %v934, 7
        %937 = vset.pattern.permute.xlu0 %v935
        %938 = vperm.xlu0 %937, %v933
        %v939 = vpop.permute.xlu0 %938
        %v940 = vlaneseq
        %v941 = vshrl.u32 %v940, 7
        %v942 = vadd.s32 %v941, 8
        %943 = vset.pattern.permute.xlu0 %v942
        %944 = vperm.xlu0 %943, %v933
        %v945 = vpop.permute.xlu0 %944
        %v946 = vperm.slane %v854, 7
        %v947 = vlaneseq
        %v948 = vshrl.u32 %v947, 7
        %950 = vset.pattern.permute.xlu0 %v948
        %951 = vperm.xlu0 %950, %v946
        %v952 = vpop.permute.xlu0 %951
        %v953 = vlaneseq
        %v954 = vshrl.u32 %v953, 7
        %v955 = vadd.s32 %v954, 8
        %956 = vset.pattern.permute.xlu0 %v955
        %957 = vperm.xlu0 %956, %v946
        %v958 = vpop.permute.xlu0 %957
        %s959 = scalar_lea.vmem %s545, 48
        %v960 = vld [vmem:[%s959] sm:$0xff]
        %v961 = vperm.slane %v960, 0
        %v962 = vlaneseq
        %v963 = vshrl.u32 %v962, 7
        %965 = vset.pattern.permute.xlu0 %v963
        %966 = vperm.xlu0 %965, %v961
        %v967 = vpop.permute.xlu0 %966
        %v968 = vlaneseq
        %v969 = vshrl.u32 %v968, 7
        %v970 = vadd.s32 %v969, 8
        %971 = vset.pattern.permute.xlu0 %v970
        %972 = vperm.xlu0 %971, %v961
        %v973 = vpop.permute.xlu0 %972
        %v974 = vperm.slane %v960, 1
        %v975 = vlaneseq
        %v976 = vshrl.u32 %v975, 7
        %978 = vset.pattern.permute.xlu0 %v976
        %979 = vperm.xlu0 %978, %v974
        %v980 = vpop.permute.xlu0 %979
        %v981 = vlaneseq
        %v982 = vshrl.u32 %v981, 7
        %v983 = vadd.s32 %v982, 8
        %984 = vset.pattern.permute.xlu0 %v983
        %985 = vperm.xlu0 %984, %v974
        %v986 = vpop.permute.xlu0 %985
        %v987 = vperm.slane %v960, 2
        %v988 = vlaneseq
        %v989 = vshrl.u32 %v988, 7
        %991 = vset.pattern.permute.xlu0 %v989
        %992 = vperm.xlu0 %991, %v987
        %v993 = vpop.permute.xlu0 %992
        %v994 = vlaneseq
        %v995 = vshrl.u32 %v994, 7
        %v996 = vadd.s32 %v995, 8
        %997 = vset.pattern.permute.xlu0 %v996
        %998 = vperm.xlu0 %997, %v987
        %v999 = vpop.permute.xlu0 %998
        %v1000 = vperm.slane %v960, 3
        %v1001 = vlaneseq
        %v1002 = vshrl.u32 %v1001, 7
        %1004 = vset.pattern.permute.xlu0 %v1002
        %1005 = vperm.xlu0 %1004, %v1000
        %v1006 = vpop.permute.xlu0 %1005
        %v1007 = vlaneseq
        %v1008 = vshrl.u32 %v1007, 7
        %v1009 = vadd.s32 %v1008, 8
        %1010 = vset.pattern.permute.xlu0 %v1009
        %1011 = vperm.xlu0 %1010, %v1000
        %v1012 = vpop.permute.xlu0 %1011
        %v1013 = vperm.slane %v960, 4
        %v1014 = vlaneseq
        %v1015 = vshrl.u32 %v1014, 7
        %1017 = vset.pattern.permute.xlu0 %v1015
        %1018 = vperm.xlu0 %1017, %v1013
        %v1019 = vpop.permute.xlu0 %1018
        %v1020 = vlaneseq
        %v1021 = vshrl.u32 %v1020, 7
        %v1022 = vadd.s32 %v1021, 8
        %1023 = vset.pattern.permute.xlu0 %v1022
        %1024 = vperm.xlu0 %1023, %v1013
        %v1025 = vpop.permute.xlu0 %1024
        %v1026 = vperm.slane %v960, 5
        %v1027 = vlaneseq
        %v1028 = vshrl.u32 %v1027, 7
        %1030 = vset.pattern.permute.xlu0 %v1028
        %1031 = vperm.xlu0 %1030, %v1026
        %v1032 = vpop.permute.xlu0 %1031
        %v1033 = vlaneseq
        %v1034 = vshrl.u32 %v1033, 7
        %v1035 = vadd.s32 %v1034, 8
        %1036 = vset.pattern.permute.xlu0 %v1035
        %1037 = vperm.xlu0 %1036, %v1026
        %v1038 = vpop.permute.xlu0 %1037
        %v1039 = vperm.slane %v960, 6
        %v1040 = vlaneseq
        %v1041 = vshrl.u32 %v1040, 7
        %1043 = vset.pattern.permute.xlu0 %v1041
        %1044 = vperm.xlu0 %1043, %v1039
        %v1045 = vpop.permute.xlu0 %1044
        %v1046 = vlaneseq
        %v1047 = vshrl.u32 %v1046, 7
        %v1048 = vadd.s32 %v1047, 8
        %1049 = vset.pattern.permute.xlu0 %v1048
        %1050 = vperm.xlu0 %1049, %v1039
        %v1051 = vpop.permute.xlu0 %1050
        %v1052 = vperm.slane %v960, 7
        %v1053 = vlaneseq
        %v1054 = vshrl.u32 %v1053, 7
        %1056 = vset.pattern.permute.xlu0 %v1054
        %1057 = vperm.xlu0 %1056, %v1052
        %v1058 = vpop.permute.xlu0 %1057
        %v1059 = vlaneseq
        %v1060 = vshrl.u32 %v1059, 7
        %v1061 = vadd.s32 %v1060, 8
        %1062 = vset.pattern.permute.xlu0 %v1061
        %1063 = vperm.xlu0 %1062, %v1052
        %v1064 = vpop.permute.xlu0 %1063
        %v1065 = vlaneseq
        %v1066 = vshrl.u32 %v1065, 7
        %v1067 = vadd.s32 %v1066, 1
        %1068 = vset.pattern.permute.xlu0 %v1067
        %1069 = vperm.xlu0 %1068, %v855
        %v1070 = vpop.permute.xlu0 %1069
        %v1071 = vlaneseq
        %v1072 = vshrl.u32 %v1071, 7
        %v1073 = vadd.s32 %v1072, 9
        %1074 = vset.pattern.permute.xlu0 %v1073
        %1075 = vperm.xlu0 %1074, %v855
        %v1076 = vpop.permute.xlu0 %1075
        %v1077 = vlaneseq
        %v1078 = vshrl.u32 %v1077, 7
        %v1079 = vadd.s32 %v1078, 1
        %1080 = vset.pattern.permute.xlu0 %v1079
        %1081 = vperm.xlu0 %1080, %v868
        %v1082 = vpop.permute.xlu0 %1081
        %v1083 = vlaneseq
        %v1084 = vshrl.u32 %v1083, 7
        %v1085 = vadd.s32 %v1084, 9
        %1086 = vset.pattern.permute.xlu0 %v1085
        %1087 = vperm.xlu0 %1086, %v868
        %v1088 = vpop.permute.xlu0 %1087
        %v1089 = vlaneseq
        %v1090 = vshrl.u32 %v1089, 7
        %v1091 = vadd.s32 %v1090, 1
        %1092 = vset.pattern.permute.xlu0 %v1091
        %1093 = vperm.xlu0 %1092, %v881
        %v1094 = vpop.permute.xlu0 %1093
        %v1095 = vlaneseq
        %v1096 = vshrl.u32 %v1095, 7
        %v1097 = vadd.s32 %v1096, 9
        %1098 = vset.pattern.permute.xlu0 %v1097
        %1099 = vperm.xlu0 %1098, %v881
        %v1100 = vpop.permute.xlu0 %1099
        %v1101 = vlaneseq
        %v1102 = vshrl.u32 %v1101, 7
        %v1103 = vadd.s32 %v1102, 1
        %1104 = vset.pattern.permute.xlu0 %v1103
        %1105 = vperm.xlu0 %1104, %v894
        %v1106 = vpop.permute.xlu0 %1105
        %v1107 = vlaneseq
        %v1108 = vshrl.u32 %v1107, 7
        %v1109 = vadd.s32 %v1108, 9
        %1110 = vset.pattern.permute.xlu0 %v1109
        %1111 = vperm.xlu0 %1110, %v894
        %v1112 = vpop.permute.xlu0 %1111
        %v1113 = vlaneseq
        %v1114 = vshrl.u32 %v1113, 7
        %v1115 = vadd.s32 %v1114, 1
        %1116 = vset.pattern.permute.xlu0 %v1115
        %1117 = vperm.xlu0 %1116, %v907
        %v1118 = vpop.permute.xlu0 %1117
        %v1119 = vlaneseq
        %v1120 = vshrl.u32 %v1119, 7
        %v1121 = vadd.s32 %v1120, 9
        %1122 = vset.pattern.permute.xlu0 %v1121
        %1123 = vperm.xlu0 %1122, %v907
        %v1124 = vpop.permute.xlu0 %1123
        %v1125 = vlaneseq
        %v1126 = vshrl.u32 %v1125, 7
        %v1127 = vadd.s32 %v1126, 1
        %1128 = vset.pattern.permute.xlu0 %v1127
        %1129 = vperm.xlu0 %1128, %v920
        %v1130 = vpop.permute.xlu0 %1129
        %v1131 = vlaneseq
        %v1132 = vshrl.u32 %v1131, 7
        %v1133 = vadd.s32 %v1132, 9
        %1134 = vset.pattern.permute.xlu0 %v1133
        %1135 = vperm.xlu0 %1134, %v920
        %v1136 = vpop.permute.xlu0 %1135
        %v1137 = vlaneseq
        %v1138 = vshrl.u32 %v1137, 7
        %v1139 = vadd.s32 %v1138, 1
        %1140 = vset.pattern.permute.xlu0 %v1139
        %1141 = vperm.xlu0 %1140, %v933
        %v1142 = vpop.permute.xlu0 %1141
        %v1143 = vlaneseq
        %v1144 = vshrl.u32 %v1143, 7
        %v1145 = vadd.s32 %v1144, 9
        %1146 = vset.pattern.permute.xlu0 %v1145
        %1147 = vperm.xlu0 %1146, %v933
        %v1148 = vpop.permute.xlu0 %1147
        %v1149 = vlaneseq
        %v1150 = vshrl.u32 %v1149, 7
        %v1151 = vadd.s32 %v1150, 1
        %1152 = vset.pattern.permute.xlu0 %v1151
        %1153 = vperm.xlu0 %1152, %v946
        %v1154 = vpop.permute.xlu0 %1153
        %v1155 = vlaneseq
        %v1156 = vshrl.u32 %v1155, 7
        %v1157 = vadd.s32 %v1156, 9
        %1158 = vset.pattern.permute.xlu0 %v1157
        %1159 = vperm.xlu0 %1158, %v946
        %v1160 = vpop.permute.xlu0 %1159
        %v1161 = vld [vmem:[%s545 + $0x1] sm:$0xff]
        %v1162 = vperm.slane %v1161, 0
        %v1163 = vlaneseq
        %v1164 = vshrl.u32 %v1163, 7
        %1166 = vset.pattern.permute.xlu0 %v1164
        %1167 = vperm.xlu0 %1166, %v1162
        %v1168 = vpop.permute.xlu0 %1167
        %v1169 = vlaneseq
        %v1170 = vshrl.u32 %v1169, 7
        %v1171 = vadd.s32 %v1170, 8
        %1172 = vset.pattern.permute.xlu0 %v1171
        %1173 = vperm.xlu0 %1172, %v1162
        %v1174 = vpop.permute.xlu0 %1173
        %v1175 = vperm.slane %v1161, 1
        %v1176 = vlaneseq
        %v1177 = vshrl.u32 %v1176, 7
        %1179 = vset.pattern.permute.xlu0 %v1177
        %1180 = vperm.xlu0 %1179, %v1175
        %v1181 = vpop.permute.xlu0 %1180
        %v1182 = vlaneseq
        %v1183 = vshrl.u32 %v1182, 7
        %v1184 = vadd.s32 %v1183, 8
        %1185 = vset.pattern.permute.xlu0 %v1184
        %1186 = vperm.xlu0 %1185, %v1175
        %v1187 = vpop.permute.xlu0 %1186
        %v1188 = vperm.slane %v1161, 2
        %v1189 = vlaneseq
        %v1190 = vshrl.u32 %v1189, 7
        %1192 = vset.pattern.permute.xlu0 %v1190
        %1193 = vperm.xlu0 %1192, %v1188
        %v1194 = vpop.permute.xlu0 %1193
        %v1195 = vlaneseq
        %v1196 = vshrl.u32 %v1195, 7
        %v1197 = vadd.s32 %v1196, 8
        %1198 = vset.pattern.permute.xlu0 %v1197
        %1199 = vperm.xlu0 %1198, %v1188
        %v1200 = vpop.permute.xlu0 %1199
        %v1201 = vperm.slane %v1161, 3
        %v1202 = vlaneseq
        %v1203 = vshrl.u32 %v1202, 7
        %1205 = vset.pattern.permute.xlu0 %v1203
        %1206 = vperm.xlu0 %1205, %v1201
        %v1207 = vpop.permute.xlu0 %1206
        %v1208 = vlaneseq
        %v1209 = vshrl.u32 %v1208, 7
        %v1210 = vadd.s32 %v1209, 8
        %1211 = vset.pattern.permute.xlu0 %v1210
        %1212 = vperm.xlu0 %1211, %v1201
        %v1213 = vpop.permute.xlu0 %1212
        %v1214 = vperm.slane %v1161, 4
        %v1215 = vlaneseq
        %v1216 = vshrl.u32 %v1215, 7
        %1218 = vset.pattern.permute.xlu0 %v1216
        %1219 = vperm.xlu0 %1218, %v1214
        %v1220 = vpop.permute.xlu0 %1219
        %v1221 = vlaneseq
        %v1222 = vshrl.u32 %v1221, 7
        %v1223 = vadd.s32 %v1222, 8
        %1224 = vset.pattern.permute.xlu0 %v1223
        %1225 = vperm.xlu0 %1224, %v1214
        %v1226 = vpop.permute.xlu0 %1225
        %v1227 = vperm.slane %v1161, 5
        %v1228 = vlaneseq
        %v1229 = vshrl.u32 %v1228, 7
        %1231 = vset.pattern.permute.xlu0 %v1229
        %1232 = vperm.xlu0 %1231, %v1227
        %v1233 = vpop.permute.xlu0 %1232
        %v1234 = vlaneseq
        %v1235 = vshrl.u32 %v1234, 7
        %v1236 = vadd.s32 %v1235, 8
        %1237 = vset.pattern.permute.xlu0 %v1236
        %1238 = vperm.xlu0 %1237, %v1227
        %v1239 = vpop.permute.xlu0 %1238
        %v1240 = vperm.slane %v1161, 6
        %v1241 = vlaneseq
        %v1242 = vshrl.u32 %v1241, 7
        %1244 = vset.pattern.permute.xlu0 %v1242
        %1245 = vperm.xlu0 %1244, %v1240
        %v1246 = vpop.permute.xlu0 %1245
        %v1247 = vlaneseq
        %v1248 = vshrl.u32 %v1247, 7
        %v1249 = vadd.s32 %v1248, 8
        %1250 = vset.pattern.permute.xlu0 %v1249
        %1251 = vperm.xlu0 %1250, %v1240
        %v1252 = vpop.permute.xlu0 %1251
        %v1253 = vperm.slane %v1161, 7
        %v1254 = vlaneseq
        %v1255 = vshrl.u32 %v1254, 7
        %1257 = vset.pattern.permute.xlu0 %v1255
        %1258 = vperm.xlu0 %1257, %v1253
        %v1259 = vpop.permute.xlu0 %1258
        %v1260 = vlaneseq
        %v1261 = vshrl.u32 %v1260, 7
        %v1262 = vadd.s32 %v1261, 8
        %1263 = vset.pattern.permute.xlu0 %v1262
        %1264 = vperm.xlu0 %1263, %v1253
        %v1265 = vpop.permute.xlu0 %1264
        %v1266 = vld [vmem:[%s651 + $0x1] sm:$0xff]
        %v1267 = vperm.slane %v1266, 0
        %v1268 = vlaneseq
        %v1269 = vshrl.u32 %v1268, 7
        %1271 = vset.pattern.permute.xlu0 %v1269
        %1272 = vperm.xlu0 %1271, %v1267
        %v1273 = vpop.permute.xlu0 %1272
        %v1274 = vlaneseq
        %v1275 = vshrl.u32 %v1274, 7
        %v1276 = vadd.s32 %v1275, 8
        %1277 = vset.pattern.permute.xlu0 %v1276
        %1278 = vperm.xlu0 %1277, %v1267
        %v1279 = vpop.permute.xlu0 %1278
        %v1280 = vperm.slane %v1266, 1
        %v1281 = vlaneseq
        %v1282 = vshrl.u32 %v1281, 7
        %1284 = vset.pattern.permute.xlu0 %v1282
        %1285 = vperm.xlu0 %1284, %v1280
        %v1286 = vpop.permute.xlu0 %1285
        %v1287 = vlaneseq
        %v1288 = vshrl.u32 %v1287, 7
        %v1289 = vadd.s32 %v1288, 8
        %1290 = vset.pattern.permute.xlu0 %v1289
        %1291 = vperm.xlu0 %1290, %v1280
        %v1292 = vpop.permute.xlu0 %1291
        %v1293 = vperm.slane %v1266, 2
        %v1294 = vlaneseq
        %v1295 = vshrl.u32 %v1294, 7
        %1297 = vset.pattern.permute.xlu0 %v1295
        %1298 = vperm.xlu0 %1297, %v1293
        %v1299 = vpop.permute.xlu0 %1298
        %v1300 = vlaneseq
        %v1301 = vshrl.u32 %v1300, 7
        %v1302 = vadd.s32 %v1301, 8
        %1303 = vset.pattern.permute.xlu0 %v1302
        %1304 = vperm.xlu0 %1303, %v1293
        %v1305 = vpop.permute.xlu0 %1304
        %v1306 = vperm.slane %v1266, 3
        %v1307 = vlaneseq
        %v1308 = vshrl.u32 %v1307, 7
        %1310 = vset.pattern.permute.xlu0 %v1308
        %1311 = vperm.xlu0 %1310, %v1306
        %v1312 = vpop.permute.xlu0 %1311
        %v1313 = vlaneseq
        %v1314 = vshrl.u32 %v1313, 7
        %v1315 = vadd.s32 %v1314, 8
        %1316 = vset.pattern.permute.xlu0 %v1315
        %1317 = vperm.xlu0 %1316, %v1306
        %v1318 = vpop.permute.xlu0 %1317
        %v1319 = vperm.slane %v1266, 4
        %v1320 = vlaneseq
        %v1321 = vshrl.u32 %v1320, 7
        %1323 = vset.pattern.permute.xlu0 %v1321
        %1324 = vperm.xlu0 %1323, %v1319
        %v1325 = vpop.permute.xlu0 %1324
        %v1326 = vlaneseq
        %v1327 = vshrl.u32 %v1326, 7
        %v1328 = vadd.s32 %v1327, 8
        %1329 = vset.pattern.permute.xlu0 %v1328
        %1330 = vperm.xlu0 %1329, %v1319
        %v1331 = vpop.permute.xlu0 %1330
        %v1332 = vperm.slane %v1266, 5
        %v1333 = vlaneseq
        %v1334 = vshrl.u32 %v1333, 7
        %1336 = vset.pattern.permute.xlu0 %v1334
        %1337 = vperm.xlu0 %1336, %v1332
        %v1338 = vpop.permute.xlu0 %1337
        %v1339 = vlaneseq
        %v1340 = vshrl.u32 %v1339, 7
        %v1341 = vadd.s32 %v1340, 8
        %1342 = vset.pattern.permute.xlu0 %v1341
        %1343 = vperm.xlu0 %1342, %v1332
        %v1344 = vpop.permute.xlu0 %1343
        %v1345 = vperm.slane %v1266, 6
        %v1346 = vlaneseq
        %v1347 = vshrl.u32 %v1346, 7
        %1349 = vset.pattern.permute.xlu0 %v1347
        %1350 = vperm.xlu0 %1349, %v1345
        %v1351 = vpop.permute.xlu0 %1350
        %v1352 = vlaneseq
        %v1353 = vshrl.u32 %v1352, 7
        %v1354 = vadd.s32 %v1353, 8
        %1355 = vset.pattern.permute.xlu0 %v1354
        %1356 = vperm.xlu0 %1355, %v1345
        %v1357 = vpop.permute.xlu0 %1356
        %v1358 = vperm.slane %v1266, 7
        %v1359 = vlaneseq
        %v1360 = vshrl.u32 %v1359, 7
        %1362 = vset.pattern.permute.xlu0 %v1360
        %1363 = vperm.xlu0 %1362, %v1358
        %v1364 = vpop.permute.xlu0 %1363
        %v1365 = vlaneseq
        %v1366 = vshrl.u32 %v1365, 7
        %v1367 = vadd.s32 %v1366, 8
        %1368 = vset.pattern.permute.xlu0 %v1367
        %1369 = vperm.xlu0 %1368, %v1358
        %v1370 = vpop.permute.xlu0 %1369
        %v1371 = vlaneseq
        %v1372 = vshrl.u32 %v1371, 7
        %v1373 = vadd.s32 %v1372, 1
        %1374 = vset.pattern.permute.xlu0 %v1373
        %1375 = vperm.xlu0 %1374, %v1162
        %v1376 = vpop.permute.xlu0 %1375
        %v1377 = vlaneseq
        %v1378 = vshrl.u32 %v1377, 7
        %v1379 = vadd.s32 %v1378, 9
        %1380 = vset.pattern.permute.xlu0 %v1379
        %1381 = vperm.xlu0 %1380, %v1162
        %v1382 = vpop.permute.xlu0 %1381
        %v1383 = vlaneseq
        %v1384 = vshrl.u32 %v1383, 7
        %v1385 = vadd.s32 %v1384, 1
        %1386 = vset.pattern.permute.xlu0 %v1385
        %1387 = vperm.xlu0 %1386, %v1175
        %v1388 = vpop.permute.xlu0 %1387
        %v1389 = vlaneseq
        %v1390 = vshrl.u32 %v1389, 7
        %v1391 = vadd.s32 %v1390, 9
        %1392 = vset.pattern.permute.xlu0 %v1391
        %1393 = vperm.xlu0 %1392, %v1175
        %v1394 = vpop.permute.xlu0 %1393
        %v1395 = vlaneseq
        %v1396 = vshrl.u32 %v1395, 7
        %v1397 = vadd.s32 %v1396, 1
        %1398 = vset.pattern.permute.xlu0 %v1397
        %1399 = vperm.xlu0 %1398, %v1188
        %v1400 = vpop.permute.xlu0 %1399
        %v1401 = vlaneseq
        %v1402 = vshrl.u32 %v1401, 7
        %v1403 = vadd.s32 %v1402, 9
        %1404 = vset.pattern.permute.xlu0 %v1403
        %1405 = vperm.xlu0 %1404, %v1188
        %v1406 = vpop.permute.xlu0 %1405
        %v1407 = vlaneseq
        %v1408 = vshrl.u32 %v1407, 7
        %v1409 = vadd.s32 %v1408, 1
        %1410 = vset.pattern.permute.xlu0 %v1409
        %1411 = vperm.xlu0 %1410, %v1201
        %v1412 = vpop.permute.xlu0 %1411
        %v1413 = vlaneseq
        %v1414 = vshrl.u32 %v1413, 7
        %v1415 = vadd.s32 %v1414, 9
        %1416 = vset.pattern.permute.xlu0 %v1415
        %1417 = vperm.xlu0 %1416, %v1201
        %v1418 = vpop.permute.xlu0 %1417
        %v1419 = vlaneseq
        %v1420 = vshrl.u32 %v1419, 7
        %v1421 = vadd.s32 %v1420, 1
        %1422 = vset.pattern.permute.xlu0 %v1421
        %1423 = vperm.xlu0 %1422, %v1214
        %v1424 = vpop.permute.xlu0 %1423
        %v1425 = vlaneseq
        %v1426 = vshrl.u32 %v1425, 7
        %v1427 = vadd.s32 %v1426, 9
        %1428 = vset.pattern.permute.xlu0 %v1427
        %1429 = vperm.xlu0 %1428, %v1214
        %v1430 = vpop.permute.xlu0 %1429
        %v1431 = vlaneseq
        %v1432 = vshrl.u32 %v1431, 7
        %v1433 = vadd.s32 %v1432, 1
        %1434 = vset.pattern.permute.xlu0 %v1433
        %1435 = vperm.xlu0 %1434, %v1227
        %v1436 = vpop.permute.xlu0 %1435
        %v1437 = vlaneseq
        %v1438 = vshrl.u32 %v1437, 7
        %v1439 = vadd.s32 %v1438, 9
        %1440 = vset.pattern.permute.xlu0 %v1439
        %1441 = vperm.xlu0 %1440, %v1227
        %v1442 = vpop.permute.xlu0 %1441
        %v1443 = vlaneseq
        %v1444 = vshrl.u32 %v1443, 7
        %v1445 = vadd.s32 %v1444, 1
        %1446 = vset.pattern.permute.xlu0 %v1445
        %1447 = vperm.xlu0 %1446, %v1240
        %v1448 = vpop.permute.xlu0 %1447
        %v1449 = vlaneseq
        %v1450 = vshrl.u32 %v1449, 7
        %v1451 = vadd.s32 %v1450, 9
        %1452 = vset.pattern.permute.xlu0 %v1451
        %1453 = vperm.xlu0 %1452, %v1240
        %v1454 = vpop.permute.xlu0 %1453
        %v1455 = vlaneseq
        %v1456 = vshrl.u32 %v1455, 7
        %v1457 = vadd.s32 %v1456, 1
        %1458 = vset.pattern.permute.xlu0 %v1457
        %1459 = vperm.xlu0 %1458, %v1253
        %v1460 = vpop.permute.xlu0 %1459
        %v1461 = vlaneseq
        %v1462 = vshrl.u32 %v1461, 7
        %v1463 = vadd.s32 %v1462, 9
        %1464 = vset.pattern.permute.xlu0 %v1463
        %1465 = vperm.xlu0 %1464, %v1253
        %v1466 = vpop.permute.xlu0 %1465
        %vm1467 = vcmask 7168
        %v1468 = vsel %vm1467, %v553, %v659
        %v1469 = vsel %vm1467, %v559, %v665
        %v1470 = vsel %vm1467, %v566, %v672
        %v1471 = vsel %vm1467, %v572, %v678
        %v1472 = vsel %vm1467, %v579, %v685
        %v1473 = vsel %vm1467, %v585, %v691
        %v1474 = vsel %vm1467, %v592, %v698
        %v1475 = vsel %vm1467, %v598, %v704
        %v1476 = vsel %vm1467, %v605, %v711
        %v1477 = vsel %vm1467, %v611, %v717
        %v1478 = vsel %vm1467, %v618, %v724
        %v1479 = vsel %vm1467, %v624, %v730
        %v1480 = vsel %vm1467, %v631, %v737
        %v1481 = vsel %vm1467, %v637, %v743
        %v1482 = vsel %vm1467, %v644, %v750
        %v1483 = vsel %vm1467, %v650, %v756
        %vm1484 = vcmask 15360
        %v1485 = vsel %vm1484, %v1468, %v762
        %v1486 = vsel %vm1484, %v1469, %v768
        %v1487 = vsel %vm1484, %v1470, %v774
        %v1488 = vsel %vm1484, %v1471, %v780
        %v1489 = vsel %vm1484, %v1472, %v786
        %v1490 = vsel %vm1484, %v1473, %v792
        %v1491 = vsel %vm1484, %v1474, %v798
        %v1492 = vsel %vm1484, %v1475, %v804
        %v1493 = vsel %vm1484, %v1476, %v810
        %v1494 = vsel %vm1484, %v1477, %v816
        %v1495 = vsel %vm1484, %v1478, %v822
        %v1496 = vsel %vm1484, %v1479, %v828
        %v1497 = vsel %vm1484, %v1480, %v834
        %v1498 = vsel %vm1484, %v1481, %v840
        %v1499 = vsel %vm1484, %v1482, %v846
        %v1500 = vsel %vm1484, %v1483, %v852
        %vm1501 = vcmask 23552
        %v1502 = vsel %vm1501, %v1485, %v861
        %v1503 = vsel %vm1501, %v1486, %v867
        %v1504 = vsel %vm1501, %v1487, %v874
        %v1505 = vsel %vm1501, %v1488, %v880
        %v1506 = vsel %vm1501, %v1489, %v887
        %v1507 = vsel %vm1501, %v1490, %v893
        %v1508 = vsel %vm1501, %v1491, %v900
        %v1509 = vsel %vm1501, %v1492, %v906
        %v1510 = vsel %vm1501, %v1493, %v913
        %v1511 = vsel %vm1501, %v1494, %v919
        %v1512 = vsel %vm1501, %v1495, %v926
        %v1513 = vsel %vm1501, %v1496, %v932
        %v1514 = vsel %vm1501, %v1497, %v939
        %v1515 = vsel %vm1501, %v1498, %v945
        %v1516 = vsel %vm1501, %v1499, %v952
        %v1517 = vsel %vm1501, %v1500, %v958
        %vm1518 = vcmask 31744
        %v1519 = vsel %vm1518, %v1502, %v967
        %v1520 = vsel %vm1518, %v1503, %v973
        %v1521 = vsel %vm1518, %v1504, %v980
        %v1522 = vsel %vm1518, %v1505, %v986
        %v1523 = vsel %vm1518, %v1506, %v993
        %v1524 = vsel %vm1518, %v1507, %v999
        %v1525 = vsel %vm1518, %v1508, %v1006
        %v1526 = vsel %vm1518, %v1509, %v1012
        %v1527 = vsel %vm1518, %v1510, %v1019
        %v1528 = vsel %vm1518, %v1511, %v1025
        %v1529 = vsel %vm1518, %v1512, %v1032
        %v1530 = vsel %vm1518, %v1513, %v1038
        %v1531 = vsel %vm1518, %v1514, %v1045
        %v1532 = vsel %vm1518, %v1515, %v1051
        %v1533 = vsel %vm1518, %v1516, %v1058
        %v1534 = vsel %vm1518, %v1517, %v1064
        %vm1535 = vcmask 39936
        %v1536 = vsel %vm1535, %v1519, %v1070
        %v1537 = vsel %vm1535, %v1520, %v1076
        %v1538 = vsel %vm1535, %v1521, %v1082
        %v1539 = vsel %vm1535, %v1522, %v1088
        %v1540 = vsel %vm1535, %v1523, %v1094
        %v1541 = vsel %vm1535, %v1524, %v1100
        %v1542 = vsel %vm1535, %v1525, %v1106
        %v1543 = vsel %vm1535, %v1526, %v1112
        %v1544 = vsel %vm1535, %v1527, %v1118
        %v1545 = vsel %vm1535, %v1528, %v1124
        %v1546 = vsel %vm1535, %v1529, %v1130
        %v1547 = vsel %vm1535, %v1530, %v1136
        %v1548 = vsel %vm1535, %v1531, %v1142
        %v1549 = vsel %vm1535, %v1532, %v1148
        %v1550 = vsel %vm1535, %v1533, %v1154
        %v1551 = vsel %vm1535, %v1534, %v1160
        %vm1552 = vcmask 48128
        %v1553 = vsel %vm1552, %v1536, %v1168
        %v1554 = vsel %vm1552, %v1537, %v1174
        %v1555 = vsel %vm1552, %v1538, %v1181
        %v1556 = vsel %vm1552, %v1539, %v1187
        %v1557 = vsel %vm1552, %v1540, %v1194
        %v1558 = vsel %vm1552, %v1541, %v1200
        %v1559 = vsel %vm1552, %v1542, %v1207
        %v1560 = vsel %vm1552, %v1543, %v1213
        %v1561 = vsel %vm1552, %v1544, %v1220
        %v1562 = vsel %vm1552, %v1545, %v1226
        %v1563 = vsel %vm1552, %v1546, %v1233
        %v1564 = vsel %vm1552, %v1547, %v1239
        %v1565 = vsel %vm1552, %v1548, %v1246
        %v1566 = vsel %vm1552, %v1549, %v1252
        %v1567 = vsel %vm1552, %v1550, %v1259
        %v1568 = vsel %vm1552, %v1551, %v1265
        %vm1569 = vcmask 56320
        %v1570 = vsel %vm1569, %v1553, %v1273
        %v1571 = vsel %vm1569, %v1554, %v1279
        %v1572 = vsel %vm1569, %v1555, %v1286
        %v1573 = vsel %vm1569, %v1556, %v1292
        %v1574 = vsel %vm1569, %v1557, %v1299
        %v1575 = vsel %vm1569, %v1558, %v1305
        %v1576 = vsel %vm1569, %v1559, %v1312
        %v1577 = vsel %vm1569, %v1560, %v1318
        %v1578 = vsel %vm1569, %v1561, %v1325
        %v1579 = vsel %vm1569, %v1562, %v1331
        %v1580 = vsel %vm1569, %v1563, %v1338
        %v1581 = vsel %vm1569, %v1564, %v1344
        %v1582 = vsel %vm1569, %v1565, %v1351
        %v1583 = vsel %vm1569, %v1566, %v1357
        %v1584 = vsel %vm1569, %v1567, %v1364
        %v1585 = vsel %vm1569, %v1568, %v1370
        %vm1586 = vcmask 64512
        %v1587 = vsel %vm1586, %v1570, %v1376
        %v1588 = vsel %vm1586, %v1571, %v1382
        %v1589 = vsel %vm1586, %v1572, %v1388
        %v1590 = vsel %vm1586, %v1573, %v1394
        %v1591 = vsel %vm1586, %v1574, %v1400
        %v1592 = vsel %vm1586, %v1575, %v1406
        %v1593 = vsel %vm1586, %v1576, %v1412
        %v1594 = vsel %vm1586, %v1577, %v1418
        %v1595 = vsel %vm1586, %v1578, %v1424
        %v1596 = vsel %vm1586, %v1579, %v1430
        %v1597 = vsel %vm1586, %v1580, %v1436
        %v1598 = vsel %vm1586, %v1581, %v1442
        %v1599 = vsel %vm1586, %v1582, %v1448
        %v1600 = vsel %vm1586, %v1583, %v1454
        %v1601 = vsel %vm1586, %v1584, %v1460
        %v1602 = vsel %vm1586, %v1585, %v1466
        %v1603 = vld [vmem:[%s1] sm:$0xff]
        %v1604 = vld [vmem:[%s1 + $0x8] sm:$0x1]
        %v1605 = vld [vmem:[%s2] sm:$0x1]
        %v1607 = vperm.slane %v1605, 0
        %vm1609 = vcmask 72704
        %v1611 = vsel %vm1609, %v1587, 0
        %v1614 = vsel %vm1609, %v1588, 0
        %v1617 = vsel %vm1609, %v1589, 0
        %v1620 = vsel %vm1609, %v1590, 0
        %v1623 = vsel %vm1609, %v1591, 0
        %v1626 = vsel %vm1609, %v1592, 0
        %v1629 = vsel %vm1609, %v1593, 0
        %v1632 = vsel %vm1609, %v1594, 0
        %v1635 = vsel %vm1609, %v1595, 0
        %v1638 = vsel %vm1609, %v1596, 0
        %v1641 = vsel %vm1609, %v1597, 0
        %v1644 = vsel %vm1609, %v1598, 0
        %v1647 = vsel %vm1609, %v1599, 0
        %v1650 = vsel %vm1609, %v1600, 0
        %v1653 = vsel %vm1609, %v1601, 0
        %v1656 = vsel %vm1609, %v1602, 0
        %vm1658 = vcmask 1040384
        %v1660 = vsel %vm1658, %v1604, 0
        %1662 = vmatpush.msra.mxu0 0.0
        %1663 = vmatpush.msra.mxu0 0.0
        %1664 = vmatpush.msra.mxu0 0.0
        %1665 = vmatpush.msra.mxu0 0.0
        %1666 = vmatpush.msra.mxu0 0.0
        %1667 = vmatpush.msra.mxu0 0.0
        %1668 = vmatpush.msra.mxu0 0.0
        %1669 = vmatpush.msra.mxu0 0.0
        %1670 = vmatpush.msra.mxu0 0.0
        %1671 = vmatpush.msra.mxu0 0.0
        %1672 = vmatpush.msra.mxu0 0.0
        %1673 = vmatpush.msra.mxu0 0.0
        %1674 = vmatpush.msra.mxu0 0.0
        %1675 = vmatpush.msra.mxu0 0.0
        %1676 = vmatpush.msra.mxu0 %v1660
        %1677 = vmatpush.msra.mxu0 %v1603
        %1678 = vmatmul.f32.gmra.mxu0 %v1611
        %v1679 = vpop.f32.mrf.mxu0
        %v1680 = vadd.f32 %v1607, %v1679
        %1681 = vmatmul.f32.gmra.mxu0 %v1614
        %v1682 = vpop.f32.mrf.mxu0
        %v1683 = vadd.f32 %v1607, %v1682
        %1684 = vmatmul.f32.gmra.mxu0 %v1617
        %v1685 = vpop.f32.mrf.mxu0
        %v1686 = vadd.f32 %v1607, %v1685
        %1687 = vmatmul.f32.gmra.mxu0 %v1620
        %v1688 = vpop.f32.mrf.mxu0
        %v1689 = vadd.f32 %v1607, %v1688
        %1690 = vmatmul.f32.gmra.mxu0 %v1623
        %v1691 = vpop.f32.mrf.mxu0
        %v1692 = vadd.f32 %v1607, %v1691
        %1693 = vmatmul.f32.gmra.mxu0 %v1626
        %v1694 = vpop.f32.mrf.mxu0
        %v1695 = vadd.f32 %v1607, %v1694
        %1696 = vmatmul.f32.gmra.mxu0 %v1629
        %v1697 = vpop.f32.mrf.mxu0
        %v1698 = vadd.f32 %v1607, %v1697
        %1699 = vmatmul.f32.gmra.mxu0 %v1632
        %v1700 = vpop.f32.mrf.mxu0
        %v1701 = vadd.f32 %v1607, %v1700
        %1702 = vmatmul.f32.gmra.mxu0 %v1635
        %v1703 = vpop.f32.mrf.mxu0
        %v1704 = vadd.f32 %v1607, %v1703
        %1705 = vmatmul.f32.gmra.mxu0 %v1638
        %v1706 = vpop.f32.mrf.mxu0
        %v1707 = vadd.f32 %v1607, %v1706
        %1708 = vmatmul.f32.gmra.mxu0 %v1641
        %v1709 = vpop.f32.mrf.mxu0
        %v1710 = vadd.f32 %v1607, %v1709
        %1711 = vmatmul.f32.gmra.mxu0 %v1644
        %v1712 = vpop.f32.mrf.mxu0
        %v1713 = vadd.f32 %v1607, %v1712
        %1714 = vmatmul.f32.gmra.mxu0 %v1647
        %v1715 = vpop.f32.mrf.mxu0
        %v1716 = vadd.f32 %v1607, %v1715
        %1717 = vmatmul.f32.gmra.mxu0 %v1650
        %v1718 = vpop.f32.mrf.mxu0
        %v1719 = vadd.f32 %v1607, %v1718
        %1720 = vmatmul.f32.gmra.mxu0 %v1653
        %v1721 = vpop.f32.mrf.mxu0
        %v1722 = vadd.f32 %v1607, %v1721
        %1723 = vmatmul.f32.gmra.mxu0 %v1656
        %v1724 = vpop.f32.mrf.mxu0
        %v1725 = vadd.f32 %v1607, %v1724
        %1726 = vdwg.mxu0
        %v1727 = vmul.f32 %v1680, 0.5
        %v1728 = vmul.f32 %v1683, 0.5
        %v1729 = vmul.f32 %v1686, 0.5
        %v1730 = vmul.f32 %v1689, 0.5
        %v1731 = vmul.f32 %v1692, 0.5
        %v1732 = vmul.f32 %v1695, 0.5
        %v1733 = vmul.f32 %v1698, 0.5
        %v1734 = vmul.f32 %v1701, 0.5
        %v1735 = vmul.f32 %v1704, 0.5
        %v1736 = vmul.f32 %v1707, 0.5
        %v1737 = vmul.f32 %v1710, 0.5
        %v1738 = vmul.f32 %v1713, 0.5
        %v1739 = vmul.f32 %v1716, 0.5
        %v1740 = vmul.f32 %v1719, 0.5
        %v1741 = vmul.f32 %v1722, 0.5
        %v1742 = vmul.f32 %v1725, 0.5
        %v1743 = vtanh.pop %v1727
        %v1744 = vtanh.pop %v1728
        %v1745 = vtanh.pop %v1729
        %v1746 = vtanh.pop %v1730
        %v1747 = vtanh.pop %v1731
        %v1748 = vtanh.pop %v1732
        %v1749 = vtanh.pop %v1733
        %v1750 = vtanh.pop %v1734
        %v1751 = vtanh.pop %v1735
        %v1752 = vtanh.pop %v1736
        %v1753 = vtanh.pop %v1737
        %v1754 = vtanh.pop %v1738
        %v1755 = vtanh.pop %v1739
        %v1756 = vtanh.pop %v1740
        %v1757 = vtanh.pop %v1741
        %v1758 = vtanh.pop %v1742
        %v1759 = vmul.f32 %v1743, 0.5
        %v1760 = vmul.f32 %v1744, 0.5
        %v1761 = vmul.f32 %v1745, 0.5
        %v1762 = vmul.f32 %v1746, 0.5
        %v1763 = vmul.f32 %v1747, 0.5
        %v1764 = vmul.f32 %v1748, 0.5
        %v1765 = vmul.f32 %v1749, 0.5
        %v1766 = vmul.f32 %v1750, 0.5
        %v1767 = vmul.f32 %v1751, 0.5
        %v1768 = vmul.f32 %v1752, 0.5
        %v1769 = vmul.f32 %v1753, 0.5
        %v1770 = vmul.f32 %v1754, 0.5
        %v1771 = vmul.f32 %v1755, 0.5
        %v1772 = vmul.f32 %v1756, 0.5
        %v1773 = vmul.f32 %v1757, 0.5
        %v1774 = vmul.f32 %v1758, 0.5
        %v1775 = vadd.f32 %v1759, 0.5
        %v1776 = vadd.f32 %v1760, 0.5
        %v1777 = vadd.f32 %v1761, 0.5
        %v1778 = vadd.f32 %v1762, 0.5
        %v1779 = vadd.f32 %v1763, 0.5
        %v1780 = vadd.f32 %v1764, 0.5
        %v1781 = vadd.f32 %v1765, 0.5
        %v1782 = vadd.f32 %v1766, 0.5
        %v1783 = vadd.f32 %v1767, 0.5
        %v1784 = vadd.f32 %v1768, 0.5
        %v1785 = vadd.f32 %v1769, 0.5
        %v1786 = vadd.f32 %v1770, 0.5
        %v1787 = vadd.f32 %v1771, 0.5
        %v1788 = vadd.f32 %v1772, 0.5
        %v1789 = vadd.f32 %v1773, 0.5
        %v1790 = vadd.f32 %v1774, 0.5
        %v1791 = vmul.f32 %v1680, %v1775
        %v1792 = vmul.f32 %v1683, %v1776
        %v1793 = vmul.f32 %v1686, %v1777
        %v1794 = vmul.f32 %v1689, %v1778
        %v1795 = vmul.f32 %v1692, %v1779
        %v1796 = vmul.f32 %v1695, %v1780
        %v1797 = vmul.f32 %v1698, %v1781
        %v1798 = vmul.f32 %v1701, %v1782
        %v1799 = vmul.f32 %v1704, %v1783
        %v1800 = vmul.f32 %v1707, %v1784
        %v1801 = vmul.f32 %v1710, %v1785
        %v1802 = vmul.f32 %v1713, %v1786
        %v1803 = vmul.f32 %v1716, %v1787
        %v1804 = vmul.f32 %v1719, %v1788
        %v1805 = vmul.f32 %v1722, %v1789
        %v1806 = vmul.f32 %v1725, %v1790
        %v1807 = vld [vmem:[%s3] sm:$0xff]
        %v1808 = vld [vmem:[%s3 + $0x8] sm:$0xff]
        %v1809 = vld [vmem:[%s3 + $0x10] sm:$0xff]
        %v1810 = vld [vmem:[%s3 + $0x18] sm:$0xff]
        %v1811 = vld [vmem:[%s4] sm:$0x1]
        %v1813 = vperm.slane %v1811, 0
        %vm1815 = vcmask 261120
        %v1817 = vsel %vm1815, %v1791, 0
        %v1820 = vsel %vm1815, %v1792, 0
        %v1823 = vsel %vm1815, %v1793, 0
        %v1826 = vsel %vm1815, %v1794, 0
        %v1829 = vsel %vm1815, %v1795, 0
        %v1832 = vsel %vm1815, %v1796, 0
        %v1835 = vsel %vm1815, %v1797, 0
        %v1838 = vsel %vm1815, %v1798, 0
        %v1841 = vsel %vm1815, %v1799, 0
        %v1844 = vsel %vm1815, %v1800, 0
        %v1847 = vsel %vm1815, %v1801, 0
        %v1850 = vsel %vm1815, %v1802, 0
        %v1853 = vsel %vm1815, %v1803, 0
        %v1856 = vsel %vm1815, %v1804, 0
        %v1859 = vsel %vm1815, %v1805, 0
        %v1862 = vsel %vm1815, %v1806, 0
        %1864 = vmatpush.msra.mxu0 0.0
        %1865 = vmatpush.msra.mxu0 0.0
        %1866 = vmatpush.msra.mxu0 0.0
        %1867 = vmatpush.msra.mxu0 0.0
        %1868 = vmatpush.msra.mxu0 0.0
        %1869 = vmatpush.msra.mxu0 0.0
        %1870 = vmatpush.msra.mxu0 0.0
        %1871 = vmatpush.msra.mxu0 0.0
        %1872 = vmatpush.msra.mxu0 0.0
        %1873 = vmatpush.msra.mxu0 0.0
        %1874 = vmatpush.msra.mxu0 0.0
        %1875 = vmatpush.msra.mxu0 0.0
        %1876 = vmatpush.msra.mxu0 %v1810
        %1877 = vmatpush.msra.mxu0 %v1809
        %1878 = vmatpush.msra.mxu0 %v1808
        %1879 = vmatpush.msra.mxu0 %v1807
        %1880 = vmatmul.f32.gmra.mxu0 %v1817
        %v1881 = vpop.f32.mrf.mxu0
        %v1882 = vadd.f32 %v1813, %v1881
        %1883 = vmatmul.f32.gmra.mxu0 %v1820
        %v1884 = vpop.f32.mrf.mxu0
        %v1885 = vadd.f32 %v1813, %v1884
        %1886 = vmatmul.f32.gmra.mxu0 %v1823
        %v1887 = vpop.f32.mrf.mxu0
        %v1888 = vadd.f32 %v1813, %v1887
        %1889 = vmatmul.f32.gmra.mxu0 %v1826
        %v1890 = vpop.f32.mrf.mxu0
        %v1891 = vadd.f32 %v1813, %v1890
        %1892 = vmatmul.f32.gmra.mxu0 %v1829
        %v1893 = vpop.f32.mrf.mxu0
        %v1894 = vadd.f32 %v1813, %v1893
        %1895 = vmatmul.f32.gmra.mxu0 %v1832
        %v1896 = vpop.f32.mrf.mxu0
        %v1897 = vadd.f32 %v1813, %v1896
        %1898 = vmatmul.f32.gmra.mxu0 %v1835
        %v1899 = vpop.f32.mrf.mxu0
        %v1900 = vadd.f32 %v1813, %v1899
        %1901 = vmatmul.f32.gmra.mxu0 %v1838
        %v1902 = vpop.f32.mrf.mxu0
        %v1903 = vadd.f32 %v1813, %v1902
        %1904 = vmatmul.f32.gmra.mxu0 %v1841
        %v1905 = vpop.f32.mrf.mxu0
        %v1906 = vadd.f32 %v1813, %v1905
        %1907 = vmatmul.f32.gmra.mxu0 %v1844
        %v1908 = vpop.f32.mrf.mxu0
        %v1909 = vadd.f32 %v1813, %v1908
        %1910 = vmatmul.f32.gmra.mxu0 %v1847
        %v1911 = vpop.f32.mrf.mxu0
        %v1912 = vadd.f32 %v1813, %v1911
        %1913 = vmatmul.f32.gmra.mxu0 %v1850
        %v1914 = vpop.f32.mrf.mxu0
        %v1915 = vadd.f32 %v1813, %v1914
        %1916 = vmatmul.f32.gmra.mxu0 %v1853
        %v1917 = vpop.f32.mrf.mxu0
        %v1918 = vadd.f32 %v1813, %v1917
        %1919 = vmatmul.f32.gmra.mxu0 %v1856
        %v1920 = vpop.f32.mrf.mxu0
        %v1921 = vadd.f32 %v1813, %v1920
        %1922 = vmatmul.f32.gmra.mxu0 %v1859
        %v1923 = vpop.f32.mrf.mxu0
        %v1924 = vadd.f32 %v1813, %v1923
        %1925 = vmatmul.f32.gmra.mxu0 %v1862
        %v1926 = vpop.f32.mrf.mxu0
        %v1927 = vadd.f32 %v1813, %v1926
        %1928 = vdwg.mxu0
        %v1929 = vmul.f32 %v1882, 0.5
        %v1930 = vmul.f32 %v1885, 0.5
        %v1931 = vmul.f32 %v1888, 0.5
        %v1932 = vmul.f32 %v1891, 0.5
        %v1933 = vmul.f32 %v1894, 0.5
        %v1934 = vmul.f32 %v1897, 0.5
        %v1935 = vmul.f32 %v1900, 0.5
        %v1936 = vmul.f32 %v1903, 0.5
        %v1937 = vmul.f32 %v1906, 0.5
        %v1938 = vmul.f32 %v1909, 0.5
        %v1939 = vmul.f32 %v1912, 0.5
        %v1940 = vmul.f32 %v1915, 0.5
        %v1941 = vmul.f32 %v1918, 0.5
        %v1942 = vmul.f32 %v1921, 0.5
        %v1943 = vmul.f32 %v1924, 0.5
        %v1944 = vmul.f32 %v1927, 0.5
        %v1945 = vtanh.pop %v1929
        %v1946 = vtanh.pop %v1930
        %v1947 = vtanh.pop %v1931
        %v1948 = vtanh.pop %v1932
        %v1949 = vtanh.pop %v1933
        %v1950 = vtanh.pop %v1934
        %v1951 = vtanh.pop %v1935
        %v1952 = vtanh.pop %v1936
        %v1953 = vtanh.pop %v1937
        %v1954 = vtanh.pop %v1938
        %v1955 = vtanh.pop %v1939
        %v1956 = vtanh.pop %v1940
        %v1957 = vtanh.pop %v1941
        %v1958 = vtanh.pop %v1942
        %v1959 = vtanh.pop %v1943
        %v1960 = vtanh.pop %v1944
        %v1961 = vmul.f32 %v1945, 0.5
        %v1962 = vmul.f32 %v1946, 0.5
        %v1963 = vmul.f32 %v1947, 0.5
        %v1964 = vmul.f32 %v1948, 0.5
        %v1965 = vmul.f32 %v1949, 0.5
        %v1966 = vmul.f32 %v1950, 0.5
        %v1967 = vmul.f32 %v1951, 0.5
        %v1968 = vmul.f32 %v1952, 0.5
        %v1969 = vmul.f32 %v1953, 0.5
        %v1970 = vmul.f32 %v1954, 0.5
        %v1971 = vmul.f32 %v1955, 0.5
        %v1972 = vmul.f32 %v1956, 0.5
        %v1973 = vmul.f32 %v1957, 0.5
        %v1974 = vmul.f32 %v1958, 0.5
        %v1975 = vmul.f32 %v1959, 0.5
        %v1976 = vmul.f32 %v1960, 0.5
        %v1977 = vadd.f32 %v1961, 0.5
        %v1978 = vadd.f32 %v1962, 0.5
        %v1979 = vadd.f32 %v1963, 0.5
        %v1980 = vadd.f32 %v1964, 0.5
        %v1981 = vadd.f32 %v1965, 0.5
        %v1982 = vadd.f32 %v1966, 0.5
        %v1983 = vadd.f32 %v1967, 0.5
        %v1984 = vadd.f32 %v1968, 0.5
        %v1985 = vadd.f32 %v1969, 0.5
        %v1986 = vadd.f32 %v1970, 0.5
        %v1987 = vadd.f32 %v1971, 0.5
        %v1988 = vadd.f32 %v1972, 0.5
        %v1989 = vadd.f32 %v1973, 0.5
        %v1990 = vadd.f32 %v1974, 0.5
        %v1991 = vadd.f32 %v1975, 0.5
        %v1992 = vadd.f32 %v1976, 0.5
        %v1993 = vmul.f32 %v1882, %v1977
        %v1994 = vmul.f32 %v1885, %v1978
        %v1995 = vmul.f32 %v1888, %v1979
        %v1996 = vmul.f32 %v1891, %v1980
        %v1997 = vmul.f32 %v1894, %v1981
        %v1998 = vmul.f32 %v1897, %v1982
        %v1999 = vmul.f32 %v1900, %v1983
        %v2000 = vmul.f32 %v1903, %v1984
        %v2001 = vmul.f32 %v1906, %v1985
        %v2002 = vmul.f32 %v1909, %v1986
        %v2003 = vmul.f32 %v1912, %v1987
        %v2004 = vmul.f32 %v1915, %v1988
        %v2005 = vmul.f32 %v1918, %v1989
        %v2006 = vmul.f32 %v1921, %v1990
        %v2007 = vmul.f32 %v1924, %v1991
        %v2008 = vmul.f32 %v1927, %v1992
        %vm2009 = vcmask 523264
        %2010 = vst.msk [vmem:[#allocation2] sm:$0xff] %vm2009, 0.0
        %2011 = vst.msk [vmem:[#allocation2 + $0x8] sm:$0xff] %vm2009, 0.0
        %vm2012 = vcmask 517120
        %2013 = vst.msk [vmem:[#allocation2 + $0x10] sm:$0x3] %vm2012, 0.0
        %s2014 = scalar_lea.vmem [#allocation2], 216
        %2015 = vst.msk [vmem:[%s2014] sm:$0xff] %vm2009, 0.0
        %2016 = vst.msk [vmem:[%s2014 + $0x8] sm:$0xff] %vm2009, 0.0
        %2017 = vst.msk [vmem:[%s2014 + $0x10] sm:$0x3] %vm2012, 0.0
        %vm2018 = vcmask 516096
        %2019 = vst.msk [vmem:[#allocation2] sm:$0x1] %vm2018, 0.0
        %2020 = vst.msk [vmem:[#allocation2 + $0x18] sm:$0x1] %vm2018, 0.0
        %2021 = vst.msk [vmem:[#allocation2 + $0x30] sm:$0x1] %vm2018, 0.0
        %2022 = vst.msk [vmem:[#allocation2 + $0x48] sm:$0x1] %vm2018, 0.0
        %2023 = vst.msk [vmem:[#allocation2 + $0x60] sm:$0x1] %vm2018, 0.0
        %2024 = vst.msk [vmem:[#allocation2 + $0x78] sm:$0x1] %vm2018, 0.0
        %2025 = vst.msk [vmem:[#allocation2 + $0x90] sm:$0x1] %vm2018, 0.0
        %2026 = vst.msk [vmem:[#allocation2 + $0xa8] sm:$0x1] %vm2018, 0.0
        %2027 = vst.msk [vmem:[#allocation2 + $0xc0] sm:$0x1] %vm2018, 0.0
        %2028 = vst.msk [vmem:[#allocation2 + $0xd8] sm:$0x1] %vm2018, 0.0
        %2029 = vst.msk [vmem:[#allocation2 + $0x11] sm:$0x1] %vm2018, 0.0
        %2030 = vst.msk [vmem:[#allocation2 + $0x29] sm:$0x1] %vm2018, 0.0
        %2031 = vst.msk [vmem:[#allocation2 + $0x41] sm:$0x1] %vm2018, 0.0
        %2032 = vst.msk [vmem:[#allocation2 + $0x59] sm:$0x1] %vm2018, 0.0
        %2033 = vst.msk [vmem:[#allocation2 + $0x71] sm:$0x1] %vm2018, 0.0
        %2034 = vst.msk [vmem:[#allocation2 + $0x89] sm:$0x1] %vm2018, 0.0
        %2035 = vst.msk [vmem:[#allocation2 + $0xa1] sm:$0x1] %vm2018, 0.0
        %2036 = vst.msk [vmem:[#allocation2 + $0xb9] sm:$0x1] %vm2018, 0.0
        %2037 = vst.msk [vmem:[#allocation2 + $0xd1] sm:$0x1] %vm2018, 0.0
        %2038 = vst.msk [vmem:[#allocation2 + $0xe9] sm:$0x1] %vm2018, 0.0
        %s2039 = scalar_lea.vmem [#allocation2], 24
        %2040 = vst.msk [vmem:[%s2039 + $0x1] sm:$0xff] %vm2009, %v1993
        %2041 = vst.msk [vmem:[%s2039 + $0x9] sm:$0xff] %vm2009, %v1994
        %2042 = vst.msk [vmem:[%s2039 + $0x19] sm:$0xff] %vm2009, %v1995
        %2043 = vst.msk [vmem:[%s2039 + $0x21] sm:$0xff] %vm2009, %v1996
        %2044 = vst.msk [vmem:[%s2039 + $0x31] sm:$0xff] %vm2009, %v1997
        %2045 = vst.msk [vmem:[%s2039 + $0x39] sm:$0xff] %vm2009, %v1998
        %2046 = vst.msk [vmem:[%s2039 + $0x49] sm:$0xff] %vm2009, %v1999
        %2047 = vst.msk [vmem:[%s2039 + $0x51] sm:$0xff] %vm2009, %v2000
        %2048 = vst.msk [vmem:[%s2039 + $0x61] sm:$0xff] %vm2009, %v2001
        %2049 = vst.msk [vmem:[%s2039 + $0x69] sm:$0xff] %vm2009, %v2002
        %2050 = vst.msk [vmem:[%s2039 + $0x79] sm:$0xff] %vm2009, %v2003
        %2051 = vst.msk [vmem:[%s2039 + $0x81] sm:$0xff] %vm2009, %v2004
        %2052 = vst.msk [vmem:[%s2039 + $0x91] sm:$0xff] %vm2009, %v2005
        %2053 = vst.msk [vmem:[%s2039 + $0x99] sm:$0xff] %vm2009, %v2006
        %2054 = vst.msk [vmem:[%s2039 + $0xa9] sm:$0xff] %vm2009, %v2007
        %2055 = vst.msk [vmem:[%s2039 + $0xb1] sm:$0xff] %vm2009, %v2008
        %v2056 = vld [vmem:[#allocation2] sm:$0xff]
        %v2057 = vld [vmem:[#allocation2 + $0x8] sm:$0xff]
        %v2058 = vld [vmem:[#allocation2 + $0x18] sm:$0xff]
        %v2059 = vld [vmem:[#allocation2 + $0x20] sm:$0xff]
        %v2060 = vld [vmem:[#allocation2 + $0x30] sm:$0xff]
        %v2061 = vld [vmem:[#allocation2 + $0x38] sm:$0xff]
        %v2062 = vld [vmem:[#allocation2 + $0x48] sm:$0xff]
        %v2063 = vld [vmem:[#allocation2 + $0x50] sm:$0xff]
        %v2064 = vld [vmem:[#allocation2 + $0x60] sm:$0xff]
        %v2065 = vld [vmem:[#allocation2 + $0x68] sm:$0xff]
        %v2066 = vld [vmem:[#allocation2 + $0x78] sm:$0xff]
        %v2067 = vld [vmem:[#allocation2 + $0x80] sm:$0xff]
        %v2068 = vld [vmem:[#allocation2 + $0x90] sm:$0xff]
        %v2069 = vld [vmem:[#allocation2 + $0x98] sm:$0xff]
        %v2070 = vld [vmem:[#allocation2 + $0xa8] sm:$0xff]
        %v2071 = vld [vmem:[#allocation2 + $0xb0] sm:$0xff]
        %v2072 = vld [vmem:[%s5] sm:$0x1]
        %v2073 = vperm.slane %v2072, 0
        %v2074 = vmul.f32 %v2056, %v2073
        %v2075 = vmul.f32 %v2057, %v2073
        %v2076 = vmul.f32 %v2058, %v2073
        %v2077 = vmul.f32 %v2059, %v2073
        %v2078 = vmul.f32 %v2060, %v2073
        %v2079 = vmul.f32 %v2061, %v2073
        %v2080 = vmul.f32 %v2062, %v2073
        %v2081 = vmul.f32 %v2063, %v2073
        %v2082 = vmul.f32 %v2064, %v2073
        %v2083 = vmul.f32 %v2065, %v2073
        %v2084 = vmul.f32 %v2066, %v2073
        %v2085 = vmul.f32 %v2067, %v2073
        %v2086 = vmul.f32 %v2068, %v2073
        %v2087 = vmul.f32 %v2069, %v2073
        %v2088 = vmul.f32 %v2070, %v2073
        %v2089 = vmul.f32 %v2071, %v2073
        %v2090 = vadd.f32 %v2074, 0.0
        %v2091 = vadd.f32 %v2075, 0.0
        %v2092 = vadd.f32 %v2076, 0.0
        %v2093 = vadd.f32 %v2077, 0.0
        %v2094 = vadd.f32 %v2078, 0.0
        %v2095 = vadd.f32 %v2079, 0.0
        %v2096 = vadd.f32 %v2080, 0.0
        %v2097 = vadd.f32 %v2081, 0.0
        %v2098 = vadd.f32 %v2082, 0.0
        %v2099 = vadd.f32 %v2083, 0.0
        %v2100 = vadd.f32 %v2084, 0.0
        %v2101 = vadd.f32 %v2085, 0.0
        %v2102 = vadd.f32 %v2086, 0.0
        %v2103 = vadd.f32 %v2087, 0.0
        %v2104 = vadd.f32 %v2088, 0.0
        %v2105 = vadd.f32 %v2089, 0.0
        %v2106 = vld [vmem:[#allocation2 + $0x1] sm:$0xff]
        %v2107 = vld [vmem:[#allocation2 + $0x9] sm:$0xff]
        %v2108 = vld [vmem:[#allocation2 + $0x19] sm:$0xff]
        %v2109 = vld [vmem:[#allocation2 + $0x21] sm:$0xff]
        %v2110 = vld [vmem:[#allocation2 + $0x31] sm:$0xff]
        %v2111 = vld [vmem:[#allocation2 + $0x39] sm:$0xff]
        %v2112 = vld [vmem:[#allocation2 + $0x49] sm:$0xff]
        %v2113 = vld [vmem:[#allocation2 + $0x51] sm:$0xff]
        %v2114 = vld [vmem:[#allocation2 + $0x61] sm:$0xff]
        %v2115 = vld [vmem:[#allocation2 + $0x69] sm:$0xff]
        %v2116 = vld [vmem:[#allocation2 + $0x79] sm:$0xff]
        %v2117 = vld [vmem:[#allocation2 + $0x81] sm:$0xff]
        %v2118 = vld [vmem:[#allocation2 + $0x91] sm:$0xff]
        %v2119 = vld [vmem:[#allocation2 + $0x99] sm:$0xff]
        %v2120 = vld [vmem:[#allocation2 + $0xa9] sm:$0xff]
        %v2121 = vld [vmem:[#allocation2 + $0xb1] sm:$0xff]
        %v2122 = vld [vmem:[%s5 + $0x1] sm:$0x1]
        %v2123 = vperm.slane %v2122, 0
        %v2124 = vmul.f32 %v2106, %v2123
        %v2125 = vmul.f32 %v2107, %v2123
        %v2126 = vmul.f32 %v2108, %v2123
        %v2127 = vmul.f32 %v2109, %v2123
        %v2128 = vmul.f32 %v2110, %v2123
        %v2129 = vmul.f32 %v2111, %v2123
        %v2130 = vmul.f32 %v2112, %v2123
        %v2131 = vmul.f32 %v2113, %v2123
        %v2132 = vmul.f32 %v2114, %v2123
        %v2133 = vmul.f32 %v2115, %v2123
        %v2134 = vmul.f32 %v2116, %v2123
        %v2135 = vmul.f32 %v2117, %v2123
        %v2136 = vmul.f32 %v2118, %v2123
        %v2137 = vmul.f32 %v2119, %v2123
        %v2138 = vmul.f32 %v2120, %v2123
        %v2139 = vmul.f32 %v2121, %v2123
        %v2140 = vadd.f32 %v2090, %v2124
        %v2141 = vadd.f32 %v2091, %v2125
        %v2142 = vadd.f32 %v2092, %v2126
        %v2143 = vadd.f32 %v2093, %v2127
        %v2144 = vadd.f32 %v2094, %v2128
        %v2145 = vadd.f32 %v2095, %v2129
        %v2146 = vadd.f32 %v2096, %v2130
        %v2147 = vadd.f32 %v2097, %v2131
        %v2148 = vadd.f32 %v2098, %v2132
        %v2149 = vadd.f32 %v2099, %v2133
        %v2150 = vadd.f32 %v2100, %v2134
        %v2151 = vadd.f32 %v2101, %v2135
        %v2152 = vadd.f32 %v2102, %v2136
        %v2153 = vadd.f32 %v2103, %v2137
        %v2154 = vadd.f32 %v2104, %v2138
        %v2155 = vadd.f32 %v2105, %v2139
        %v2156 = vld [vmem:[#allocation2 + $0x2] sm:$0xff]
        %v2157 = vld [vmem:[#allocation2 + $0xa] sm:$0xff]
        %v2158 = vld [vmem:[#allocation2 + $0x1a] sm:$0xff]
        %v2159 = vld [vmem:[#allocation2 + $0x22] sm:$0xff]
        %v2160 = vld [vmem:[#allocation2 + $0x32] sm:$0xff]
        %v2161 = vld [vmem:[#allocation2 + $0x3a] sm:$0xff]
        %v2162 = vld [vmem:[#allocation2 + $0x4a] sm:$0xff]
        %v2163 = vld [vmem:[#allocation2 + $0x52] sm:$0xff]
        %v2164 = vld [vmem:[#allocation2 + $0x62] sm:$0xff]
        %v2165 = vld [vmem:[#allocation2 + $0x6a] sm:$0xff]
        %v2166 = vld [vmem:[#allocation2 + $0x7a] sm:$0xff]
        %v2167 = vld [vmem:[#allocation2 + $0x82] sm:$0xff]
        %v2168 = vld [vmem:[#allocation2 + $0x92] sm:$0xff]
        %v2169 = vld [vmem:[#allocation2 + $0x9a] sm:$0xff]
        %v2170 = vld [vmem:[#allocation2 + $0xaa] sm:$0xff]
        %v2171 = vld [vmem:[#allocation2 + $0xb2] sm:$0xff]
        %v2172 = vld [vmem:[%s5 + $0x2] sm:$0x1]
        %v2173 = vperm.slane %v2172, 0
        %v2174 = vmul.f32 %v2156, %v2173
        %v2175 = vmul.f32 %v2157, %v2173
        %v2176 = vmul.f32 %v2158, %v2173
        %v2177 = vmul.f32 %v2159, %v2173
        %v2178 = vmul.f32 %v2160, %v2173
        %v2179 = vmul.f32 %v2161, %v2173
        %v2180 = vmul.f32 %v2162, %v2173
        %v2181 = vmul.f32 %v2163, %v2173
        %v2182 = vmul.f32 %v2164, %v2173
        %v2183 = vmul.f32 %v2165, %v2173
        %v2184 = vmul.f32 %v2166, %v2173
        %v2185 = vmul.f32 %v2167, %v2173
        %v2186 = vmul.f32 %v2168, %v2173
        %v2187 = vmul.f32 %v2169, %v2173
        %v2188 = vmul.f32 %v2170, %v2173
        %v2189 = vmul.f32 %v2171, %v2173
        %v2190 = vadd.f32 %v2140, %v2174
        %v2191 = vadd.f32 %v2141, %v2175
        %v2192 = vadd.f32 %v2142, %v2176
        %v2193 = vadd.f32 %v2143, %v2177
        %v2194 = vadd.f32 %v2144, %v2178
        %v2195 = vadd.f32 %v2145, %v2179
        %v2196 = vadd.f32 %v2146, %v2180
        %v2197 = vadd.f32 %v2147, %v2181
        %v2198 = vadd.f32 %v2148, %v2182
        %v2199 = vadd.f32 %v2149, %v2183
        %v2200 = vadd.f32 %v2150, %v2184
        %v2201 = vadd.f32 %v2151, %v2185
        %v2202 = vadd.f32 %v2152, %v2186
        %v2203 = vadd.f32 %v2153, %v2187
        %v2204 = vadd.f32 %v2154, %v2188
        %v2205 = vadd.f32 %v2155, %v2189
        %v2206 = vld [vmem:[%s2039] sm:$0xff]
        %v2207 = vld [vmem:[%s2039 + $0x8] sm:$0xff]
        %v2208 = vld [vmem:[%s2039 + $0x18] sm:$0xff]
        %v2209 = vld [vmem:[%s2039 + $0x20] sm:$0xff]
        %v2210 = vld [vmem:[%s2039 + $0x30] sm:$0xff]
        %v2211 = vld [vmem:[%s2039 + $0x38] sm:$0xff]
        %v2212 = vld [vmem:[%s2039 + $0x48] sm:$0xff]
        %v2213 = vld [vmem:[%s2039 + $0x50] sm:$0xff]
        %v2214 = vld [vmem:[%s2039 + $0x60] sm:$0xff]
        %v2215 = vld [vmem:[%s2039 + $0x68] sm:$0xff]
        %v2216 = vld [vmem:[%s2039 + $0x78] sm:$0xff]
        %v2217 = vld [vmem:[%s2039 + $0x80] sm:$0xff]
        %v2218 = vld [vmem:[%s2039 + $0x90] sm:$0xff]
        %v2219 = vld [vmem:[%s2039 + $0x98] sm:$0xff]
        %v2220 = vld [vmem:[%s2039 + $0xa8] sm:$0xff]
        %v2221 = vld [vmem:[%s2039 + $0xb0] sm:$0xff]
        %v2222 = vld [vmem:[%s5 + $0x3] sm:$0x1]
        %v2223 = vperm.slane %v2222, 0
        %v2224 = vmul.f32 %v2206, %v2223
        %v2225 = vmul.f32 %v2207, %v2223
        %v2226 = vmul.f32 %v2208, %v2223
        %v2227 = vmul.f32 %v2209, %v2223
        %v2228 = vmul.f32 %v2210, %v2223
        %v2229 = vmul.f32 %v2211, %v2223
        %v2230 = vmul.f32 %v2212, %v2223
        %v2231 = vmul.f32 %v2213, %v2223
        %v2232 = vmul.f32 %v2214, %v2223
        %v2233 = vmul.f32 %v2215, %v2223
        %v2234 = vmul.f32 %v2216, %v2223
        %v2235 = vmul.f32 %v2217, %v2223
        %v2236 = vmul.f32 %v2218, %v2223
        %v2237 = vmul.f32 %v2219, %v2223
        %v2238 = vmul.f32 %v2220, %v2223
        %v2239 = vmul.f32 %v2221, %v2223
        %v2240 = vadd.f32 %v2190, %v2224
        %v2241 = vadd.f32 %v2191, %v2225
        %v2242 = vadd.f32 %v2192, %v2226
        %v2243 = vadd.f32 %v2193, %v2227
        %v2244 = vadd.f32 %v2194, %v2228
        %v2245 = vadd.f32 %v2195, %v2229
        %v2246 = vadd.f32 %v2196, %v2230
        %v2247 = vadd.f32 %v2197, %v2231
        %v2248 = vadd.f32 %v2198, %v2232
        %v2249 = vadd.f32 %v2199, %v2233
        %v2250 = vadd.f32 %v2200, %v2234
        %v2251 = vadd.f32 %v2201, %v2235
        %v2252 = vadd.f32 %v2202, %v2236
        %v2253 = vadd.f32 %v2203, %v2237
        %v2254 = vadd.f32 %v2204, %v2238
        %v2255 = vadd.f32 %v2205, %v2239
        %v2256 = vld [vmem:[%s2039 + $0x1] sm:$0xff]
        %v2257 = vld [vmem:[%s2039 + $0x9] sm:$0xff]
        %v2258 = vld [vmem:[%s2039 + $0x19] sm:$0xff]
        %v2259 = vld [vmem:[%s2039 + $0x21] sm:$0xff]
        %v2260 = vld [vmem:[%s2039 + $0x31] sm:$0xff]
        %v2261 = vld [vmem:[%s2039 + $0x39] sm:$0xff]
        %v2262 = vld [vmem:[%s2039 + $0x49] sm:$0xff]
        %v2263 = vld [vmem:[%s2039 + $0x51] sm:$0xff]
        %v2264 = vld [vmem:[%s2039 + $0x61] sm:$0xff]
        %v2265 = vld [vmem:[%s2039 + $0x69] sm:$0xff]
        %v2266 = vld [vmem:[%s2039 + $0x79] sm:$0xff]
        %v2267 = vld [vmem:[%s2039 + $0x81] sm:$0xff]
        %v2268 = vld [vmem:[%s2039 + $0x91] sm:$0xff]
        %v2269 = vld [vmem:[%s2039 + $0x99] sm:$0xff]
        %v2270 = vld [vmem:[%s2039 + $0xa9] sm:$0xff]
        %v2271 = vld [vmem:[%s2039 + $0xb1] sm:$0xff]
        %v2272 = vld [vmem:[%s5 + $0x4] sm:$0x1]
        %v2273 = vperm.slane %v2272, 0
        %v2274 = vmul.f32 %v2256, %v2273
        %v2275 = vmul.f32 %v2257, %v2273
        %v2276 = vmul.f32 %v2258, %v2273
        %v2277 = vmul.f32 %v2259, %v2273
        %v2278 = vmul.f32 %v2260, %v2273
        %v2279 = vmul.f32 %v2261, %v2273
        %v2280 = vmul.f32 %v2262, %v2273
        %v2281 = vmul.f32 %v2263, %v2273
        %v2282 = vmul.f32 %v2264, %v2273
        %v2283 = vmul.f32 %v2265, %v2273
        %v2284 = vmul.f32 %v2266, %v2273
        %v2285 = vmul.f32 %v2267, %v2273
        %v2286 = vmul.f32 %v2268, %v2273
        %v2287 = vmul.f32 %v2269, %v2273
        %v2288 = vmul.f32 %v2270, %v2273
        %v2289 = vmul.f32 %v2271, %v2273
        %v2290 = vadd.f32 %v2240, %v2274
        %v2291 = vadd.f32 %v2241, %v2275
        %v2292 = vadd.f32 %v2242, %v2276
        %v2293 = vadd.f32 %v2243, %v2277
        %v2294 = vadd.f32 %v2244, %v2278
        %v2295 = vadd.f32 %v2245, %v2279
        %v2296 = vadd.f32 %v2246, %v2280
        %v2297 = vadd.f32 %v2247, %v2281
        %v2298 = vadd.f32 %v2248, %v2282
        %v2299 = vadd.f32 %v2249, %v2283
        %v2300 = vadd.f32 %v2250, %v2284
        %v2301 = vadd.f32 %v2251, %v2285
        %v2302 = vadd.f32 %v2252, %v2286
        %v2303 = vadd.f32 %v2253, %v2287
        %v2304 = vadd.f32 %v2254, %v2288
        %v2305 = vadd.f32 %v2255, %v2289
        %v2306 = vld [vmem:[%s2039 + $0x2] sm:$0xff]
        %v2307 = vld [vmem:[%s2039 + $0xa] sm:$0xff]
        %v2308 = vld [vmem:[%s2039 + $0x1a] sm:$0xff]
        %v2309 = vld [vmem:[%s2039 + $0x22] sm:$0xff]
        %v2310 = vld [vmem:[%s2039 + $0x32] sm:$0xff]
        %v2311 = vld [vmem:[%s2039 + $0x3a] sm:$0xff]
        %v2312 = vld [vmem:[%s2039 + $0x4a] sm:$0xff]
        %v2313 = vld [vmem:[%s2039 + $0x52] sm:$0xff]
        %v2314 = vld [vmem:[%s2039 + $0x62] sm:$0xff]
        %v2315 = vld [vmem:[%s2039 + $0x6a] sm:$0xff]
        %v2316 = vld [vmem:[%s2039 + $0x7a] sm:$0xff]
        %v2317 = vld [vmem:[%s2039 + $0x82] sm:$0xff]
        %v2318 = vld [vmem:[%s2039 + $0x92] sm:$0xff]
        %v2319 = vld [vmem:[%s2039 + $0x9a] sm:$0xff]
        %v2320 = vld [vmem:[%s2039 + $0xaa] sm:$0xff]
        %v2321 = vld [vmem:[%s2039 + $0xb2] sm:$0xff]
        %v2322 = vld [vmem:[%s5 + $0x5] sm:$0x1]
        %v2323 = vperm.slane %v2322, 0
        %v2324 = vmul.f32 %v2306, %v2323
        %v2325 = vmul.f32 %v2307, %v2323
        %v2326 = vmul.f32 %v2308, %v2323
        %v2327 = vmul.f32 %v2309, %v2323
        %v2328 = vmul.f32 %v2310, %v2323
        %v2329 = vmul.f32 %v2311, %v2323
        %v2330 = vmul.f32 %v2312, %v2323
        %v2331 = vmul.f32 %v2313, %v2323
        %v2332 = vmul.f32 %v2314, %v2323
        %v2333 = vmul.f32 %v2315, %v2323
        %v2334 = vmul.f32 %v2316, %v2323
        %v2335 = vmul.f32 %v2317, %v2323
        %v2336 = vmul.f32 %v2318, %v2323
        %v2337 = vmul.f32 %v2319, %v2323
        %v2338 = vmul.f32 %v2320, %v2323
        %v2339 = vmul.f32 %v2321, %v2323
        %v2340 = vadd.f32 %v2290, %v2324
        %v2341 = vadd.f32 %v2291, %v2325
        %v2342 = vadd.f32 %v2292, %v2326
        %v2343 = vadd.f32 %v2293, %v2327
        %v2344 = vadd.f32 %v2294, %v2328
        %v2345 = vadd.f32 %v2295, %v2329
        %v2346 = vadd.f32 %v2296, %v2330
        %v2347 = vadd.f32 %v2297, %v2331
        %v2348 = vadd.f32 %v2298, %v2332
        %v2349 = vadd.f32 %v2299, %v2333
        %v2350 = vadd.f32 %v2300, %v2334
        %v2351 = vadd.f32 %v2301, %v2335
        %v2352 = vadd.f32 %v2302, %v2336
        %v2353 = vadd.f32 %v2303, %v2337
        %v2354 = vadd.f32 %v2304, %v2338
        %v2355 = vadd.f32 %v2305, %v2339
        %s2356 = scalar_lea.vmem [#allocation2], 48
        %v2357 = vld [vmem:[%s2356] sm:$0xff]
        %v2358 = vld [vmem:[%s2356 + $0x8] sm:$0xff]
        %v2359 = vld [vmem:[%s2356 + $0x18] sm:$0xff]
        %v2360 = vld [vmem:[%s2356 + $0x20] sm:$0xff]
        %v2361 = vld [vmem:[%s2356 + $0x30] sm:$0xff]
        %v2362 = vld [vmem:[%s2356 + $0x38] sm:$0xff]
        %v2363 = vld [vmem:[%s2356 + $0x48] sm:$0xff]
        %v2364 = vld [vmem:[%s2356 + $0x50] sm:$0xff]
        %v2365 = vld [vmem:[%s2356 + $0x60] sm:$0xff]
        %v2366 = vld [vmem:[%s2356 + $0x68] sm:$0xff]
        %v2367 = vld [vmem:[%s2356 + $0x78] sm:$0xff]
        %v2368 = vld [vmem:[%s2356 + $0x80] sm:$0xff]
        %v2369 = vld [vmem:[%s2356 + $0x90] sm:$0xff]
        %v2370 = vld [vmem:[%s2356 + $0x98] sm:$0xff]
        %v2371 = vld [vmem:[%s2356 + $0xa8] sm:$0xff]
        %v2372 = vld [vmem:[%s2356 + $0xb0] sm:$0xff]
        %v2373 = vld [vmem:[%s5 + $0x6] sm:$0x1]
        %v2374 = vperm.slane %v2373, 0
        %v2375 = vmul.f32 %v2357, %v2374
        %v2376 = vmul.f32 %v2358, %v2374
        %v2377 = vmul.f32 %v2359, %v2374
        %v2378 = vmul.f32 %v2360, %v2374
        %v2379 = vmul.f32 %v2361, %v2374
        %v2380 = vmul.f32 %v2362, %v2374
        %v2381 = vmul.f32 %v2363, %v2374
        %v2382 = vmul.f32 %v2364, %v2374
        %v2383 = vmul.f32 %v2365, %v2374
        %v2384 = vmul.f32 %v2366, %v2374
        %v2385 = vmul.f32 %v2367, %v2374
        %v2386 = vmul.f32 %v2368, %v2374
        %v2387 = vmul.f32 %v2369, %v2374
        %v2388 = vmul.f32 %v2370, %v2374
        %v2389 = vmul.f32 %v2371, %v2374
        %v2390 = vmul.f32 %v2372, %v2374
        %v2391 = vadd.f32 %v2340, %v2375
        %v2392 = vadd.f32 %v2341, %v2376
        %v2393 = vadd.f32 %v2342, %v2377
        %v2394 = vadd.f32 %v2343, %v2378
        %v2395 = vadd.f32 %v2344, %v2379
        %v2396 = vadd.f32 %v2345, %v2380
        %v2397 = vadd.f32 %v2346, %v2381
        %v2398 = vadd.f32 %v2347, %v2382
        %v2399 = vadd.f32 %v2348, %v2383
        %v2400 = vadd.f32 %v2349, %v2384
        %v2401 = vadd.f32 %v2350, %v2385
        %v2402 = vadd.f32 %v2351, %v2386
        %v2403 = vadd.f32 %v2352, %v2387
        %v2404 = vadd.f32 %v2353, %v2388
        %v2405 = vadd.f32 %v2354, %v2389
        %v2406 = vadd.f32 %v2355, %v2390
        %v2407 = vld [vmem:[%s2356 + $0x1] sm:$0xff]
        %v2408 = vld [vmem:[%s2356 + $0x9] sm:$0xff]
        %v2409 = vld [vmem:[%s2356 + $0x19] sm:$0xff]
        %v2410 = vld [vmem:[%s2356 + $0x21] sm:$0xff]
        %v2411 = vld [vmem:[%s2356 + $0x31] sm:$0xff]
        %v2412 = vld [vmem:[%s2356 + $0x39] sm:$0xff]
        %v2413 = vld [vmem:[%s2356 + $0x49] sm:$0xff]
        %v2414 = vld [vmem:[%s2356 + $0x51] sm:$0xff]
        %v2415 = vld [vmem:[%s2356 + $0x61] sm:$0xff]
        %v2416 = vld [vmem:[%s2356 + $0x69] sm:$0xff]
        %v2417 = vld [vmem:[%s2356 + $0x79] sm:$0xff]
        %v2418 = vld [vmem:[%s2356 + $0x81] sm:$0xff]
        %v2419 = vld [vmem:[%s2356 + $0x91] sm:$0xff]
        %v2420 = vld [vmem:[%s2356 + $0x99] sm:$0xff]
        %v2421 = vld [vmem:[%s2356 + $0xa9] sm:$0xff]
        %v2422 = vld [vmem:[%s2356 + $0xb1] sm:$0xff]
        %v2423 = vld [vmem:[%s5 + $0x7] sm:$0x1]
        %v2424 = vperm.slane %v2423, 0
        %v2425 = vmul.f32 %v2407, %v2424
        %v2426 = vmul.f32 %v2408, %v2424
        %v2427 = vmul.f32 %v2409, %v2424
        %v2428 = vmul.f32 %v2410, %v2424
        %v2429 = vmul.f32 %v2411, %v2424
        %v2430 = vmul.f32 %v2412, %v2424
        %v2431 = vmul.f32 %v2413, %v2424
        %v2432 = vmul.f32 %v2414, %v2424
        %v2433 = vmul.f32 %v2415, %v2424
        %v2434 = vmul.f32 %v2416, %v2424
        %v2435 = vmul.f32 %v2417, %v2424
        %v2436 = vmul.f32 %v2418, %v2424
        %v2437 = vmul.f32 %v2419, %v2424
        %v2438 = vmul.f32 %v2420, %v2424
        %v2439 = vmul.f32 %v2421, %v2424
        %v2440 = vmul.f32 %v2422, %v2424
        %v2441 = vadd.f32 %v2391, %v2425
        %v2442 = vadd.f32 %v2392, %v2426
        %v2443 = vadd.f32 %v2393, %v2427
        %v2444 = vadd.f32 %v2394, %v2428
        %v2445 = vadd.f32 %v2395, %v2429
        %v2446 = vadd.f32 %v2396, %v2430
        %v2447 = vadd.f32 %v2397, %v2431
        %v2448 = vadd.f32 %v2398, %v2432
        %v2449 = vadd.f32 %v2399, %v2433
        %v2450 = vadd.f32 %v2400, %v2434
        %v2451 = vadd.f32 %v2401, %v2435
        %v2452 = vadd.f32 %v2402, %v2436
        %v2453 = vadd.f32 %v2403, %v2437
        %v2454 = vadd.f32 %v2404, %v2438
        %v2455 = vadd.f32 %v2405, %v2439
        %v2456 = vadd.f32 %v2406, %v2440
        %v2457 = vld [vmem:[%s2356 + $0x2] sm:$0xff]
        %v2458 = vld [vmem:[%s2356 + $0xa] sm:$0xff]
        %v2459 = vld [vmem:[%s2356 + $0x1a] sm:$0xff]
        %v2460 = vld [vmem:[%s2356 + $0x22] sm:$0xff]
        %v2461 = vld [vmem:[%s2356 + $0x32] sm:$0xff]
        %v2462 = vld [vmem:[%s2356 + $0x3a] sm:$0xff]
        %v2463 = vld [vmem:[%s2356 + $0x4a] sm:$0xff]
        %v2464 = vld [vmem:[%s2356 + $0x52] sm:$0xff]
        %v2465 = vld [vmem:[%s2356 + $0x62] sm:$0xff]
        %v2466 = vld [vmem:[%s2356 + $0x6a] sm:$0xff]
        %v2467 = vld [vmem:[%s2356 + $0x7a] sm:$0xff]
        %v2468 = vld [vmem:[%s2356 + $0x82] sm:$0xff]
        %v2469 = vld [vmem:[%s2356 + $0x92] sm:$0xff]
        %v2470 = vld [vmem:[%s2356 + $0x9a] sm:$0xff]
        %v2471 = vld [vmem:[%s2356 + $0xaa] sm:$0xff]
        %v2472 = vld [vmem:[%s2356 + $0xb2] sm:$0xff]
        %v2473 = vld [vmem:[%s5 + $0x8] sm:$0x1]
        %v2474 = vperm.slane %v2473, 0
        %v2475 = vmul.f32 %v2457, %v2474
        %v2476 = vmul.f32 %v2458, %v2474
        %v2477 = vmul.f32 %v2459, %v2474
        %v2478 = vmul.f32 %v2460, %v2474
        %v2479 = vmul.f32 %v2461, %v2474
        %v2480 = vmul.f32 %v2462, %v2474
        %v2481 = vmul.f32 %v2463, %v2474
        %v2482 = vmul.f32 %v2464, %v2474
        %v2483 = vmul.f32 %v2465, %v2474
        %v2484 = vmul.f32 %v2466, %v2474
        %v2485 = vmul.f32 %v2467, %v2474
        %v2486 = vmul.f32 %v2468, %v2474
        %v2487 = vmul.f32 %v2469, %v2474
        %v2488 = vmul.f32 %v2470, %v2474
        %v2489 = vmul.f32 %v2471, %v2474
        %v2490 = vmul.f32 %v2472, %v2474
        %v2491 = vadd.f32 %v2441, %v2475
        %v2492 = vadd.f32 %v2442, %v2476
        %v2493 = vadd.f32 %v2443, %v2477
        %v2494 = vadd.f32 %v2444, %v2478
        %v2495 = vadd.f32 %v2445, %v2479
        %v2496 = vadd.f32 %v2446, %v2480
        %v2497 = vadd.f32 %v2447, %v2481
        %v2498 = vadd.f32 %v2448, %v2482
        %v2499 = vadd.f32 %v2449, %v2483
        %v2500 = vadd.f32 %v2450, %v2484
        %v2501 = vadd.f32 %v2451, %v2485
        %v2502 = vadd.f32 %v2452, %v2486
        %v2503 = vadd.f32 %v2453, %v2487
        %v2504 = vadd.f32 %v2454, %v2488
        %v2505 = vadd.f32 %v2455, %v2489
        %v2506 = vadd.f32 %v2456, %v2490
        %v2507 = vld [vmem:[%s6] sm:$0x1]
        %v2509 = vperm.slane %v2507, 0
        %v2511 = vadd.f32 %v2491, %v2509
        %v2512 = vadd.f32 %v2492, %v2509
        %v2513 = vadd.f32 %v2493, %v2509
        %v2514 = vadd.f32 %v2494, %v2509
        %v2515 = vadd.f32 %v2495, %v2509
        %v2516 = vadd.f32 %v2496, %v2509
        %v2517 = vadd.f32 %v2497, %v2509
        %v2518 = vadd.f32 %v2498, %v2509
        %v2519 = vadd.f32 %v2499, %v2509
        %v2520 = vadd.f32 %v2500, %v2509
        %v2521 = vadd.f32 %v2501, %v2509
        %v2522 = vadd.f32 %v2502, %v2509
        %v2523 = vadd.f32 %v2503, %v2509
        %v2524 = vadd.f32 %v2504, %v2509
        %v2525 = vadd.f32 %v2505, %v2509
        %v2526 = vadd.f32 %v2506, %v2509
        %v2527 = vmul.f32 %v2511, 0.5
        %v2528 = vmul.f32 %v2512, 0.5
        %v2529 = vmul.f32 %v2513, 0.5
        %v2530 = vmul.f32 %v2514, 0.5
        %v2531 = vmul.f32 %v2515, 0.5
        %v2532 = vmul.f32 %v2516, 0.5
        %v2533 = vmul.f32 %v2517, 0.5
        %v2534 = vmul.f32 %v2518, 0.5
        %v2535 = vmul.f32 %v2519, 0.5
        %v2536 = vmul.f32 %v2520, 0.5
        %v2537 = vmul.f32 %v2521, 0.5
        %v2538 = vmul.f32 %v2522, 0.5
        %v2539 = vmul.f32 %v2523, 0.5
        %v2540 = vmul.f32 %v2524, 0.5
        %v2541 = vmul.f32 %v2525, 0.5
        %v2542 = vmul.f32 %v2526, 0.5
        %v2543 = vtanh.pop %v2527
        %v2544 = vtanh.pop %v2528
        %v2545 = vtanh.pop %v2529
        %v2546 = vtanh.pop %v2530
        %v2547 = vtanh.pop %v2531
        %v2548 = vtanh.pop %v2532
        %v2549 = vtanh.pop %v2533
        %v2550 = vtanh.pop %v2534
        %v2551 = vtanh.pop %v2535
        %v2552 = vtanh.pop %v2536
        %v2553 = vtanh.pop %v2537
        %v2554 = vtanh.pop %v2538
        %v2555 = vtanh.pop %v2539
        %v2556 = vtanh.pop %v2540
        %v2557 = vtanh.pop %v2541
        %v2558 = vtanh.pop %v2542
        %v2559 = vmul.f32 %v2543, 0.5
        %v2560 = vmul.f32 %v2544, 0.5
        %v2561 = vmul.f32 %v2545, 0.5
        %v2562 = vmul.f32 %v2546, 0.5
        %v2563 = vmul.f32 %v2547, 0.5
        %v2564 = vmul.f32 %v2548, 0.5
        %v2565 = vmul.f32 %v2549, 0.5
        %v2566 = vmul.f32 %v2550, 0.5
        %v2567 = vmul.f32 %v2551, 0.5
        %v2568 = vmul.f32 %v2552, 0.5
        %v2569 = vmul.f32 %v2553, 0.5
        %v2570 = vmul.f32 %v2554, 0.5
        %v2571 = vmul.f32 %v2555, 0.5
        %v2572 = vmul.f32 %v2556, 0.5
        %v2573 = vmul.f32 %v2557, 0.5
        %v2574 = vmul.f32 %v2558, 0.5
        %v2575 = vadd.f32 %v2559, 0.5
        %v2576 = vadd.f32 %v2560, 0.5
        %v2577 = vadd.f32 %v2561, 0.5
        %v2578 = vadd.f32 %v2562, 0.5
        %v2579 = vadd.f32 %v2563, 0.5
        %v2580 = vadd.f32 %v2564, 0.5
        %v2581 = vadd.f32 %v2565, 0.5
        %v2582 = vadd.f32 %v2566, 0.5
        %v2583 = vadd.f32 %v2567, 0.5
        %v2584 = vadd.f32 %v2568, 0.5
        %v2585 = vadd.f32 %v2569, 0.5
        %v2586 = vadd.f32 %v2570, 0.5
        %v2587 = vadd.f32 %v2571, 0.5
        %v2588 = vadd.f32 %v2572, 0.5
        %v2589 = vadd.f32 %v2573, 0.5
        %v2590 = vadd.f32 %v2574, 0.5
        %v2591 = vmul.f32 %v2511, %v2575
        %v2592 = vmul.f32 %v2512, %v2576
        %v2593 = vmul.f32 %v2513, %v2577
        %v2594 = vmul.f32 %v2514, %v2578
        %v2595 = vmul.f32 %v2515, %v2579
        %v2596 = vmul.f32 %v2516, %v2580
        %v2597 = vmul.f32 %v2517, %v2581
        %v2598 = vmul.f32 %v2518, %v2582
        %v2599 = vmul.f32 %v2519, %v2583
        %v2600 = vmul.f32 %v2520, %v2584
        %v2601 = vmul.f32 %v2521, %v2585
        %v2602 = vmul.f32 %v2522, %v2586
        %v2603 = vmul.f32 %v2523, %v2587
        %v2604 = vmul.f32 %v2524, %v2588
        %v2605 = vmul.f32 %v2525, %v2589
        %v2606 = vmul.f32 %v2526, %v2590
        %v2607 = vsel %vm2009, %v2591, 0.0
        %v2608 = vsel %vm2009, %v2592, 0.0
        %v2609 = vadd.f32 %v2607, %v2608
        %v2610 = vsel %vm2009, %v2593, 0.0
        %v2611 = vadd.f32 %v2609, %v2610
        %v2612 = vsel %vm2009, %v2594, 0.0
        %v2613 = vadd.f32 %v2611, %v2612
        %v2614 = vsel %vm2009, %v2595, 0.0
        %v2615 = vadd.f32 %v2613, %v2614
        %v2616 = vsel %vm2009, %v2596, 0.0
        %v2617 = vadd.f32 %v2615, %v2616
        %v2618 = vsel %vm2009, %v2597, 0.0
        %v2619 = vadd.f32 %v2617, %v2618
        %v2620 = vsel %vm2009, %v2598, 0.0
        %v2621 = vadd.f32 %v2619, %v2620
        %v2622 = vsel %vm2009, %v2599, 0.0
        %v2623 = vadd.f32 %v2621, %v2622
        %v2624 = vsel %vm2009, %v2600, 0.0
        %v2625 = vadd.f32 %v2623, %v2624
        %v2626 = vsel %vm2009, %v2601, 0.0
        %v2627 = vadd.f32 %v2625, %v2626
        %v2628 = vsel %vm2009, %v2602, 0.0
        %v2629 = vadd.f32 %v2627, %v2628
        %v2630 = vsel %vm2009, %v2603, 0.0
        %v2631 = vadd.f32 %v2629, %v2630
        %v2632 = vsel %vm2009, %v2604, 0.0
        %v2633 = vadd.f32 %v2631, %v2632
        %v2634 = vsel %vm2009, %v2605, 0.0
        %v2635 = vadd.f32 %v2633, %v2634
        %v2636 = vsel %vm2009, %v2606, 0.0
        %v2637 = vadd.f32 %v2635, %v2636
        %v2638 = vrot.slane %v2637, 4
        %v2639 = vadd.f32 %v2637, %v2638
        %v2640 = vrot.slane %v2639, 2
        %v2641 = vadd.f32 %v2639, %v2640
        %v2642 = vrot.slane %v2641, 1
        %v2643 = vadd.f32 %v2641, %v2642
        %v2644 = vmul.f32 %v2643, 0.0078125
        %v2645 = vld [vmem:[%s7] sm:$0xff]
        %v2646 = vld [vmem:[%s7 + $0x8] sm:$0xff]
        %v2647 = vld [vmem:[%s7 + $0x10] sm:$0xff]
        %v2648 = vld [vmem:[%s7 + $0x18] sm:$0xff]
        %v2649 = vld [vmem:[%s7 + $0x20] sm:$0xff]
        %v2650 = vld [vmem:[%s7 + $0x28] sm:$0xff]
        %v2651 = vld [vmem:[%s7 + $0x30] sm:$0xff]
        %v2652 = vld [vmem:[%s7 + $0x38] sm:$0xff]
        %v2653 = vld [vmem:[%s8] sm:$0x1]
        %v2655 = vsel %vm2009, %v2644, 0
        %2657 = vmatpush.msra.mxu0 0.0
        %2658 = vmatpush.msra.mxu0 0.0
        %2659 = vmatpush.msra.mxu0 0.0
        %2660 = vmatpush.msra.mxu0 0.0
        %2661 = vmatpush.msra.mxu0 0.0
        %2662 = vmatpush.msra.mxu0 0.0
        %2663 = vmatpush.msra.mxu0 0.0
        %2664 = vmatpush.msra.mxu0 0.0
        %2665 = vmatpush.msra.mxu0 %v2652
        %2666 = vmatpush.msra.mxu0 %v2651
        %2667 = vmatpush.msra.mxu0 %v2650
        %2668 = vmatpush.msra.mxu0 %v2649
        %2669 = vmatpush.msra.mxu0 %v2648
        %2670 = vmatpush.msra.mxu0 %v2647
        %2671 = vmatpush.msra.mxu0 %v2646
        %2672 = vmatpush.msra.mxu0 %v2645
        %2673 = vmatmul.f32.gmra.mxu0 %v2655
        %v2674 = vpop.f32.mrf.mxu0
        %v2675 = vadd.f32 %v2653, %v2674
        %2676 = vdwg.mxu0
        %v2677 = vmul.f32 %v2675, 0.5
        %v2678 = vtanh.pop %v2677
        %v2679 = vmul.f32 %v2678, 0.5
        %v2680 = vadd.f32 %v2679, 0.5
        %v2681 = vmul.f32 %v2675, %v2680
        %v2682 = vld [vmem:[%s9] sm:$0xff]
        %v2683 = vld [vmem:[%s10] sm:$0x1]
        %v2685 = vsel %vm1586, %v2681, 0
        %2687 = vmatpush.msra.mxu0 0.0
        %2688 = vmatpush.msra.mxu0 0.0
        %2689 = vmatpush.msra.mxu0 0.0
        %2690 = vmatpush.msra.mxu0 0.0
        %2691 = vmatpush.msra.mxu0 0.0
        %2692 = vmatpush.msra.mxu0 0.0
        %2693 = vmatpush.msra.mxu0 0.0
        %2694 = vmatpush.msra.mxu0 0.0
        %2695 = vmatpush.msra.mxu0 0.0
        %2696 = vmatpush.msra.mxu0 0.0
        %2697 = vmatpush.msra.mxu0 0.0
        %2698 = vmatpush.msra.mxu0 0.0
        %2699 = vmatpush.msra.mxu0 0.0
        %2700 = vmatpush.msra.mxu0 0.0
        %2701 = vmatpush.msra.mxu0 0.0
        %2702 = vmatpush.msra.mxu0 %v2682
        %2703 = vmatmul.f32.gmra.mxu0 %v2685
        %v2704 = vpop.f32.mrf.mxu0
        %v2705 = vadd.f32 %v2683, %v2704
        %2706 = vdwg.mxu0
        %v2707 = vmul.f32 %v2705, 0.5
        %v2708 = vtanh.pop %v2707
        %v2709 = vmul.f32 %v2708, 0.5
        %v2710 = vadd.f32 %v2709, 0.5
        %v2711 = vperm.slane %v2710, 0
        %v2712 = vmul.f32 %v2591, %v2711
        %v2713 = vmul.f32 %v2592, %v2711
        %v2714 = vmul.f32 %v2593, %v2711
        %v2715 = vmul.f32 %v2594, %v2711
        %v2716 = vmul.f32 %v2595, %v2711
        %v2717 = vmul.f32 %v2596, %v2711
        %v2718 = vmul.f32 %v2597, %v2711
        %v2719 = vmul.f32 %v2598, %v2711
        %v2720 = vmul.f32 %v2599, %v2711
        %v2721 = vmul.f32 %v2600, %v2711
        %v2722 = vmul.f32 %v2601, %v2711
        %v2723 = vmul.f32 %v2602, %v2711
        %v2724 = vmul.f32 %v2603, %v2711
        %v2725 = vmul.f32 %v2604, %v2711
        %v2726 = vmul.f32 %v2605, %v2711
        %v2727 = vmul.f32 %v2606, %v2711
        %v2728 = vld [vmem:[%s11] sm:$0xff]
        %v2729 = vld [vmem:[%s11 + $0x8] sm:$0xff]
        %v2730 = vld [vmem:[%s11 + $0x10] sm:$0xff]
        %v2731 = vld [vmem:[%s11 + $0x18] sm:$0xff]
        %v2732 = vld [vmem:[%s11 + $0x20] sm:$0xff]
        %v2733 = vld [vmem:[%s11 + $0x28] sm:$0xff]
        %v2734 = vld [vmem:[%s11 + $0x30] sm:$0xff]
        %v2735 = vld [vmem:[%s11 + $0x38] sm:$0xff]
        %v2736 = vld [vmem:[%s12] sm:$0x1]
        %v2738 = vperm.slane %v2736, 0
        %v2741 = vsel %vm2009, %v2712, 0
        %v2744 = vsel %vm2009, %v2713, 0
        %v2747 = vsel %vm2009, %v2714, 0
        %v2750 = vsel %vm2009, %v2715, 0
        %v2753 = vsel %vm2009, %v2716, 0
        %v2756 = vsel %vm2009, %v2717, 0
        %v2759 = vsel %vm2009, %v2718, 0
        %v2762 = vsel %vm2009, %v2719, 0
        %v2765 = vsel %vm2009, %v2720, 0
        %v2768 = vsel %vm2009, %v2721, 0
        %v2771 = vsel %vm2009, %v2722, 0
        %v2774 = vsel %vm2009, %v2723, 0
        %v2777 = vsel %vm2009, %v2724, 0
        %v2780 = vsel %vm2009, %v2725, 0
        %v2783 = vsel %vm2009, %v2726, 0
        %v2786 = vsel %vm2009, %v2727, 0
        %2788 = vmatpush.msra.mxu0 0.0
        %2789 = vmatpush.msra.mxu0 0.0
        %2790 = vmatpush.msra.mxu0 0.0
        %2791 = vmatpush.msra.mxu0 0.0
        %2792 = vmatpush.msra.mxu0 0.0
        %2793 = vmatpush.msra.mxu0 0.0
        %2794 = vmatpush.msra.mxu0 0.0
        %2795 = vmatpush.msra.mxu0 0.0
        %2796 = vmatpush.msra.mxu0 %v2735
        %2797 = vmatpush.msra.mxu0 %v2734
        %2798 = vmatpush.msra.mxu0 %v2733
        %2799 = vmatpush.msra.mxu0 %v2732
        %2800 = vmatpush.msra.mxu0 %v2731
        %2801 = vmatpush.msra.mxu0 %v2730
        %2802 = vmatpush.msra.mxu0 %v2729
        %2803 = vmatpush.msra.mxu0 %v2728
        %2804 = vmatmul.f32.gmra.mxu0 %v2741
        %v2805 = vpop.f32.mrf.mxu0
        %v2806 = vadd.f32 %v2738, %v2805
        %2807 = vmatmul.f32.gmra.mxu0 %v2744
        %v2808 = vpop.f32.mrf.mxu0
        %v2809 = vadd.f32 %v2738, %v2808
        %2810 = vmatmul.f32.gmra.mxu0 %v2747
        %v2811 = vpop.f32.mrf.mxu0
        %v2812 = vadd.f32 %v2738, %v2811
        %2813 = vmatmul.f32.gmra.mxu0 %v2750
        %v2814 = vpop.f32.mrf.mxu0
        %v2815 = vadd.f32 %v2738, %v2814
        %2816 = vmatmul.f32.gmra.mxu0 %v2753
        %v2817 = vpop.f32.mrf.mxu0
        %v2818 = vadd.f32 %v2738, %v2817
        %2819 = vmatmul.f32.gmra.mxu0 %v2756
        %v2820 = vpop.f32.mrf.mxu0
        %v2821 = vadd.f32 %v2738, %v2820
        %2822 = vmatmul.f32.gmra.mxu0 %v2759
        %v2823 = vpop.f32.mrf.mxu0
        %v2824 = vadd.f32 %v2738, %v2823
        %2825 = vmatmul.f32.gmra.mxu0 %v2762
        %v2826 = vpop.f32.mrf.mxu0
        %v2827 = vadd.f32 %v2738, %v2826
        %2828 = vmatmul.f32.gmra.mxu0 %v2765
        %v2829 = vpop.f32.mrf.mxu0
        %v2830 = vadd.f32 %v2738, %v2829
        %2831 = vmatmul.f32.gmra.mxu0 %v2768
        %v2832 = vpop.f32.mrf.mxu0
        %v2833 = vadd.f32 %v2738, %v2832
        %2834 = vmatmul.f32.gmra.mxu0 %v2771
        %v2835 = vpop.f32.mrf.mxu0
        %v2836 = vadd.f32 %v2738, %v2835
        %2837 = vmatmul.f32.gmra.mxu0 %v2774
        %v2838 = vpop.f32.mrf.mxu0
        %v2839 = vadd.f32 %v2738, %v2838
        %2840 = vmatmul.f32.gmra.mxu0 %v2777
        %v2841 = vpop.f32.mrf.mxu0
        %v2842 = vadd.f32 %v2738, %v2841
        %2843 = vmatmul.f32.gmra.mxu0 %v2780
        %v2844 = vpop.f32.mrf.mxu0
        %v2845 = vadd.f32 %v2738, %v2844
        %2846 = vmatmul.f32.gmra.mxu0 %v2783
        %v2847 = vpop.f32.mrf.mxu0
        %v2848 = vadd.f32 %v2738, %v2847
        %2849 = vmatmul.f32.gmra.mxu0 %v2786
        %v2850 = vpop.f32.mrf.mxu0
        %v2851 = vadd.f32 %v2738, %v2850
        %2852 = vdwg.mxu0
        %v2853 = vadd.f32 %v2806, %v1791
        %v2854 = vadd.f32 %v2809, %v1792
        %v2855 = vadd.f32 %v2812, %v1793
        %v2856 = vadd.f32 %v2815, %v1794
        %v2857 = vadd.f32 %v2818, %v1795
        %v2858 = vadd.f32 %v2821, %v1796
        %v2859 = vadd.f32 %v2824, %v1797
        %v2860 = vadd.f32 %v2827, %v1798
        %v2861 = vadd.f32 %v2830, %v1799
        %v2862 = vadd.f32 %v2833, %v1800
        %v2863 = vadd.f32 %v2836, %v1801
        %v2864 = vadd.f32 %v2839, %v1802
        %v2865 = vadd.f32 %v2842, %v1803
        %v2866 = vadd.f32 %v2845, %v1804
        %v2867 = vadd.f32 %v2848, %v1805
        %v2868 = vadd.f32 %v2851, %v1806
        %v2869 = vld [vmem:[%s13] sm:$0xff]
        %v2870 = vld [vmem:[%s13 + $0x8] sm:$0xff]
        %v2871 = vld [vmem:[%s13 + $0x10] sm:$0xff]
        %v2872 = vld [vmem:[%s13 + $0x18] sm:$0xff]
        %v2873 = vld [vmem:[%s14] sm:$0x1]
        %v2875 = vperm.slane %v2873, 0
        %v2878 = vsel %vm1815, %v2853, 0
        %v2881 = vsel %vm1815, %v2854, 0
        %v2884 = vsel %vm1815, %v2855, 0
        %v2887 = vsel %vm1815, %v2856, 0
        %v2890 = vsel %vm1815, %v2857, 0
        %v2893 = vsel %vm1815, %v2858, 0
        %v2896 = vsel %vm1815, %v2859, 0
        %v2899 = vsel %vm1815, %v2860, 0
        %v2902 = vsel %vm1815, %v2861, 0
        %v2905 = vsel %vm1815, %v2862, 0
        %v2908 = vsel %vm1815, %v2863, 0
        %v2911 = vsel %vm1815, %v2864, 0
        %v2914 = vsel %vm1815, %v2865, 0
        %v2917 = vsel %vm1815, %v2866, 0
        %v2920 = vsel %vm1815, %v2867, 0
        %v2923 = vsel %vm1815, %v2868, 0
        %2925 = vmatpush.msra.mxu0 0.0
        %2926 = vmatpush.msra.mxu0 0.0
        %2927 = vmatpush.msra.mxu0 0.0
        %2928 = vmatpush.msra.mxu0 0.0
        %2929 = vmatpush.msra.mxu0 0.0
        %2930 = vmatpush.msra.mxu0 0.0
        %2931 = vmatpush.msra.mxu0 0.0
        %2932 = vmatpush.msra.mxu0 0.0
        %2933 = vmatpush.msra.mxu0 0.0
        %2934 = vmatpush.msra.mxu0 0.0
        %2935 = vmatpush.msra.mxu0 0.0
        %2936 = vmatpush.msra.mxu0 0.0
        %2937 = vmatpush.msra.mxu0 %v2872
        %2938 = vmatpush.msra.mxu0 %v2871
        %2939 = vmatpush.msra.mxu0 %v2870
        %2940 = vmatpush.msra.mxu0 %v2869
        %2941 = vmatmul.f32.gmra.mxu0 %v2878
        %v2942 = vpop.f32.mrf.mxu0
        %v2943 = vadd.f32 %v2875, %v2942
        %2944 = vmatmul.f32.gmra.mxu0 %v2881
        %v2945 = vpop.f32.mrf.mxu0
        %v2946 = vadd.f32 %v2875, %v2945
        %2947 = vmatmul.f32.gmra.mxu0 %v2884
        %v2948 = vpop.f32.mrf.mxu0
        %v2949 = vadd.f32 %v2875, %v2948
        %2950 = vmatmul.f32.gmra.mxu0 %v2887
        %v2951 = vpop.f32.mrf.mxu0
        %v2952 = vadd.f32 %v2875, %v2951
        %2953 = vmatmul.f32.gmra.mxu0 %v2890
        %v2954 = vpop.f32.mrf.mxu0
        %v2955 = vadd.f32 %v2875, %v2954
        %2956 = vmatmul.f32.gmra.mxu0 %v2893
        %v2957 = vpop.f32.mrf.mxu0
        %v2958 = vadd.f32 %v2875, %v2957
        %2959 = vmatmul.f32.gmra.mxu0 %v2896
        %v2960 = vpop.f32.mrf.mxu0
        %v2961 = vadd.f32 %v2875, %v2960
        %2962 = vmatmul.f32.gmra.mxu0 %v2899
        %v2963 = vpop.f32.mrf.mxu0
        %v2964 = vadd.f32 %v2875, %v2963
        %2965 = vmatmul.f32.gmra.mxu0 %v2902
        %v2966 = vpop.f32.mrf.mxu0
        %v2967 = vadd.f32 %v2875, %v2966
        %2968 = vmatmul.f32.gmra.mxu0 %v2905
        %v2969 = vpop.f32.mrf.mxu0
        %v2970 = vadd.f32 %v2875, %v2969
        %2971 = vmatmul.f32.gmra.mxu0 %v2908
        %v2972 = vpop.f32.mrf.mxu0
        %v2973 = vadd.f32 %v2875, %v2972
        %2974 = vmatmul.f32.gmra.mxu0 %v2911
        %v2975 = vpop.f32.mrf.mxu0
        %v2976 = vadd.f32 %v2875, %v2975
        %2977 = vmatmul.f32.gmra.mxu0 %v2914
        %v2978 = vpop.f32.mrf.mxu0
        %v2979 = vadd.f32 %v2875, %v2978
        %2980 = vmatmul.f32.gmra.mxu0 %v2917
        %v2981 = vpop.f32.mrf.mxu0
        %v2982 = vadd.f32 %v2875, %v2981
        %2983 = vmatmul.f32.gmra.mxu0 %v2920
        %v2984 = vpop.f32.mrf.mxu0
        %v2985 = vadd.f32 %v2875, %v2984
        %2986 = vmatmul.f32.gmra.mxu0 %v2923
        %v2987 = vpop.f32.mrf.mxu0
        %v2988 = vadd.f32 %v2875, %v2987
        %2989 = vdwg.mxu0
        %v2990 = vmul.f32 %v2943, 0.5
        %v2991 = vmul.f32 %v2946, 0.5
        %v2992 = vmul.f32 %v2949, 0.5
        %v2993 = vmul.f32 %v2952, 0.5
        %v2994 = vmul.f32 %v2955, 0.5
        %v2995 = vmul.f32 %v2958, 0.5
        %v2996 = vmul.f32 %v2961, 0.5
        %v2997 = vmul.f32 %v2964, 0.5
        %v2998 = vmul.f32 %v2967, 0.5
        %v2999 = vmul.f32 %v2970, 0.5
        %v3000 = vmul.f32 %v2973, 0.5
        %v3001 = vmul.f32 %v2976, 0.5
        %v3002 = vmul.f32 %v2979, 0.5
        %v3003 = vmul.f32 %v2982, 0.5
        %v3004 = vmul.f32 %v2985, 0.5
        %v3005 = vmul.f32 %v2988, 0.5
        %v3006 = vtanh.pop %v2990
        %v3007 = vtanh.pop %v2991
        %v3008 = vtanh.pop %v2992
        %v3009 = vtanh.pop %v2993
        %v3010 = vtanh.pop %v2994
        %v3011 = vtanh.pop %v2995
        %v3012 = vtanh.pop %v2996
        %v3013 = vtanh.pop %v2997
        %v3014 = vtanh.pop %v2998
        %v3015 = vtanh.pop %v2999
        %v3016 = vtanh.pop %v3000
        %v3017 = vtanh.pop %v3001
        %v3018 = vtanh.pop %v3002
        %v3019 = vtanh.pop %v3003
        %v3020 = vtanh.pop %v3004
        %v3021 = vtanh.pop %v3005
        %v3022 = vmul.f32 %v3006, 0.5
        %v3023 = vmul.f32 %v3007, 0.5
        %v3024 = vmul.f32 %v3008, 0.5
        %v3025 = vmul.f32 %v3009, 0.5
        %v3026 = vmul.f32 %v3010, 0.5
        %v3027 = vmul.f32 %v3011, 0.5
        %v3028 = vmul.f32 %v3012, 0.5
        %v3029 = vmul.f32 %v3013, 0.5
        %v3030 = vmul.f32 %v3014, 0.5
        %v3031 = vmul.f32 %v3015, 0.5
        %v3032 = vmul.f32 %v3016, 0.5
        %v3033 = vmul.f32 %v3017, 0.5
        %v3034 = vmul.f32 %v3018, 0.5
        %v3035 = vmul.f32 %v3019, 0.5
        %v3036 = vmul.f32 %v3020, 0.5
        %v3037 = vmul.f32 %v3021, 0.5
        %v3038 = vadd.f32 %v3022, 0.5
        %v3039 = vadd.f32 %v3023, 0.5
        %v3040 = vadd.f32 %v3024, 0.5
        %v3041 = vadd.f32 %v3025, 0.5
        %v3042 = vadd.f32 %v3026, 0.5
        %v3043 = vadd.f32 %v3027, 0.5
        %v3044 = vadd.f32 %v3028, 0.5
        %v3045 = vadd.f32 %v3029, 0.5
        %v3046 = vadd.f32 %v3030, 0.5
        %v3047 = vadd.f32 %v3031, 0.5
        %v3048 = vadd.f32 %v3032, 0.5
        %v3049 = vadd.f32 %v3033, 0.5
        %v3050 = vadd.f32 %v3034, 0.5
        %v3051 = vadd.f32 %v3035, 0.5
        %v3052 = vadd.f32 %v3036, 0.5
        %v3053 = vadd.f32 %v3037, 0.5
        %v3054 = vmul.f32 %v2943, %v3038
        %v3055 = vmul.f32 %v2946, %v3039
        %v3056 = vmul.f32 %v2949, %v3040
        %v3057 = vmul.f32 %v2952, %v3041
        %v3058 = vmul.f32 %v2955, %v3042
        %v3059 = vmul.f32 %v2958, %v3043
        %v3060 = vmul.f32 %v2961, %v3044
        %v3061 = vmul.f32 %v2964, %v3045
        %v3062 = vmul.f32 %v2967, %v3046
        %v3063 = vmul.f32 %v2970, %v3047
        %v3064 = vmul.f32 %v2973, %v3048
        %v3065 = vmul.f32 %v2976, %v3049
        %v3066 = vmul.f32 %v2979, %v3050
        %v3067 = vmul.f32 %v2982, %v3051
        %v3068 = vmul.f32 %v2985, %v3052
        %v3069 = vmul.f32 %v2988, %v3053
        %v3070 = vsel %vm2009, %v3054, 0.0
        %v3071 = vsel %vm2009, %v3055, 0.0
        %v3072 = vadd.f32 %v3070, %v3071
        %v3073 = vsel %vm2009, %v3056, 0.0
        %v3074 = vadd.f32 %v3072, %v3073
        %v3075 = vsel %vm2009, %v3057, 0.0
        %v3076 = vadd.f32 %v3074, %v3075
        %v3077 = vsel %vm2009, %v3058, 0.0
        %v3078 = vadd.f32 %v3076, %v3077
        %v3079 = vsel %vm2009, %v3059, 0.0
        %v3080 = vadd.f32 %v3078, %v3079
        %v3081 = vsel %vm2009, %v3060, 0.0
        %v3082 = vadd.f32 %v3080, %v3081
        %v3083 = vsel %vm2009, %v3061, 0.0
        %v3084 = vadd.f32 %v3082, %v3083
        %v3085 = vsel %vm2009, %v3062, 0.0
        %v3086 = vadd.f32 %v3084, %v3085
        %v3087 = vsel %vm2009, %v3063, 0.0
        %v3088 = vadd.f32 %v3086, %v3087
        %v3089 = vsel %vm2009, %v3064, 0.0
        %v3090 = vadd.f32 %v3088, %v3089
        %v3091 = vsel %vm2009, %v3065, 0.0
        %v3092 = vadd.f32 %v3090, %v3091
        %v3093 = vsel %vm2009, %v3066, 0.0
        %v3094 = vadd.f32 %v3092, %v3093
        %v3095 = vsel %vm2009, %v3067, 0.0
        %v3096 = vadd.f32 %v3094, %v3095
        %v3097 = vsel %vm2009, %v3068, 0.0
        %v3098 = vadd.f32 %v3096, %v3097
        %v3099 = vsel %vm2009, %v3069, 0.0
        %v3100 = vadd.f32 %v3098, %v3099
        %v3101 = vrot.slane %v3100, 4
        %v3102 = vadd.f32 %v3100, %v3101
        %v3103 = vrot.slane %v3102, 2
        %v3104 = vadd.f32 %v3102, %v3103
        %v3105 = vrot.slane %v3104, 1
        %v3106 = vadd.f32 %v3104, %v3105
        %v3107 = vmul.f32 %v3106, 0.0078125
        %v3108 = vld [vmem:[%s15] sm:$0xff]
        %v3109 = vld [vmem:[%s15 + $0x8] sm:$0xff]
        %v3110 = vld [vmem:[%s15 + $0x10] sm:$0xff]
        %v3111 = vld [vmem:[%s15 + $0x18] sm:$0xff]
        %v3112 = vld [vmem:[%s15 + $0x20] sm:$0xff]
        %v3113 = vld [vmem:[%s15 + $0x28] sm:$0xff]
        %v3114 = vld [vmem:[%s15 + $0x30] sm:$0xff]
        %v3115 = vld [vmem:[%s15 + $0x38] sm:$0xff]
        %v3116 = vld [vmem:[%s16] sm:$0x1]
        %v3118 = vsel %vm2009, %v3107, 0
        %3120 = vmatpush.msra.mxu0 0.0
        %3121 = vmatpush.msra.mxu0 0.0
        %3122 = vmatpush.msra.mxu0 0.0
        %3123 = vmatpush.msra.mxu0 0.0
        %3124 = vmatpush.msra.mxu0 0.0
        %3125 = vmatpush.msra.mxu0 0.0
        %3126 = vmatpush.msra.mxu0 0.0
        %3127 = vmatpush.msra.mxu0 0.0
        %3128 = vmatpush.msra.mxu0 %v3115
        %3129 = vmatpush.msra.mxu0 %v3114
        %3130 = vmatpush.msra.mxu0 %v3113
        %3131 = vmatpush.msra.mxu0 %v3112
        %3132 = vmatpush.msra.mxu0 %v3111
        %3133 = vmatpush.msra.mxu0 %v3110
        %3134 = vmatpush.msra.mxu0 %v3109
        %3135 = vmatpush.msra.mxu0 %v3108
        %3136 = vmatmul.f32.gmra.mxu0 %v3118
        %v3137 = vpop.f32.mrf.mxu0
        %v3138 = vadd.f32 %v3116, %v3137
        %3139 = vdwg.mxu0
        %vm3140 = vcmask 40960
        %3141 = vst.msk [vmem:[%s540] sm:$0x1] %vm3140, %v3138
        %s3142 = sand.u32 %s401, 1
        %s3143 = scalar_lea.sflag [#allocation4], %s3142
        %s3144 = sand.u32 %s401, 1
        %s3145 = scalar_lea.vmem [#allocation3], %s3144
        // Predicated region
        $region89: #{eegnet_forward.1} parent=87 // pred_check
          %p3146 = pneg %p411
        $region90: #{eegnet_forward.1} parent=87 // pred_check_branch
          %3148 = sbr.rel (%p3146) target = $region92
        $region91: #{eegnet_forward.1} parent=87 // pred_region
          %3150 = vsyncadd %s3143, 0
          %s3151 = scalar_lea.hbm %s17, %s31
          %s3153 = sshll.u32 %s3145, 4
          %s3154 = int_to_ptr.vmem [resolvable:$true] %s3153
          %s3155 = sshll.u32 %s3151, 4
          %s3156 = int_to_ptr.hbm [resolvable:$true] %s3155
          %3158 = dma.vmem_to_hbm [thread:$0]  %s3154, 16, %s3156, %s3143
        $region92: #{eegnet_forward.1} parent=87 // pred_fallthru
          _
      $region88: #{eegnet_forward.1} parent=5 // pred_fallthru
        _
      %p3159 = scmp.le.s32.totalorder 2, %s26
      // Predicated region
      $region93: #{eegnet_forward.1} parent=5 // pred_check
        %p3160 = pneg %p3159
      $region94: #{eegnet_forward.1} parent=5 // pred_check_branch
        %3162 = sbr.rel (%p3160) target = $region96
      $region95: #{eegnet_forward.1} parent=5 // pred_region
        %s3163 = ssub.s32 %s26, 2
        // Predicated region
        $region97: #{eegnet_forward.1} parent=95 // pred_check
          %p3164 = pneg %p417
        $region98: #{eegnet_forward.1} parent=95 // pred_check_branch
          %3166 = sbr.rel (%p3164) target = $region100
        $region99: #{eegnet_forward.1} parent=95 // pred_region
          %s3167 = sand.u32 %s402, 1
          %s3168 = scalar_lea.sflag [#allocation4], %s3167
          %s3169 = sand.u32 %s402, 1
          %s3170 = scalar_lea.vmem [#allocation3], %s3169
          %3172 = dma.done %s3168, 16
        $region100: #{eegnet_forward.1} parent=95 // pred_fallthru
          _
      $region96: #{eegnet_forward.1} parent=5 // pred_fallthru
        _
    $region6: #{eegnet_forward.1} parent=1 // loop_footer
      %s30 = sadd.s32 1, %s26
    $region7: #{eegnet_forward.1} parent=1 // loop_footer_branch
      %25 = sbr.rel target = $region3
    $region8: #{eegnet_forward.1} parent=1 // loop_exit
      _
    %3173 = vsyncpa [#allocation4], 1
    %s3174 = scalar_lea.sflag [#allocation4], 1
    %3175 = vsyncpa %s3174, 1

</llo_original>
